<compile_context>
chip_gen: v5e
topology: v5e:2x2
jax: 0.10.0
libtpu: 0.0.40
codegen_flags: <defaults>
</compile_context>

<pallas_src>
import jax
import jax.numpy as jnp
from jax.experimental import pallas as pl
from jax.experimental.pallas import tpu as pltpu

N_EMBD = 50     # matches the module's n_embd
N_CLASSES = 5
LANE = 128
NC_PAD = 8      # logits padded from 5 -> 8 lanes
NEG_INF = -1e30


def _round_up(x, m):
    return (x + m - 1) // m * m


def _rec_kernel(u_idx_ref, m_idx_ref,     # (TB, 1) int32 indices
                ut_ref, mt_ref,           # (U_pad, 128), (M_pad, 128) packed tables (VMEM resident)
                w_ref, b_ref,             # (128, 8), (1, 8)  (padded; pad-bias = -1e30)
                out_ref):                 # (TB, 8)
    tb = out_ref.shape[0]
    u_pad = ut_ref.shape[0]
    m_pad = mt_ref.shape[0]
    hi = jax.lax.Precision.HIGHEST

    u_idx = u_idx_ref[...]                # (TB, 1)
    m_idx = m_idx_ref[...]                # (TB, 1)

    # One-hot gather on the MXU: (TB, U) @ (U, 128) + (TB, M) @ (M, 128)
    # The two tables are pre-packed into disjoint lane ranges, so the sum of the two
    # dots is exactly concat([user_emb, movie_emb]) padded to 128 lanes.
    onehot_u = (jax.lax.broadcasted_iota(jnp.int32, (tb, u_pad), 1) == u_idx
                ).astype(jnp.float32)
    onehot_m = (jax.lax.broadcasted_iota(jnp.int32, (tb, m_pad), 1) == m_idx
                ).astype(jnp.float32)
    x = (jnp.dot(onehot_u, ut_ref[...], preferred_element_type=jnp.float32, precision=hi)
         + jnp.dot(onehot_m, mt_ref[...], preferred_element_type=jnp.float32, precision=hi))

    # Linear: (TB, 128) @ (128, 8) + bias (pad columns biased to -1e30).
    logits = jnp.dot(x, w_ref[...], preferred_element_type=jnp.float32, precision=hi) \
        + b_ref[...]                      # (TB, 8)

    # Stable softmax over the last axis; padded columns contribute exp() == 0.
    z = logits - jnp.max(logits, axis=-1, keepdims=True)
    e = jnp.exp(z)
    denom = jnp.sum(e, axis=-1, keepdims=True)
    out_ref[...] = e * pl.reciprocal(denom, approx=False)


def recommender_forward(users, movies, user_table, movie_table, w, b, *, tb=256):
    """users/movies: (B,) int32 indices; w: (2*n_embd, 5) (i.e. nn.Linear weight
    transposed); b: (5,). Returns (B, 5) f32 softmax probabilities."""
    B = users.shape[0]
    n_users, n_embd = user_table.shape
    n_movies = movie_table.shape[0]
    assert w.shape == (2 * n_embd, N_CLASSES) and b.shape == (N_CLASSES,)
    assert 2 * n_embd <= LANE

    # Padded geometry.
    u_pad = _round_up(n_users, LANE)
    m_pad = _round_up(n_movies, LANE)
    b_pad = _round_up(max(B, 8), tb)

    f32 = jnp.float32
    # Pack user/movie tables into disjoint lane ranges of a 128-lane slab.
    ut_p = jnp.zeros((u_pad, LANE), f32).at[:n_users, :n_embd].set(user_table)
    mt_p = jnp.zeros((m_pad, LANE), f32).at[:n_movies, n_embd:2 * n_embd].set(movie_table)
    # Pad W to (128, 8); pad bias columns to -1e30 so they vanish in the softmax.
    w_p = jnp.zeros((LANE, NC_PAD), f32).at[:2 * n_embd, :N_CLASSES].set(w)
    bias_p = jnp.full((1, NC_PAD), NEG_INF, f32).at[0, :N_CLASSES].set(b)
    # Pad index vectors (padded rows point at row 0; their outputs are discarded).
    u_idx = jnp.zeros((b_pad, 1), jnp.int32).at[:B, 0].set(users.astype(jnp.int32))
    m_idx = jnp.zeros((b_pad, 1), jnp.int32).at[:B, 0].set(movies.astype(jnp.int32))

    grid = (b_pad // tb,)
    grid_spec = pltpu.PrefetchScalarGridSpec(
        num_scalar_prefetch=0,
        grid=grid,
        in_specs=[
            pl.BlockSpec((tb, 1), lambda i: (i, 0)),          # user indices tile
            pl.BlockSpec((tb, 1), lambda i: (i, 0)),          # movie indices tile
            pl.BlockSpec((u_pad, LANE), lambda i: (0, 0)),    # user table: VMEM resident
            pl.BlockSpec((m_pad, LANE), lambda i: (0, 0)),    # movie table: VMEM resident
            pl.BlockSpec((LANE, NC_PAD), lambda i: (0, 0)),   # W: VMEM resident
            pl.BlockSpec((1, NC_PAD), lambda i: (0, 0)),      # bias: VMEM resident
        ],
        out_specs=pl.BlockSpec((tb, NC_PAD), lambda i: (i, 0)),
    )

    out = pl.pallas_call(
        _rec_kernel,
        out_shape=jax.ShapeDtypeStruct((b_pad, NC_PAD), f32),
        grid_spec=grid_spec,
        compiler_params=pltpu.CompilerParams(
            dimension_semantics=("parallel",)),   # independent blocks -> both TCs on v7x
    )(u_idx, m_idx, ut_p, mt_p, w_p, bias_p)

    return out[:B, :N_CLASSES]


def _reference(users, movies, user_table, movie_table, w, b):
    u = user_table[users]
    m = movie_table[movies]
    x = jnp.concatenate([u, m], axis=1)
    logits = jnp.dot(x, w, precision=jax.lax.Precision.HIGHEST) + b
    return jax.nn.softmax(logits, axis=-1)


if __name__ == "__main__":
    n_users, n_movies, n_embd = 32, 64, N_EMBD
    batch = 8

    key = jax.random.PRNGKey(0)
    k_ut, k_mt, k_w, k_b, k_u, k_m = jax.random.split(key, 6)

    # deterministic synthetic parameters (shapes from the module's __init__)
    user_table = jax.random.normal(k_ut, (n_users, n_embd), jnp.float32)
    movie_table = jax.random.normal(k_mt, (n_movies, n_embd), jnp.float32)
    # nn.Linear(2*n_embd, 5): weight (5, 2*n_embd), bias (5,) -> stored transposed for x @ W
    w = jax.random.normal(k_w, (2 * n_embd, 5), jnp.float32) * 0.1
    b = jax.random.normal(k_b, (5,), jnp.float32) * 0.1

    users = jax.random.randint(k_u, (batch,), 0, n_users, jnp.int32)
    movies = jax.random.randint(k_m, (batch,), 0, n_movies, jnp.int32)

    out = recommender_forward(users, movies, user_table, movie_table, w, b)
    out = jax.block_until_ready(out)

    ref = _reference(users, movies, user_table, movie_table, w, b)
    assert out.shape == (batch, 5)
    assert jnp.allclose(out, ref, atol=1e-5, rtol=1e-5)
    assert jnp.allclose(jnp.sum(out, axis=-1), 1.0, atol=1e-5)

    print("KERNEL_OK")
</pallas_src>

<mosaic_0001>
module attributes {stable_mosaic.version = 11 : i64} {
  func.func @_rec_kernel(%arg0: i32, %arg1: memref<256x1xi32, #tpu.memory_space<vmem>>, %arg2: memref<256x1xi32, #tpu.memory_space<vmem>>, %arg3: memref<128x128xf32, #tpu.memory_space<vmem>>, %arg4: memref<128x128xf32, #tpu.memory_space<vmem>>, %arg5: memref<128x8xf32, #tpu.memory_space<vmem>>, %arg6: memref<1x8xf32, #tpu.memory_space<vmem>>, %arg7: memref<256x8xf32, #tpu.memory_space<vmem>>) attributes {dimension_semantics = [#tpu.dimension_semantics<parallel>], iteration_bounds = array<i64: 1>, scalar_prefetch = 0 : i64, scratch_operands = 0 : i64, tpu.core_type = #tpu.core_type<tc>, window_params = [{transform_indices = @transform_0, window_bounds = array<i64: 256, 1>}, {transform_indices = @transform_1, window_bounds = array<i64: 256, 1>}, {pipeline_mode = #tpu.pipeline_mode<synchronous>, transform_indices = @transform_2, window_bounds = array<i64: 128, 128>}, {pipeline_mode = #tpu.pipeline_mode<synchronous>, transform_indices = @transform_3, window_bounds = array<i64: 128, 128>}, {pipeline_mode = #tpu.pipeline_mode<synchronous>, transform_indices = @transform_4, window_bounds = array<i64: 128, 8>}, {pipeline_mode = #tpu.pipeline_mode<synchronous>, transform_indices = @transform_5, window_bounds = array<i64: 1, 8>}, {transform_indices = @transform_6, window_bounds = array<i64: 256, 8>}]} {
    %c0 = arith.constant 0 : index
    %c0_0 = arith.constant 0 : index
    %0 = vector.load %arg1[%c0, %c0_0] : memref<256x1xi32, #tpu.memory_space<vmem>>, vector<256x1xi32>
    %c0_1 = arith.constant 0 : index
    %c0_2 = arith.constant 0 : index
    %1 = vector.load %arg2[%c0_1, %c0_2] : memref<256x1xi32, #tpu.memory_space<vmem>>, vector<256x1xi32>
    %2 = tpu.iota {dimensions = array<i32: 1>} : vector<256x128xi32>
    %3 = vector.broadcast %0 : vector<256x1xi32> to vector<256x128xi32>
    %4 = arith.cmpi eq, %2, %3 : vector<256x128xi32>
    %5 = arith.extui %4 : vector<256x128xi1> to vector<256x128xi32>
    %6 = arith.sitofp %5 : vector<256x128xi32> to vector<256x128xf32>
    %7 = tpu.iota {dimensions = array<i32: 1>} : vector<256x128xi32>
    %8 = vector.broadcast %1 : vector<256x1xi32> to vector<256x128xi32>
    %9 = arith.cmpi eq, %7, %8 : vector<256x128xi32>
    %10 = arith.extui %9 : vector<256x128xi1> to vector<256x128xi32>
    %11 = arith.sitofp %10 : vector<256x128xi32> to vector<256x128xf32>
    %c0_3 = arith.constant 0 : index
    %c0_4 = arith.constant 0 : index
    %12 = vector.load %arg3[%c0_3, %c0_4] : memref<128x128xf32, #tpu.memory_space<vmem>>, vector<128x128xf32>
    %cst = arith.constant dense<0.000000e+00> : vector<256x128xf32>
    %13 = tpu.matmul %6, %12, %cst {dimension_numbers = #tpu.dot_dimension_numbers<[1], [0], [0], [1], [0, 0, 1, 1], [], []>, precision = #tpu.contract_precision<fp32>} : vector<256x128xf32>, vector<128x128xf32>, vector<256x128xf32> -> vector<256x128xf32>
    %c0_5 = arith.constant 0 : index
    %c0_6 = arith.constant 0 : index
    %14 = vector.load %arg4[%c0_5, %c0_6] : memref<128x128xf32, #tpu.memory_space<vmem>>, vector<128x128xf32>
    %cst_7 = arith.constant dense<0.000000e+00> : vector<256x128xf32>
    %15 = tpu.matmul %11, %14, %cst_7 {dimension_numbers = #tpu.dot_dimension_numbers<[1], [0], [0], [1], [0, 0, 1, 1], [], []>, precision = #tpu.contract_precision<fp32>} : vector<256x128xf32>, vector<128x128xf32>, vector<256x128xf32> -> vector<256x128xf32>
    %16 = arith.addf %13, %15 : vector<256x128xf32>
    %c0_8 = arith.constant 0 : index
    %c0_9 = arith.constant 0 : index
    %17 = vector.load %arg5[%c0_8, %c0_9] : memref<128x8xf32, #tpu.memory_space<vmem>>, vector<128x8xf32>
    %cst_10 = arith.constant dense<0.000000e+00> : vector<256x8xf32>
    %18 = tpu.matmul %16, %17, %cst_10 {dimension_numbers = #tpu.dot_dimension_numbers<[1], [0], [0], [1], [0, 0, 1, 1], [], []>, precision = #tpu.contract_precision<fp32>} : vector<256x128xf32>, vector<128x8xf32>, vector<256x8xf32> -> vector<256x8xf32>
    %c0_11 = arith.constant 0 : index
    %c0_12 = arith.constant 0 : index
    %19 = vector.load %arg6[%c0_11, %c0_12] : memref<1x8xf32, #tpu.memory_space<vmem>>, vector<1x8xf32>
    %20 = vector.broadcast %19 : vector<1x8xf32> to vector<256x8xf32>
    %21 = arith.addf %18, %20 : vector<256x8xf32>
    %cst_13 = arith.constant dense<0xFF800000> : vector<256xf32>
    %22 = vector.multi_reduction <maximumf>, %21, %cst_13 [1] : vector<256x8xf32> to vector<256xf32>
    %23 = vector.shape_cast %22 : vector<256xf32> to vector<256x1xf32>
    %24 = vector.broadcast %23 : vector<256x1xf32> to vector<256x8xf32>
    %25 = arith.subf %21, %24 : vector<256x8xf32>
    %26 = math.exp %25 : vector<256x8xf32>
    %cst_14 = arith.constant dense<0.000000e+00> : vector<256xf32>
    %27 = vector.multi_reduction <add>, %26, %cst_14 [1] : vector<256x8xf32> to vector<256xf32>
    %28 = vector.shape_cast %27 : vector<256xf32> to vector<256x1xf32>
    %29 = tpu.reciprocal %28 : vector<256x1xf32> -> vector<256x1xf32>
    %30 = vector.broadcast %29 : vector<256x1xf32> to vector<256x8xf32>
    %31 = arith.mulf %26, %30 : vector<256x8xf32>
    %c0_15 = arith.constant 0 : index
    %c0_16 = arith.constant 0 : index
    %32 = vector.load %arg7[%c0_15, %c0_16] : memref<256x8xf32, #tpu.memory_space<vmem>>, vector<256x8xf32>
    tpu.vector_store %arg7[%c0_15, %c0_16], %31 {strides = array<i32>} : memref<256x8xf32, #tpu.memory_space<vmem>>, vector<256x8xf32>,
    return
  }
  func.func @transform_0(%arg0: i32) -> (i32, i32) {
    %c0_i32 = arith.constant 0 : i32
    %c0_i32_0 = arith.constant 0 : i32
    return %arg0, %c0_i32 : i32, i32
  }
  func.func @transform_1(%arg0: i32) -> (i32, i32) {
    %c0_i32 = arith.constant 0 : i32
    %c0_i32_0 = arith.constant 0 : i32
    return %arg0, %c0_i32 : i32, i32
  }
  func.func @transform_2(%arg0: i32) -> (i32, i32) {
    %c0_i32 = arith.constant 0 : i32
    %c0_i32_0 = arith.constant 0 : i32
    %c0_i32_1 = arith.constant 0 : i32
    return %c0_i32, %c0_i32_0 : i32, i32
  }
  func.func @transform_3(%arg0: i32) -> (i32, i32) {
    %c0_i32 = arith.constant 0 : i32
    %c0_i32_0 = arith.constant 0 : i32
    %c0_i32_1 = arith.constant 0 : i32
    return %c0_i32, %c0_i32_0 : i32, i32
  }
  func.func @transform_4(%arg0: i32) -> (i32, i32) {
    %c0_i32 = arith.constant 0 : i32
    %c0_i32_0 = arith.constant 0 : i32
    %c0_i32_1 = arith.constant 0 : i32
    return %c0_i32, %c0_i32_0 : i32, i32
  }
  func.func @transform_5(%arg0: i32) -> (i32, i32) {
    %c0_i32 = arith.constant 0 : i32
    %c0_i32_0 = arith.constant 0 : i32
    %c0_i32_1 = arith.constant 0 : i32
    return %c0_i32, %c0_i32_0 : i32, i32
  }
  func.func @transform_6(%arg0: i32) -> (i32, i32) {
    %c0_i32 = arith.constant 0 : i32
    %c0_i32_0 = arith.constant 0 : i32
    return %arg0, %c0_i32 : i32, i32
  }
}

</mosaic_0001>

<llo_original>
// kernel: tpu_custom_call.1
$region0: #{tpu_custom_call.1}
  #allocation0 [shape = 'u32[]', space=smem, size = 0x4, offset = 0x4, fixed_abs, tag = 'smem constant byte address 0x4 - core index']
  #allocation1 [shape = 'u32[72,128]{1,0:T(1,128)}', space=vmem, size = 0x9000, scoped, tag = 'internal scratch']
  %s0 = inlined_call_operand.vmem [shape: s32[256,1], index: 0, kind: input, shape index: {}]
  %s1 = inlined_call_operand.vmem [shape: s32[256,1], index: 1, kind: input, shape index: {}]
  %s2 = inlined_call_operand.vmem [shape: f32[128,128], index: 2, kind: input, shape index: {}]
  %s3 = inlined_call_operand.vmem [shape: f32[128,128], index: 3, kind: input, shape index: {}]
  %s4 = inlined_call_operand.vmem [shape: f32[128,8], index: 4, kind: input, shape index: {}]
  %s5 = inlined_call_operand.vmem [shape: f32[1,8], index: 5, kind: input, shape index: {}]
  %s6 = inlined_call_operand.vmem [shape: f32[256,8], index: 6, kind: output, shape index: {}]
  %s7 = sld [smem:[#allocation0]]
  $region34: #{tpu_custom_call.1} parent=0
    _
  %s9 = ssub.s32 1, %s7
  %s10 = scalar_select 0, %s9, %s7
  // Predicated region
  $region2: #{tpu_custom_call.1} parent=0 // pred_check
    _
  $region3: #{tpu_custom_call.1} parent=0 // pred_check_branch
    %12 = sbr.rel (0) target = $region5
  $region4: #{tpu_custom_call.1} parent=0 // pred_region
    _
  $region5: #{tpu_custom_call.1} parent=0 // pred_fallthru
    _
  // Predicated region
  $region6: #{tpu_custom_call.1} parent=0 // pred_check
    _
  $region7: #{tpu_custom_call.1} parent=0 // pred_check_branch
    %14 = sbr.rel (0) target = $region9
  $region8: #{tpu_custom_call.1} parent=0 // pred_region
    _
  $region9: #{tpu_custom_call.1} parent=0 // pred_fallthru
    _
  // Predicated region
  $region10: #{tpu_custom_call.1} parent=0 // pred_check
    _
  $region11: #{tpu_custom_call.1} parent=0 // pred_check_branch
    %16 = sbr.rel (0) target = $region13
  $region12: #{tpu_custom_call.1} parent=0 // pred_region
    _
  $region13: #{tpu_custom_call.1} parent=0 // pred_fallthru
    _
  // Predicated region
  $region14: #{tpu_custom_call.1} parent=0 // pred_check
    _
  $region15: #{tpu_custom_call.1} parent=0 // pred_check_branch
    %18 = sbr.rel (0) target = $region17
  $region16: #{tpu_custom_call.1} parent=0 // pred_region
    _
  $region17: #{tpu_custom_call.1} parent=0 // pred_fallthru
    _
  // Predicated region
  $region18: #{tpu_custom_call.1} parent=0 // pred_check
    _
  $region19: #{tpu_custom_call.1} parent=0 // pred_check_branch
    %20 = sbr.rel (0) target = $region21
  $region20: #{tpu_custom_call.1} parent=0 // pred_region
    _
  $region21: #{tpu_custom_call.1} parent=0 // pred_fallthru
    _
  // Predicated region
  $region22: #{tpu_custom_call.1} parent=0 // pred_check
    _
  $region23: #{tpu_custom_call.1} parent=0 // pred_check_branch
    %22 = sbr.rel (0) target = $region25
  $region24: #{tpu_custom_call.1} parent=0 // pred_region
    _
  $region25: #{tpu_custom_call.1} parent=0 // pred_fallthru
    _
  %v23 = vld [vmem:[%s0] sm:$0xff]
  %v24 = vld [vmem:[%s0 + $0x8] sm:$0xff]
  %v25 = vld [vmem:[%s0 + $0x10] sm:$0xff]
  %v26 = vld [vmem:[%s0 + $0x18] sm:$0xff]
  %v27 = vld [vmem:[%s0 + $0x20] sm:$0xff]
  %v28 = vld [vmem:[%s0 + $0x28] sm:$0xff]
  %v29 = vld [vmem:[%s0 + $0x30] sm:$0xff]
  %v30 = vld [vmem:[%s0 + $0x38] sm:$0xff]
  %v31 = vld [vmem:[%s0 + $0x40] sm:$0xff]
  %v32 = vld [vmem:[%s0 + $0x48] sm:$0xff]
  %v33 = vld [vmem:[%s0 + $0x50] sm:$0xff]
  %v34 = vld [vmem:[%s0 + $0x58] sm:$0xff]
  %v35 = vld [vmem:[%s0 + $0x60] sm:$0xff]
  %v36 = vld [vmem:[%s0 + $0x68] sm:$0xff]
  %v37 = vld [vmem:[%s0 + $0x70] sm:$0xff]
  %v38 = vld [vmem:[%s0 + $0x78] sm:$0xff]
  %v39 = vld [vmem:[%s0 + $0x80] sm:$0xff]
  %v40 = vld [vmem:[%s0 + $0x88] sm:$0xff]
  %v41 = vld [vmem:[%s0 + $0x90] sm:$0xff]
  %v42 = vld [vmem:[%s0 + $0x98] sm:$0xff]
  %v43 = vld [vmem:[%s0 + $0xa0] sm:$0xff]
  %v44 = vld [vmem:[%s0 + $0xa8] sm:$0xff]
  %v45 = vld [vmem:[%s0 + $0xb0] sm:$0xff]
  %v46 = vld [vmem:[%s0 + $0xb8] sm:$0xff]
  %v47 = vld [vmem:[%s0 + $0xc0] sm:$0xff]
  %v48 = vld [vmem:[%s0 + $0xc8] sm:$0xff]
  %v49 = vld [vmem:[%s0 + $0xd0] sm:$0xff]
  %v50 = vld [vmem:[%s0 + $0xd8] sm:$0xff]
  %v51 = vld [vmem:[%s0 + $0xe0] sm:$0xff]
  %v52 = vld [vmem:[%s0 + $0xe8] sm:$0xff]
  %v53 = vld [vmem:[%s0 + $0xf0] sm:$0xff]
  %v54 = vld [vmem:[%s0 + $0xf8] sm:$0xff]
  %v55 = vld [vmem:[%s1] sm:$0xff]
  %v56 = vld [vmem:[%s1 + $0x8] sm:$0xff]
  %v57 = vld [vmem:[%s1 + $0x10] sm:$0xff]
  %v58 = vld [vmem:[%s1 + $0x18] sm:$0xff]
  %v59 = vld [vmem:[%s1 + $0x20] sm:$0xff]
  %v60 = vld [vmem:[%s1 + $0x28] sm:$0xff]
  %v61 = vld [vmem:[%s1 + $0x30] sm:$0xff]
  %v62 = vld [vmem:[%s1 + $0x38] sm:$0xff]
  %v63 = vld [vmem:[%s1 + $0x40] sm:$0xff]
  %v64 = vld [vmem:[%s1 + $0x48] sm:$0xff]
  %v65 = vld [vmem:[%s1 + $0x50] sm:$0xff]
  %v66 = vld [vmem:[%s1 + $0x58] sm:$0xff]
  %v67 = vld [vmem:[%s1 + $0x60] sm:$0xff]
  %v68 = vld [vmem:[%s1 + $0x68] sm:$0xff]
  %v69 = vld [vmem:[%s1 + $0x70] sm:$0xff]
  %v70 = vld [vmem:[%s1 + $0x78] sm:$0xff]
  %v71 = vld [vmem:[%s1 + $0x80] sm:$0xff]
  %v72 = vld [vmem:[%s1 + $0x88] sm:$0xff]
  %v73 = vld [vmem:[%s1 + $0x90] sm:$0xff]
  %v74 = vld [vmem:[%s1 + $0x98] sm:$0xff]
  %v75 = vld [vmem:[%s1 + $0xa0] sm:$0xff]
  %v76 = vld [vmem:[%s1 + $0xa8] sm:$0xff]
  %v77 = vld [vmem:[%s1 + $0xb0] sm:$0xff]
  %v78 = vld [vmem:[%s1 + $0xb8] sm:$0xff]
  %v79 = vld [vmem:[%s1 + $0xc0] sm:$0xff]
  %v80 = vld [vmem:[%s1 + $0xc8] sm:$0xff]
  %v81 = vld [vmem:[%s1 + $0xd0] sm:$0xff]
  %v82 = vld [vmem:[%s1 + $0xd8] sm:$0xff]
  %v83 = vld [vmem:[%s1 + $0xe0] sm:$0xff]
  %v84 = vld [vmem:[%s1 + $0xe8] sm:$0xff]
  %v85 = vld [vmem:[%s1 + $0xf0] sm:$0xff]
  %v86 = vld [vmem:[%s1 + $0xf8] sm:$0xff]
  %v87 = vlaneseq
  %v88 = vand.u32 %v87, 127
  %89 = vset.pattern.permute.xlu0 0
  %90 = vperm.xlu0 %89, %v23
  %v91 = vpop.permute.xlu0 %90
  %92 = vset.pattern.permute.xlu0 0
  %93 = vperm.xlu0 %92, %v24
  %v94 = vpop.permute.xlu0 %93
  %95 = vset.pattern.permute.xlu0 0
  %96 = vperm.xlu0 %95, %v25
  %v97 = vpop.permute.xlu0 %96
  %98 = vset.pattern.permute.xlu0 0
  %99 = vperm.xlu0 %98, %v26
  %v100 = vpop.permute.xlu0 %99
  %101 = vset.pattern.permute.xlu0 0
  %102 = vperm.xlu0 %101, %v27
  %v103 = vpop.permute.xlu0 %102
  %104 = vset.pattern.permute.xlu0 0
  %105 = vperm.xlu0 %104, %v28
  %v106 = vpop.permute.xlu0 %105
  %107 = vset.pattern.permute.xlu0 0
  %108 = vperm.xlu0 %107, %v29
  %v109 = vpop.permute.xlu0 %108
  %110 = vset.pattern.permute.xlu0 0
  %111 = vperm.xlu0 %110, %v30
  %v112 = vpop.permute.xlu0 %111
  %113 = vset.pattern.permute.xlu0 0
  %114 = vperm.xlu0 %113, %v31
  %v115 = vpop.permute.xlu0 %114
  %116 = vset.pattern.permute.xlu0 0
  %117 = vperm.xlu0 %116, %v32
  %v118 = vpop.permute.xlu0 %117
  %119 = vset.pattern.permute.xlu0 0
  %120 = vperm.xlu0 %119, %v33
  %v121 = vpop.permute.xlu0 %120
  %122 = vset.pattern.permute.xlu0 0
  %123 = vperm.xlu0 %122, %v34
  %v124 = vpop.permute.xlu0 %123
  %125 = vset.pattern.permute.xlu0 0
  %126 = vperm.xlu0 %125, %v35
  %v127 = vpop.permute.xlu0 %126
  %128 = vset.pattern.permute.xlu0 0
  %129 = vperm.xlu0 %128, %v36
  %v130 = vpop.permute.xlu0 %129
  %131 = vset.pattern.permute.xlu0 0
  %132 = vperm.xlu0 %131, %v37
  %v133 = vpop.permute.xlu0 %132
  %134 = vset.pattern.permute.xlu0 0
  %135 = vperm.xlu0 %134, %v38
  %v136 = vpop.permute.xlu0 %135
  %137 = vset.pattern.permute.xlu0 0
  %138 = vperm.xlu0 %137, %v39
  %v139 = vpop.permute.xlu0 %138
  %140 = vset.pattern.permute.xlu0 0
  %141 = vperm.xlu0 %140, %v40
  %v142 = vpop.permute.xlu0 %141
  %143 = vset.pattern.permute.xlu0 0
  %144 = vperm.xlu0 %143, %v41
  %v145 = vpop.permute.xlu0 %144
  %146 = vset.pattern.permute.xlu0 0
  %147 = vperm.xlu0 %146, %v42
  %v148 = vpop.permute.xlu0 %147
  %149 = vset.pattern.permute.xlu0 0
  %150 = vperm.xlu0 %149, %v43
  %v151 = vpop.permute.xlu0 %150
  %152 = vset.pattern.permute.xlu0 0
  %153 = vperm.xlu0 %152, %v44
  %v154 = vpop.permute.xlu0 %153
  %155 = vset.pattern.permute.xlu0 0
  %156 = vperm.xlu0 %155, %v45
  %v157 = vpop.permute.xlu0 %156
  %158 = vset.pattern.permute.xlu0 0
  %159 = vperm.xlu0 %158, %v46
  %v160 = vpop.permute.xlu0 %159
  %161 = vset.pattern.permute.xlu0 0
  %162 = vperm.xlu0 %161, %v47
  %v163 = vpop.permute.xlu0 %162
  %164 = vset.pattern.permute.xlu0 0
  %165 = vperm.xlu0 %164, %v48
  %v166 = vpop.permute.xlu0 %165
  %167 = vset.pattern.permute.xlu0 0
  %168 = vperm.xlu0 %167, %v49
  %v169 = vpop.permute.xlu0 %168
  %170 = vset.pattern.permute.xlu0 0
  %171 = vperm.xlu0 %170, %v50
  %v172 = vpop.permute.xlu0 %171
  %173 = vset.pattern.permute.xlu0 0
  %174 = vperm.xlu0 %173, %v51
  %v175 = vpop.permute.xlu0 %174
  %176 = vset.pattern.permute.xlu0 0
  %177 = vperm.xlu0 %176, %v52
  %v178 = vpop.permute.xlu0 %177
  %179 = vset.pattern.permute.xlu0 0
  %180 = vperm.xlu0 %179, %v53
  %v181 = vpop.permute.xlu0 %180
  %182 = vset.pattern.permute.xlu0 0
  %183 = vperm.xlu0 %182, %v54
  %v184 = vpop.permute.xlu0 %183
  %vm185 = vcmp.eq.s32.totalorder %v88, %v91
  %vm186 = vcmp.eq.s32.totalorder %v88, %v94
  %vm187 = vcmp.eq.s32.totalorder %v88, %v97
  %vm188 = vcmp.eq.s32.totalorder %v88, %v100
  %vm189 = vcmp.eq.s32.totalorder %v88, %v103
  %vm190 = vcmp.eq.s32.totalorder %v88, %v106
  %vm191 = vcmp.eq.s32.totalorder %v88, %v109
  %vm192 = vcmp.eq.s32.totalorder %v88, %v112
  %vm193 = vcmp.eq.s32.totalorder %v88, %v115
  %vm194 = vcmp.eq.s32.totalorder %v88, %v118
  %vm195 = vcmp.eq.s32.totalorder %v88, %v121
  %vm196 = vcmp.eq.s32.totalorder %v88, %v124
  %vm197 = vcmp.eq.s32.totalorder %v88, %v127
  %vm198 = vcmp.eq.s32.totalorder %v88, %v130
  %vm199 = vcmp.eq.s32.totalorder %v88, %v133
  %vm200 = vcmp.eq.s32.totalorder %v88, %v136
  %vm201 = vcmp.eq.s32.totalorder %v88, %v139
  %vm202 = vcmp.eq.s32.totalorder %v88, %v142
  %vm203 = vcmp.eq.s32.totalorder %v88, %v145
  %vm204 = vcmp.eq.s32.totalorder %v88, %v148
  %vm205 = vcmp.eq.s32.totalorder %v88, %v151
  %vm206 = vcmp.eq.s32.totalorder %v88, %v154
  %vm207 = vcmp.eq.s32.totalorder %v88, %v157
  %vm208 = vcmp.eq.s32.totalorder %v88, %v160
  %vm209 = vcmp.eq.s32.totalorder %v88, %v163
  %vm210 = vcmp.eq.s32.totalorder %v88, %v166
  %vm211 = vcmp.eq.s32.totalorder %v88, %v169
  %vm212 = vcmp.eq.s32.totalorder %v88, %v172
  %vm213 = vcmp.eq.s32.totalorder %v88, %v175
  %vm214 = vcmp.eq.s32.totalorder %v88, %v178
  %vm215 = vcmp.eq.s32.totalorder %v88, %v181
  %vm216 = vcmp.eq.s32.totalorder %v88, %v184
  %v217 = vsel %vm185, 1, 0
  %v218 = vsel %vm186, 1, 0
  %v219 = vsel %vm187, 1, 0
  %v220 = vsel %vm188, 1, 0
  %v221 = vsel %vm189, 1, 0
  %v222 = vsel %vm190, 1, 0
  %v223 = vsel %vm191, 1, 0
  %v224 = vsel %vm192, 1, 0
  %v225 = vsel %vm193, 1, 0
  %v226 = vsel %vm194, 1, 0
  %v227 = vsel %vm195, 1, 0
  %v228 = vsel %vm196, 1, 0
  %v229 = vsel %vm197, 1, 0
  %v230 = vsel %vm198, 1, 0
  %v231 = vsel %vm199, 1, 0
  %v232 = vsel %vm200, 1, 0
  %v233 = vsel %vm201, 1, 0
  %v234 = vsel %vm202, 1, 0
  %v235 = vsel %vm203, 1, 0
  %v236 = vsel %vm204, 1, 0
  %v237 = vsel %vm205, 1, 0
  %v238 = vsel %vm206, 1, 0
  %v239 = vsel %vm207, 1, 0
  %v240 = vsel %vm208, 1, 0
  %v241 = vsel %vm209, 1, 0
  %v242 = vsel %vm210, 1, 0
  %v243 = vsel %vm211, 1, 0
  %v244 = vsel %vm212, 1, 0
  %v245 = vsel %vm213, 1, 0
  %v246 = vsel %vm214, 1, 0
  %v247 = vsel %vm215, 1, 0
  %v248 = vsel %vm216, 1, 0
  %v249 = vcvt.s32.f32 %v217
  %v250 = vcvt.s32.f32 %v218
  %v251 = vcvt.s32.f32 %v219
  %v252 = vcvt.s32.f32 %v220
  %v253 = vcvt.s32.f32 %v221
  %v254 = vcvt.s32.f32 %v222
  %v255 = vcvt.s32.f32 %v223
  %v256 = vcvt.s32.f32 %v224
  %v257 = vcvt.s32.f32 %v225
  %v258 = vcvt.s32.f32 %v226
  %v259 = vcvt.s32.f32 %v227
  %v260 = vcvt.s32.f32 %v228
  %v261 = vcvt.s32.f32 %v229
  %v262 = vcvt.s32.f32 %v230
  %v263 = vcvt.s32.f32 %v231
  %v264 = vcvt.s32.f32 %v232
  %v265 = vcvt.s32.f32 %v233
  %v266 = vcvt.s32.f32 %v234
  %v267 = vcvt.s32.f32 %v235
  %v268 = vcvt.s32.f32 %v236
  %v269 = vcvt.s32.f32 %v237
  %v270 = vcvt.s32.f32 %v238
  %v271 = vcvt.s32.f32 %v239
  %v272 = vcvt.s32.f32 %v240
  %v273 = vcvt.s32.f32 %v241
  %v274 = vcvt.s32.f32 %v242
  %v275 = vcvt.s32.f32 %v243
  %v276 = vcvt.s32.f32 %v244
  %v277 = vcvt.s32.f32 %v245
  %v278 = vcvt.s32.f32 %v246
  %v279 = vcvt.s32.f32 %v247
  %v280 = vcvt.s32.f32 %v248
  %281 = vset.pattern.permute.xlu0 0
  %282 = vperm.xlu0 %281, %v55
  %v283 = vpop.permute.xlu0 %282
  %284 = vset.pattern.permute.xlu0 0
  %285 = vperm.xlu0 %284, %v56
  %v286 = vpop.permute.xlu0 %285
  %287 = vset.pattern.permute.xlu0 0
  %288 = vperm.xlu0 %287, %v57
  %v289 = vpop.permute.xlu0 %288
  %290 = vset.pattern.permute.xlu0 0
  %291 = vperm.xlu0 %290, %v58
  %v292 = vpop.permute.xlu0 %291
  %293 = vset.pattern.permute.xlu0 0
  %294 = vperm.xlu0 %293, %v59
  %v295 = vpop.permute.xlu0 %294
  %296 = vset.pattern.permute.xlu0 0
  %297 = vperm.xlu0 %296, %v60
  %v298 = vpop.permute.xlu0 %297
  %299 = vset.pattern.permute.xlu0 0
  %300 = vperm.xlu0 %299, %v61
  %v301 = vpop.permute.xlu0 %300
  %302 = vset.pattern.permute.xlu0 0
  %303 = vperm.xlu0 %302, %v62
  %v304 = vpop.permute.xlu0 %303
  %305 = vset.pattern.permute.xlu0 0
  %306 = vperm.xlu0 %305, %v63
  %v307 = vpop.permute.xlu0 %306
  %308 = vset.pattern.permute.xlu0 0
  %309 = vperm.xlu0 %308, %v64
  %v310 = vpop.permute.xlu0 %309
  %311 = vset.pattern.permute.xlu0 0
  %312 = vperm.xlu0 %311, %v65
  %v313 = vpop.permute.xlu0 %312
  %314 = vset.pattern.permute.xlu0 0
  %315 = vperm.xlu0 %314, %v66
  %v316 = vpop.permute.xlu0 %315
  %317 = vset.pattern.permute.xlu0 0
  %318 = vperm.xlu0 %317, %v67
  %v319 = vpop.permute.xlu0 %318
  %320 = vset.pattern.permute.xlu0 0
  %321 = vperm.xlu0 %320, %v68
  %v322 = vpop.permute.xlu0 %321
  %323 = vset.pattern.permute.xlu0 0
  %324 = vperm.xlu0 %323, %v69
  %v325 = vpop.permute.xlu0 %324
  %326 = vset.pattern.permute.xlu0 0
  %327 = vperm.xlu0 %326, %v70
  %v328 = vpop.permute.xlu0 %327
  %329 = vset.pattern.permute.xlu0 0
  %330 = vperm.xlu0 %329, %v71
  %v331 = vpop.permute.xlu0 %330
  %332 = vset.pattern.permute.xlu0 0
  %333 = vperm.xlu0 %332, %v72
  %v334 = vpop.permute.xlu0 %333
  %335 = vset.pattern.permute.xlu0 0
  %336 = vperm.xlu0 %335, %v73
  %v337 = vpop.permute.xlu0 %336
  %338 = vset.pattern.permute.xlu0 0
  %339 = vperm.xlu0 %338, %v74
  %v340 = vpop.permute.xlu0 %339
  %341 = vset.pattern.permute.xlu0 0
  %342 = vperm.xlu0 %341, %v75
  %v343 = vpop.permute.xlu0 %342
  %344 = vset.pattern.permute.xlu0 0
  %345 = vperm.xlu0 %344, %v76
  %v346 = vpop.permute.xlu0 %345
  %347 = vset.pattern.permute.xlu0 0
  %348 = vperm.xlu0 %347, %v77
  %v349 = vpop.permute.xlu0 %348
  %350 = vset.pattern.permute.xlu0 0
  %351 = vperm.xlu0 %350, %v78
  %v352 = vpop.permute.xlu0 %351
  %353 = vset.pattern.permute.xlu0 0
  %354 = vperm.xlu0 %353, %v79
  %v355 = vpop.permute.xlu0 %354
  %356 = vset.pattern.permute.xlu0 0
  %357 = vperm.xlu0 %356, %v80
  %v358 = vpop.permute.xlu0 %357
  %359 = vset.pattern.permute.xlu0 0
  %360 = vperm.xlu0 %359, %v81
  %v361 = vpop.permute.xlu0 %360
  %362 = vset.pattern.permute.xlu0 0
  %363 = vperm.xlu0 %362, %v82
  %v364 = vpop.permute.xlu0 %363
  %365 = vset.pattern.permute.xlu0 0
  %366 = vperm.xlu0 %365, %v83
  %v367 = vpop.permute.xlu0 %366
  %368 = vset.pattern.permute.xlu0 0
  %369 = vperm.xlu0 %368, %v84
  %v370 = vpop.permute.xlu0 %369
  %371 = vset.pattern.permute.xlu0 0
  %372 = vperm.xlu0 %371, %v85
  %v373 = vpop.permute.xlu0 %372
  %374 = vset.pattern.permute.xlu0 0
  %375 = vperm.xlu0 %374, %v86
  %v376 = vpop.permute.xlu0 %375
  %vm377 = vcmp.eq.s32.totalorder %v88, %v283
  %vm378 = vcmp.eq.s32.totalorder %v88, %v286
  %vm379 = vcmp.eq.s32.totalorder %v88, %v289
  %vm380 = vcmp.eq.s32.totalorder %v88, %v292
  %vm381 = vcmp.eq.s32.totalorder %v88, %v295
  %vm382 = vcmp.eq.s32.totalorder %v88, %v298
  %vm383 = vcmp.eq.s32.totalorder %v88, %v301
  %vm384 = vcmp.eq.s32.totalorder %v88, %v304
  %vm385 = vcmp.eq.s32.totalorder %v88, %v307
  %vm386 = vcmp.eq.s32.totalorder %v88, %v310
  %vm387 = vcmp.eq.s32.totalorder %v88, %v313
  %vm388 = vcmp.eq.s32.totalorder %v88, %v316
  %vm389 = vcmp.eq.s32.totalorder %v88, %v319
  %vm390 = vcmp.eq.s32.totalorder %v88, %v322
  %vm391 = vcmp.eq.s32.totalorder %v88, %v325
  %vm392 = vcmp.eq.s32.totalorder %v88, %v328
  %vm393 = vcmp.eq.s32.totalorder %v88, %v331
  %vm394 = vcmp.eq.s32.totalorder %v88, %v334
  %vm395 = vcmp.eq.s32.totalorder %v88, %v337
  %vm396 = vcmp.eq.s32.totalorder %v88, %v340
  %vm397 = vcmp.eq.s32.totalorder %v88, %v343
  %vm398 = vcmp.eq.s32.totalorder %v88, %v346
  %vm399 = vcmp.eq.s32.totalorder %v88, %v349
  %vm400 = vcmp.eq.s32.totalorder %v88, %v352
  %vm401 = vcmp.eq.s32.totalorder %v88, %v355
  %vm402 = vcmp.eq.s32.totalorder %v88, %v358
  %vm403 = vcmp.eq.s32.totalorder %v88, %v361
  %vm404 = vcmp.eq.s32.totalorder %v88, %v364
  %vm405 = vcmp.eq.s32.totalorder %v88, %v367
  %vm406 = vcmp.eq.s32.totalorder %v88, %v370
  %vm407 = vcmp.eq.s32.totalorder %v88, %v373
  %vm408 = vcmp.eq.s32.totalorder %v88, %v376
  %v409 = vsel %vm377, 1, 0
  %v410 = vsel %vm378, 1, 0
  %v411 = vsel %vm379, 1, 0
  %v412 = vsel %vm380, 1, 0
  %v413 = vsel %vm381, 1, 0
  %v414 = vsel %vm382, 1, 0
  %v415 = vsel %vm383, 1, 0
  %v416 = vsel %vm384, 1, 0
  %v417 = vsel %vm385, 1, 0
  %v418 = vsel %vm386, 1, 0
  %v419 = vsel %vm387, 1, 0
  %v420 = vsel %vm388, 1, 0
  %v421 = vsel %vm389, 1, 0
  %v422 = vsel %vm390, 1, 0
  %v423 = vsel %vm391, 1, 0
  %v424 = vsel %vm392, 1, 0
  %v425 = vsel %vm393, 1, 0
  %v426 = vsel %vm394, 1, 0
  %v427 = vsel %vm395, 1, 0
  %v428 = vsel %vm396, 1, 0
  %v429 = vsel %vm397, 1, 0
  %v430 = vsel %vm398, 1, 0
  %v431 = vsel %vm399, 1, 0
  %v432 = vsel %vm400, 1, 0
  %v433 = vsel %vm401, 1, 0
  %v434 = vsel %vm402, 1, 0
  %v435 = vsel %vm403, 1, 0
  %v436 = vsel %vm404, 1, 0
  %v437 = vsel %vm405, 1, 0
  %v438 = vsel %vm406, 1, 0
  %v439 = vsel %vm407, 1, 0
  %v440 = vsel %vm408, 1, 0
  %v441 = vcvt.s32.f32 %v409
  %v442 = vcvt.s32.f32 %v410
  %v443 = vcvt.s32.f32 %v411
  %v444 = vcvt.s32.f32 %v412
  %v445 = vcvt.s32.f32 %v413
  %v446 = vcvt.s32.f32 %v414
  %v447 = vcvt.s32.f32 %v415
  %v448 = vcvt.s32.f32 %v416
  %v449 = vcvt.s32.f32 %v417
  %v450 = vcvt.s32.f32 %v418
  %v451 = vcvt.s32.f32 %v419
  %v452 = vcvt.s32.f32 %v420
  %v453 = vcvt.s32.f32 %v421
  %v454 = vcvt.s32.f32 %v422
  %v455 = vcvt.s32.f32 %v423
  %v456 = vcvt.s32.f32 %v424
  %v457 = vcvt.s32.f32 %v425
  %v458 = vcvt.s32.f32 %v426
  %v459 = vcvt.s32.f32 %v427
  %v460 = vcvt.s32.f32 %v428
  %v461 = vcvt.s32.f32 %v429
  %v462 = vcvt.s32.f32 %v430
  %v463 = vcvt.s32.f32 %v431
  %v464 = vcvt.s32.f32 %v432
  %v465 = vcvt.s32.f32 %v433
  %v466 = vcvt.s32.f32 %v434
  %v467 = vcvt.s32.f32 %v435
  %v468 = vcvt.s32.f32 %v436
  %v469 = vcvt.s32.f32 %v437
  %v470 = vcvt.s32.f32 %v438
  %v471 = vcvt.s32.f32 %v439
  %v472 = vcvt.s32.f32 %v440
  %v473 = vld [vmem:[%s2] sm:$0xff]
  %v474 = vld [vmem:[%s2 + $0x8] sm:$0xff]
  %v475 = vld [vmem:[%s2 + $0x10] sm:$0xff]
  %v476 = vld [vmem:[%s2 + $0x18] sm:$0xff]
  %v477 = vld [vmem:[%s2 + $0x20] sm:$0xff]
  %v478 = vld [vmem:[%s2 + $0x28] sm:$0xff]
  %v479 = vld [vmem:[%s2 + $0x30] sm:$0xff]
  %v480 = vld [vmem:[%s2 + $0x38] sm:$0xff]
  %v481 = vld [vmem:[%s2 + $0x40] sm:$0xff]
  %v482 = vld [vmem:[%s2 + $0x48] sm:$0xff]
  %v483 = vld [vmem:[%s2 + $0x50] sm:$0xff]
  %v484 = vld [vmem:[%s2 + $0x58] sm:$0xff]
  %v485 = vld [vmem:[%s2 + $0x60] sm:$0xff]
  %v486 = vld [vmem:[%s2 + $0x68] sm:$0xff]
  %v487 = vld [vmem:[%s2 + $0x70] sm:$0xff]
  %v488 = vld [vmem:[%s2 + $0x78] sm:$0xff]
  %v489 = vld [vmem:[%s3] sm:$0xff]
  %v490 = vld [vmem:[%s3 + $0x8] sm:$0xff]
  %v491 = vld [vmem:[%s3 + $0x10] sm:$0xff]
  %v492 = vld [vmem:[%s3 + $0x18] sm:$0xff]
  %v493 = vld [vmem:[%s3 + $0x20] sm:$0xff]
  %v494 = vld [vmem:[%s3 + $0x28] sm:$0xff]
  %v495 = vld [vmem:[%s3 + $0x30] sm:$0xff]
  %v496 = vld [vmem:[%s3 + $0x38] sm:$0xff]
  %v497 = vld [vmem:[%s3 + $0x40] sm:$0xff]
  %v498 = vld [vmem:[%s3 + $0x48] sm:$0xff]
  %v499 = vld [vmem:[%s3 + $0x50] sm:$0xff]
  %v500 = vld [vmem:[%s3 + $0x58] sm:$0xff]
  %v501 = vld [vmem:[%s3 + $0x60] sm:$0xff]
  %v502 = vld [vmem:[%s3 + $0x68] sm:$0xff]
  %v503 = vld [vmem:[%s3 + $0x70] sm:$0xff]
  %v504 = vld [vmem:[%s3 + $0x78] sm:$0xff]
  %v505 = vand.u32 %v504, 4294901760
  %506 = vmatpush.msra.mxu0 %v505
  %v507 = vand.u32 %v503, 4294901760
  %508 = vmatpush.msra.mxu0 %v507
  %v509 = vand.u32 %v502, 4294901760
  %510 = vmatpush.msra.mxu0 %v509
  %v511 = vand.u32 %v501, 4294901760
  %512 = vmatpush.msra.mxu0 %v511
  %v513 = vand.u32 %v500, 4294901760
  %514 = vmatpush.msra.mxu0 %v513
  %v515 = vand.u32 %v499, 4294901760
  %516 = vmatpush.msra.mxu0 %v515
  %v517 = vand.u32 %v498, 4294901760
  %518 = vmatpush.msra.mxu0 %v517
  %v519 = vand.u32 %v497, 4294901760
  %520 = vmatpush.msra.mxu0 %v519
  %v521 = vand.u32 %v496, 4294901760
  %522 = vmatpush.msra.mxu0 %v521
  %v523 = vand.u32 %v495, 4294901760
  %524 = vmatpush.msra.mxu0 %v523
  %v525 = vand.u32 %v494, 4294901760
  %526 = vmatpush.msra.mxu0 %v525
  %v527 = vand.u32 %v493, 4294901760
  %528 = vmatpush.msra.mxu0 %v527
  %v529 = vand.u32 %v492, 4294901760
  %530 = vmatpush.msra.mxu0 %v529
  %v531 = vand.u32 %v491, 4294901760
  %532 = vmatpush.msra.mxu0 %v531
  %v533 = vand.u32 %v490, 4294901760
  %534 = vmatpush.msra.mxu0 %v533
  %v535 = vand.u32 %v489, 4294901760
  %536 = vmatpush.msra.mxu0 %v535
  %v537 = vand.u32 %v441, 4294901760
  %v538 = vsub.f32 %v441, %v537
  %v539 = vand.u32 %v538, 4294901760
  %v540 = vsub.f32 %v538, %v539
  %v541 = vand.u32 %v540, 4294901760
  %542 = vmatmul.f32.gmra.mxu0 %v541
  %v543 = vpop.f32.mrf.mxu0
  %v544 = vadd.f32 0.0, %v543
  %v545 = vand.u32 %v442, 4294901760
  %v546 = vsub.f32 %v442, %v545
  %v547 = vand.u32 %v546, 4294901760
  %v548 = vsub.f32 %v546, %v547
  %v549 = vand.u32 %v548, 4294901760
  %550 = vmatmul.f32.gmra.mxu0 %v549
  %v551 = vpop.f32.mrf.mxu0
  %v552 = vadd.f32 0.0, %v551
  %v553 = vand.u32 %v443, 4294901760
  %v554 = vsub.f32 %v443, %v553
  %v555 = vand.u32 %v554, 4294901760
  %v556 = vsub.f32 %v554, %v555
  %v557 = vand.u32 %v556, 4294901760
  %558 = vmatmul.f32.gmra.mxu0 %v557
  %v559 = vpop.f32.mrf.mxu0
  %v560 = vadd.f32 0.0, %v559
  %v561 = vand.u32 %v444, 4294901760
  %v562 = vsub.f32 %v444, %v561
  %v563 = vand.u32 %v562, 4294901760
  %v564 = vsub.f32 %v562, %v563
  %v565 = vand.u32 %v564, 4294901760
  %566 = vmatmul.f32.gmra.mxu0 %v565
  %v567 = vpop.f32.mrf.mxu0
  %v568 = vadd.f32 0.0, %v567
  %v569 = vand.u32 %v445, 4294901760
  %v570 = vsub.f32 %v445, %v569
  %v571 = vand.u32 %v570, 4294901760
  %v572 = vsub.f32 %v570, %v571
  %v573 = vand.u32 %v572, 4294901760
  %574 = vmatmul.f32.gmra.mxu0 %v573
  %v575 = vpop.f32.mrf.mxu0
  %v576 = vadd.f32 0.0, %v575
  %v577 = vand.u32 %v446, 4294901760
  %v578 = vsub.f32 %v446, %v577
  %v579 = vand.u32 %v578, 4294901760
  %v580 = vsub.f32 %v578, %v579
  %v581 = vand.u32 %v580, 4294901760
  %582 = vmatmul.f32.gmra.mxu0 %v581
  %v583 = vpop.f32.mrf.mxu0
  %v584 = vadd.f32 0.0, %v583
  %v585 = vand.u32 %v447, 4294901760
  %v586 = vsub.f32 %v447, %v585
  %v587 = vand.u32 %v586, 4294901760
  %v588 = vsub.f32 %v586, %v587
  %v589 = vand.u32 %v588, 4294901760
  %590 = vmatmul.f32.gmra.mxu0 %v589
  %v591 = vpop.f32.mrf.mxu0
  %v592 = vadd.f32 0.0, %v591
  %v593 = vand.u32 %v448, 4294901760
  %v594 = vsub.f32 %v448, %v593
  %v595 = vand.u32 %v594, 4294901760
  %v596 = vsub.f32 %v594, %v595
  %v597 = vand.u32 %v596, 4294901760
  %598 = vmatmul.f32.gmra.mxu0 %v597
  %v599 = vpop.f32.mrf.mxu0
  %v600 = vadd.f32 0.0, %v599
  %v601 = vand.u32 %v449, 4294901760
  %v602 = vsub.f32 %v449, %v601
  %v603 = vand.u32 %v602, 4294901760
  %v604 = vsub.f32 %v602, %v603
  %v605 = vand.u32 %v604, 4294901760
  %606 = vmatmul.f32.gmra.mxu0 %v605
  %v607 = vpop.f32.mrf.mxu0
  %v608 = vadd.f32 0.0, %v607
  %v609 = vand.u32 %v450, 4294901760
  %v610 = vsub.f32 %v450, %v609
  %v611 = vand.u32 %v610, 4294901760
  %v612 = vsub.f32 %v610, %v611
  %v613 = vand.u32 %v612, 4294901760
  %614 = vmatmul.f32.gmra.mxu0 %v613
  %v615 = vpop.f32.mrf.mxu0
  %v616 = vadd.f32 0.0, %v615
  %v617 = vand.u32 %v451, 4294901760
  %v618 = vsub.f32 %v451, %v617
  %v619 = vand.u32 %v618, 4294901760
  %v620 = vsub.f32 %v618, %v619
  %v621 = vand.u32 %v620, 4294901760
  %622 = vmatmul.f32.gmra.mxu0 %v621
  %v623 = vpop.f32.mrf.mxu0
  %v624 = vadd.f32 0.0, %v623
  %v625 = vand.u32 %v452, 4294901760
  %v626 = vsub.f32 %v452, %v625
  %v627 = vand.u32 %v626, 4294901760
  %v628 = vsub.f32 %v626, %v627
  %v629 = vand.u32 %v628, 4294901760
  %630 = vmatmul.f32.gmra.mxu0 %v629
  %v631 = vpop.f32.mrf.mxu0
  %v632 = vadd.f32 0.0, %v631
  %v633 = vand.u32 %v453, 4294901760
  %v634 = vsub.f32 %v453, %v633
  %v635 = vand.u32 %v634, 4294901760
  %v636 = vsub.f32 %v634, %v635
  %v637 = vand.u32 %v636, 4294901760
  %638 = vmatmul.f32.gmra.mxu0 %v637
  %v639 = vpop.f32.mrf.mxu0
  %v640 = vadd.f32 0.0, %v639
  %v641 = vand.u32 %v454, 4294901760
  %v642 = vsub.f32 %v454, %v641
  %v643 = vand.u32 %v642, 4294901760
  %v644 = vsub.f32 %v642, %v643
  %v645 = vand.u32 %v644, 4294901760
  %646 = vmatmul.f32.gmra.mxu0 %v645
  %v647 = vpop.f32.mrf.mxu0
  %v648 = vadd.f32 0.0, %v647
  %v649 = vand.u32 %v455, 4294901760
  %v650 = vsub.f32 %v455, %v649
  %v651 = vand.u32 %v650, 4294901760
  %v652 = vsub.f32 %v650, %v651
  %v653 = vand.u32 %v652, 4294901760
  %654 = vmatmul.f32.gmra.mxu0 %v653
  %v655 = vpop.f32.mrf.mxu0
  %v656 = vadd.f32 0.0, %v655
  %v657 = vand.u32 %v456, 4294901760
  %v658 = vsub.f32 %v456, %v657
  %v659 = vand.u32 %v658, 4294901760
  %v660 = vsub.f32 %v658, %v659
  %v661 = vand.u32 %v660, 4294901760
  %662 = vmatmul.f32.gmra.mxu0 %v661
  %v663 = vpop.f32.mrf.mxu0
  %v664 = vadd.f32 0.0, %v663
  %v665 = vand.u32 %v457, 4294901760
  %v666 = vsub.f32 %v457, %v665
  %v667 = vand.u32 %v666, 4294901760
  %v668 = vsub.f32 %v666, %v667
  %v669 = vand.u32 %v668, 4294901760
  %670 = vmatmul.f32.gmra.mxu0 %v669
  %v671 = vpop.f32.mrf.mxu0
  %v672 = vadd.f32 0.0, %v671
  %v673 = vand.u32 %v458, 4294901760
  %v674 = vsub.f32 %v458, %v673
  %v675 = vand.u32 %v674, 4294901760
  %v676 = vsub.f32 %v674, %v675
  %v677 = vand.u32 %v676, 4294901760
  %678 = vmatmul.f32.gmra.mxu0 %v677
  %v679 = vpop.f32.mrf.mxu0
  %v680 = vadd.f32 0.0, %v679
  %v681 = vand.u32 %v459, 4294901760
  %v682 = vsub.f32 %v459, %v681
  %v683 = vand.u32 %v682, 4294901760
  %v684 = vsub.f32 %v682, %v683
  %v685 = vand.u32 %v684, 4294901760
  %686 = vmatmul.f32.gmra.mxu0 %v685
  %v687 = vpop.f32.mrf.mxu0
  %v688 = vadd.f32 0.0, %v687
  %v689 = vand.u32 %v460, 4294901760
  %v690 = vsub.f32 %v460, %v689
  %v691 = vand.u32 %v690, 4294901760
  %v692 = vsub.f32 %v690, %v691
  %v693 = vand.u32 %v692, 4294901760
  %694 = vmatmul.f32.gmra.mxu0 %v693
  %v695 = vpop.f32.mrf.mxu0
  %v696 = vadd.f32 0.0, %v695
  %v697 = vand.u32 %v461, 4294901760
  %v698 = vsub.f32 %v461, %v697
  %v699 = vand.u32 %v698, 4294901760
  %v700 = vsub.f32 %v698, %v699
  %v701 = vand.u32 %v700, 4294901760
  %702 = vmatmul.f32.gmra.mxu0 %v701
  %v703 = vpop.f32.mrf.mxu0
  %v704 = vadd.f32 0.0, %v703
  %v705 = vand.u32 %v462, 4294901760
  %v706 = vsub.f32 %v462, %v705
  %v707 = vand.u32 %v706, 4294901760
  %v708 = vsub.f32 %v706, %v707
  %v709 = vand.u32 %v708, 4294901760
  %710 = vmatmul.f32.gmra.mxu0 %v709
  %v711 = vpop.f32.mrf.mxu0
  %v712 = vadd.f32 0.0, %v711
  %v713 = vand.u32 %v463, 4294901760
  %v714 = vsub.f32 %v463, %v713
  %v715 = vand.u32 %v714, 4294901760
  %v716 = vsub.f32 %v714, %v715
  %v717 = vand.u32 %v716, 4294901760
  %718 = vmatmul.f32.gmra.mxu0 %v717
  %v719 = vpop.f32.mrf.mxu0
  %v720 = vadd.f32 0.0, %v719
  %v721 = vand.u32 %v464, 4294901760
  %v722 = vsub.f32 %v464, %v721
  %v723 = vand.u32 %v722, 4294901760
  %v724 = vsub.f32 %v722, %v723
  %v725 = vand.u32 %v724, 4294901760
  %726 = vmatmul.f32.gmra.mxu0 %v725
  %v727 = vpop.f32.mrf.mxu0
  %v728 = vadd.f32 0.0, %v727
  %v729 = vand.u32 %v465, 4294901760
  %v730 = vsub.f32 %v465, %v729
  %v731 = vand.u32 %v730, 4294901760
  %v732 = vsub.f32 %v730, %v731
  %v733 = vand.u32 %v732, 4294901760
  %734 = vmatmul.f32.gmra.mxu0 %v733
  %v735 = vpop.f32.mrf.mxu0
  %v736 = vadd.f32 0.0, %v735
  %v737 = vand.u32 %v466, 4294901760
  %v738 = vsub.f32 %v466, %v737
  %v739 = vand.u32 %v738, 4294901760
  %v740 = vsub.f32 %v738, %v739
  %v741 = vand.u32 %v740, 4294901760
  %742 = vmatmul.f32.gmra.mxu0 %v741
  %v743 = vpop.f32.mrf.mxu0
  %v744 = vadd.f32 0.0, %v743
  %v745 = vand.u32 %v467, 4294901760
  %v746 = vsub.f32 %v467, %v745
  %v747 = vand.u32 %v746, 4294901760
  %v748 = vsub.f32 %v746, %v747
  %v749 = vand.u32 %v748, 4294901760
  %750 = vmatmul.f32.gmra.mxu0 %v749
  %v751 = vpop.f32.mrf.mxu0
  %v752 = vadd.f32 0.0, %v751
  %v753 = vand.u32 %v468, 4294901760
  %v754 = vsub.f32 %v468, %v753
  %v755 = vand.u32 %v754, 4294901760
  %v756 = vsub.f32 %v754, %v755
  %v757 = vand.u32 %v756, 4294901760
  %758 = vmatmul.f32.gmra.mxu0 %v757
  %v759 = vpop.f32.mrf.mxu0
  %v760 = vadd.f32 0.0, %v759
  %v761 = vand.u32 %v469, 4294901760
  %v762 = vsub.f32 %v469, %v761
  %v763 = vand.u32 %v762, 4294901760
  %v764 = vsub.f32 %v762, %v763
  %v765 = vand.u32 %v764, 4294901760
  %766 = vmatmul.f32.gmra.mxu0 %v765
  %v767 = vpop.f32.mrf.mxu0
  %v768 = vadd.f32 0.0, %v767
  %v769 = vand.u32 %v470, 4294901760
  %v770 = vsub.f32 %v470, %v769
  %v771 = vand.u32 %v770, 4294901760
  %v772 = vsub.f32 %v770, %v771
  %v773 = vand.u32 %v772, 4294901760
  %774 = vmatmul.f32.gmra.mxu0 %v773
  %v775 = vpop.f32.mrf.mxu0
  %v776 = vadd.f32 0.0, %v775
  %v777 = vand.u32 %v471, 4294901760
  %v778 = vsub.f32 %v471, %v777
  %v779 = vand.u32 %v778, 4294901760
  %v780 = vsub.f32 %v778, %v779
  %v781 = vand.u32 %v780, 4294901760
  %782 = vmatmul.f32.gmra.mxu0 %v781
  %v783 = vpop.f32.mrf.mxu0
  %v784 = vadd.f32 0.0, %v783
  %v785 = vand.u32 %v472, 4294901760
  %v786 = vsub.f32 %v472, %v785
  %v787 = vand.u32 %v786, 4294901760
  %v788 = vsub.f32 %v786, %v787
  %v789 = vand.u32 %v788, 4294901760
  %790 = vmatmul.f32.gmra.mxu0 %v789
  %v791 = vpop.f32.mrf.mxu0
  %v792 = vadd.f32 0.0, %v791
  %793 = vdwg.mxu0
  %v794 = vand.u32 %v504, 4294901760
  %v795 = vsub.f32 %v504, %v794
  %v796 = vand.u32 %v795, 4294901760
  %v797 = vsub.f32 %v795, %v796
  %v798 = vand.u32 %v797, 4294901760
  %799 = vmatpush.msra.mxu0 %v798
  %v800 = vand.u32 %v503, 4294901760
  %v801 = vsub.f32 %v503, %v800
  %v802 = vand.u32 %v801, 4294901760
  %v803 = vsub.f32 %v801, %v802
  %v804 = vand.u32 %v803, 4294901760
  %805 = vmatpush.msra.mxu0 %v804
  %v806 = vand.u32 %v502, 4294901760
  %v807 = vsub.f32 %v502, %v806
  %v808 = vand.u32 %v807, 4294901760
  %v809 = vsub.f32 %v807, %v808
  %v810 = vand.u32 %v809, 4294901760
  %811 = vmatpush.msra.mxu0 %v810
  %v812 = vand.u32 %v501, 4294901760
  %v813 = vsub.f32 %v501, %v812
  %v814 = vand.u32 %v813, 4294901760
  %v815 = vsub.f32 %v813, %v814
  %v816 = vand.u32 %v815, 4294901760
  %817 = vmatpush.msra.mxu0 %v816
  %v818 = vand.u32 %v500, 4294901760
  %v819 = vsub.f32 %v500, %v818
  %v820 = vand.u32 %v819, 4294901760
  %v821 = vsub.f32 %v819, %v820
  %v822 = vand.u32 %v821, 4294901760
  %823 = vmatpush.msra.mxu0 %v822
  %v824 = vand.u32 %v499, 4294901760
  %v825 = vsub.f32 %v499, %v824
  %v826 = vand.u32 %v825, 4294901760
  %v827 = vsub.f32 %v825, %v826
  %v828 = vand.u32 %v827, 4294901760
  %829 = vmatpush.msra.mxu0 %v828
  %v830 = vand.u32 %v498, 4294901760
  %v831 = vsub.f32 %v498, %v830
  %v832 = vand.u32 %v831, 4294901760
  %v833 = vsub.f32 %v831, %v832
  %v834 = vand.u32 %v833, 4294901760
  %835 = vmatpush.msra.mxu0 %v834
  %v836 = vand.u32 %v497, 4294901760
  %v837 = vsub.f32 %v497, %v836
  %v838 = vand.u32 %v837, 4294901760
  %v839 = vsub.f32 %v837, %v838
  %v840 = vand.u32 %v839, 4294901760
  %841 = vmatpush.msra.mxu0 %v840
  %v842 = vand.u32 %v496, 4294901760
  %v843 = vsub.f32 %v496, %v842
  %v844 = vand.u32 %v843, 4294901760
  %v845 = vsub.f32 %v843, %v844
  %v846 = vand.u32 %v845, 4294901760
  %847 = vmatpush.msra.mxu0 %v846
  %v848 = vand.u32 %v495, 4294901760
  %v849 = vsub.f32 %v495, %v848
  %v850 = vand.u32 %v849, 4294901760
  %v851 = vsub.f32 %v849, %v850
  %v852 = vand.u32 %v851, 4294901760
  %853 = vmatpush.msra.mxu0 %v852
  %v854 = vand.u32 %v494, 4294901760
  %v855 = vsub.f32 %v494, %v854
  %v856 = vand.u32 %v855, 4294901760
  %v857 = vsub.f32 %v855, %v856
  %v858 = vand.u32 %v857, 4294901760
  %859 = vmatpush.msra.mxu0 %v858
  %v860 = vand.u32 %v493, 4294901760
  %v861 = vsub.f32 %v493, %v860
  %v862 = vand.u32 %v861, 4294901760
  %v863 = vsub.f32 %v861, %v862
  %v864 = vand.u32 %v863, 4294901760
  %865 = vmatpush.msra.mxu0 %v864
  %v866 = vand.u32 %v492, 4294901760
  %v867 = vsub.f32 %v492, %v866
  %v868 = vand.u32 %v867, 4294901760
  %v869 = vsub.f32 %v867, %v868
  %v870 = vand.u32 %v869, 4294901760
  %871 = vmatpush.msra.mxu0 %v870
  %v872 = vand.u32 %v491, 4294901760
  %v873 = vsub.f32 %v491, %v872
  %v874 = vand.u32 %v873, 4294901760
  %v875 = vsub.f32 %v873, %v874
  %v876 = vand.u32 %v875, 4294901760
  %877 = vmatpush.msra.mxu0 %v876
  %v878 = vand.u32 %v490, 4294901760
  %v879 = vsub.f32 %v490, %v878
  %v880 = vand.u32 %v879, 4294901760
  %v881 = vsub.f32 %v879, %v880
  %v882 = vand.u32 %v881, 4294901760
  %883 = vmatpush.msra.mxu0 %v882
  %v884 = vand.u32 %v489, 4294901760
  %v885 = vsub.f32 %v489, %v884
  %v886 = vand.u32 %v885, 4294901760
  %v887 = vsub.f32 %v885, %v886
  %v888 = vand.u32 %v887, 4294901760
  %889 = vmatpush.msra.mxu0 %v888
  %v890 = vand.u32 %v441, 4294901760
  %891 = vmatmul.f32.gmra.mxu0 %v890
  %v892 = vpop.f32.mrf.mxu0
  %v893 = vadd.f32 %v544, %v892
  %v894 = vand.u32 %v442, 4294901760
  %895 = vmatmul.f32.gmra.mxu0 %v894
  %v896 = vpop.f32.mrf.mxu0
  %v897 = vadd.f32 %v552, %v896
  %v898 = vand.u32 %v443, 4294901760
  %899 = vmatmul.f32.gmra.mxu0 %v898
  %v900 = vpop.f32.mrf.mxu0
  %v901 = vadd.f32 %v560, %v900
  %v902 = vand.u32 %v444, 4294901760
  %903 = vmatmul.f32.gmra.mxu0 %v902
  %v904 = vpop.f32.mrf.mxu0
  %v905 = vadd.f32 %v568, %v904
  %v906 = vand.u32 %v445, 4294901760
  %907 = vmatmul.f32.gmra.mxu0 %v906
  %v908 = vpop.f32.mrf.mxu0
  %v909 = vadd.f32 %v576, %v908
  %v910 = vand.u32 %v446, 4294901760
  %911 = vmatmul.f32.gmra.mxu0 %v910
  %v912 = vpop.f32.mrf.mxu0
  %v913 = vadd.f32 %v584, %v912
  %v914 = vand.u32 %v447, 4294901760
  %915 = vmatmul.f32.gmra.mxu0 %v914
  %v916 = vpop.f32.mrf.mxu0
  %v917 = vadd.f32 %v592, %v916
  %v918 = vand.u32 %v448, 4294901760
  %919 = vmatmul.f32.gmra.mxu0 %v918
  %v920 = vpop.f32.mrf.mxu0
  %v921 = vadd.f32 %v600, %v920
  %v922 = vand.u32 %v449, 4294901760
  %923 = vmatmul.f32.gmra.mxu0 %v922
  %v924 = vpop.f32.mrf.mxu0
  %v925 = vadd.f32 %v608, %v924
  %v926 = vand.u32 %v450, 4294901760
  %927 = vmatmul.f32.gmra.mxu0 %v926
  %v928 = vpop.f32.mrf.mxu0
  %v929 = vadd.f32 %v616, %v928
  %v930 = vand.u32 %v451, 4294901760
  %931 = vmatmul.f32.gmra.mxu0 %v930
  %v932 = vpop.f32.mrf.mxu0
  %v933 = vadd.f32 %v624, %v932
  %v934 = vand.u32 %v452, 4294901760
  %935 = vmatmul.f32.gmra.mxu0 %v934
  %v936 = vpop.f32.mrf.mxu0
  %v937 = vadd.f32 %v632, %v936
  %v938 = vand.u32 %v453, 4294901760
  %939 = vmatmul.f32.gmra.mxu0 %v938
  %v940 = vpop.f32.mrf.mxu0
  %v941 = vadd.f32 %v640, %v940
  %v942 = vand.u32 %v454, 4294901760
  %943 = vmatmul.f32.gmra.mxu0 %v942
  %v944 = vpop.f32.mrf.mxu0
  %v945 = vadd.f32 %v648, %v944
  %v946 = vand.u32 %v455, 4294901760
  %947 = vmatmul.f32.gmra.mxu0 %v946
  %v948 = vpop.f32.mrf.mxu0
  %v949 = vadd.f32 %v656, %v948
  %v950 = vand.u32 %v456, 4294901760
  %951 = vmatmul.f32.gmra.mxu0 %v950
  %v952 = vpop.f32.mrf.mxu0
  %v953 = vadd.f32 %v664, %v952
  %v954 = vand.u32 %v457, 4294901760
  %955 = vmatmul.f32.gmra.mxu0 %v954
  %v956 = vpop.f32.mrf.mxu0
  %v957 = vadd.f32 %v672, %v956
  %v958 = vand.u32 %v458, 4294901760
  %959 = vmatmul.f32.gmra.mxu0 %v958
  %v960 = vpop.f32.mrf.mxu0
  %v961 = vadd.f32 %v680, %v960
  %v962 = vand.u32 %v459, 4294901760
  %963 = vmatmul.f32.gmra.mxu0 %v962
  %v964 = vpop.f32.mrf.mxu0
  %v965 = vadd.f32 %v688, %v964
  %v966 = vand.u32 %v460, 4294901760
  %967 = vmatmul.f32.gmra.mxu0 %v966
  %v968 = vpop.f32.mrf.mxu0
  %v969 = vadd.f32 %v696, %v968
  %v970 = vand.u32 %v461, 4294901760
  %971 = vmatmul.f32.gmra.mxu0 %v970
  %v972 = vpop.f32.mrf.mxu0
  %v973 = vadd.f32 %v704, %v972
  %v974 = vand.u32 %v462, 4294901760
  %975 = vmatmul.f32.gmra.mxu0 %v974
  %v976 = vpop.f32.mrf.mxu0
  %v977 = vadd.f32 %v712, %v976
  %v978 = vand.u32 %v463, 4294901760
  %979 = vmatmul.f32.gmra.mxu0 %v978
  %v980 = vpop.f32.mrf.mxu0
  %v981 = vadd.f32 %v720, %v980
  %v982 = vand.u32 %v464, 4294901760
  %983 = vmatmul.f32.gmra.mxu0 %v982
  %v984 = vpop.f32.mrf.mxu0
  %v985 = vadd.f32 %v728, %v984
  %v986 = vand.u32 %v465, 4294901760
  %987 = vmatmul.f32.gmra.mxu0 %v986
  %v988 = vpop.f32.mrf.mxu0
  %v989 = vadd.f32 %v736, %v988
  %v990 = vand.u32 %v466, 4294901760
  %991 = vmatmul.f32.gmra.mxu0 %v990
  %v992 = vpop.f32.mrf.mxu0
  %v993 = vadd.f32 %v744, %v992
  %v994 = vand.u32 %v467, 4294901760
  %995 = vmatmul.f32.gmra.mxu0 %v994
  %v996 = vpop.f32.mrf.mxu0
  %v997 = vadd.f32 %v752, %v996
  %v998 = vand.u32 %v468, 4294901760
  %999 = vmatmul.f32.gmra.mxu0 %v998
  %v1000 = vpop.f32.mrf.mxu0
  %v1001 = vadd.f32 %v760, %v1000
  %v1002 = vand.u32 %v469, 4294901760
  %1003 = vmatmul.f32.gmra.mxu0 %v1002
  %v1004 = vpop.f32.mrf.mxu0
  %v1005 = vadd.f32 %v768, %v1004
  %v1006 = vand.u32 %v470, 4294901760
  %1007 = vmatmul.f32.gmra.mxu0 %v1006
  %v1008 = vpop.f32.mrf.mxu0
  %v1009 = vadd.f32 %v776, %v1008
  %v1010 = vand.u32 %v471, 4294901760
  %1011 = vmatmul.f32.gmra.mxu0 %v1010
  %v1012 = vpop.f32.mrf.mxu0
  %v1013 = vadd.f32 %v784, %v1012
  %v1014 = vand.u32 %v472, 4294901760
  %1015 = vmatmul.f32.gmra.mxu0 %v1014
  %v1016 = vpop.f32.mrf.mxu0
  %v1017 = vadd.f32 %v792, %v1016
  %1018 = vdwg.mxu0
  %v1019 = vand.u32 %v504, 4294901760
  %v1020 = vsub.f32 %v504, %v1019
  %1021 = vmatpush.msra.mxu0 %v1020
  %v1022 = vand.u32 %v503, 4294901760
  %v1023 = vsub.f32 %v503, %v1022
  %1024 = vmatpush.msra.mxu0 %v1023
  %v1025 = vand.u32 %v502, 4294901760
  %v1026 = vsub.f32 %v502, %v1025
  %1027 = vmatpush.msra.mxu0 %v1026
  %v1028 = vand.u32 %v501, 4294901760
  %v1029 = vsub.f32 %v501, %v1028
  %1030 = vmatpush.msra.mxu0 %v1029
  %v1031 = vand.u32 %v500, 4294901760
  %v1032 = vsub.f32 %v500, %v1031
  %1033 = vmatpush.msra.mxu0 %v1032
  %v1034 = vand.u32 %v499, 4294901760
  %v1035 = vsub.f32 %v499, %v1034
  %1036 = vmatpush.msra.mxu0 %v1035
  %v1037 = vand.u32 %v498, 4294901760
  %v1038 = vsub.f32 %v498, %v1037
  %1039 = vmatpush.msra.mxu0 %v1038
  %v1040 = vand.u32 %v497, 4294901760
  %v1041 = vsub.f32 %v497, %v1040
  %1042 = vmatpush.msra.mxu0 %v1041
  %v1043 = vand.u32 %v496, 4294901760
  %v1044 = vsub.f32 %v496, %v1043
  %1045 = vmatpush.msra.mxu0 %v1044
  %v1046 = vand.u32 %v495, 4294901760
  %v1047 = vsub.f32 %v495, %v1046
  %1048 = vmatpush.msra.mxu0 %v1047
  %v1049 = vand.u32 %v494, 4294901760
  %v1050 = vsub.f32 %v494, %v1049
  %1051 = vmatpush.msra.mxu0 %v1050
  %v1052 = vand.u32 %v493, 4294901760
  %v1053 = vsub.f32 %v493, %v1052
  %1054 = vmatpush.msra.mxu0 %v1053
  %v1055 = vand.u32 %v492, 4294901760
  %v1056 = vsub.f32 %v492, %v1055
  %1057 = vmatpush.msra.mxu0 %v1056
  %v1058 = vand.u32 %v491, 4294901760
  %v1059 = vsub.f32 %v491, %v1058
  %1060 = vmatpush.msra.mxu0 %v1059
  %v1061 = vand.u32 %v490, 4294901760
  %v1062 = vsub.f32 %v490, %v1061
  %1063 = vmatpush.msra.mxu0 %v1062
  %v1064 = vand.u32 %v489, 4294901760
  %v1065 = vsub.f32 %v489, %v1064
  %1066 = vmatpush.msra.mxu0 %v1065
  %v1067 = vand.u32 %v441, 4294901760
  %v1068 = vsub.f32 %v441, %v1067
  %1069 = vmatmul.f32.gmra.mxu0 %v1068
  %v1070 = vpop.f32.mrf.mxu0
  %v1071 = vadd.f32 %v893, %v1070
  %v1072 = vand.u32 %v442, 4294901760
  %v1073 = vsub.f32 %v442, %v1072
  %1074 = vmatmul.f32.gmra.mxu0 %v1073
  %v1075 = vpop.f32.mrf.mxu0
  %v1076 = vadd.f32 %v897, %v1075
  %v1077 = vand.u32 %v443, 4294901760
  %v1078 = vsub.f32 %v443, %v1077
  %1079 = vmatmul.f32.gmra.mxu0 %v1078
  %v1080 = vpop.f32.mrf.mxu0
  %v1081 = vadd.f32 %v901, %v1080
  %v1082 = vand.u32 %v444, 4294901760
  %v1083 = vsub.f32 %v444, %v1082
  %1084 = vmatmul.f32.gmra.mxu0 %v1083
  %v1085 = vpop.f32.mrf.mxu0
  %v1086 = vadd.f32 %v905, %v1085
  %v1087 = vand.u32 %v445, 4294901760
  %v1088 = vsub.f32 %v445, %v1087
  %1089 = vmatmul.f32.gmra.mxu0 %v1088
  %v1090 = vpop.f32.mrf.mxu0
  %v1091 = vadd.f32 %v909, %v1090
  %v1092 = vand.u32 %v446, 4294901760
  %v1093 = vsub.f32 %v446, %v1092
  %1094 = vmatmul.f32.gmra.mxu0 %v1093
  %v1095 = vpop.f32.mrf.mxu0
  %v1096 = vadd.f32 %v913, %v1095
  %v1097 = vand.u32 %v447, 4294901760
  %v1098 = vsub.f32 %v447, %v1097
  %1099 = vmatmul.f32.gmra.mxu0 %v1098
  %v1100 = vpop.f32.mrf.mxu0
  %v1101 = vadd.f32 %v917, %v1100
  %v1102 = vand.u32 %v448, 4294901760
  %v1103 = vsub.f32 %v448, %v1102
  %1104 = vmatmul.f32.gmra.mxu0 %v1103
  %v1105 = vpop.f32.mrf.mxu0
  %v1106 = vadd.f32 %v921, %v1105
  %v1107 = vand.u32 %v449, 4294901760
  %v1108 = vsub.f32 %v449, %v1107
  %1109 = vmatmul.f32.gmra.mxu0 %v1108
  %v1110 = vpop.f32.mrf.mxu0
  %v1111 = vadd.f32 %v925, %v1110
  %v1112 = vand.u32 %v450, 4294901760
  %v1113 = vsub.f32 %v450, %v1112
  %1114 = vmatmul.f32.gmra.mxu0 %v1113
  %v1115 = vpop.f32.mrf.mxu0
  %v1116 = vadd.f32 %v929, %v1115
  %v1117 = vand.u32 %v451, 4294901760
  %v1118 = vsub.f32 %v451, %v1117
  %1119 = vmatmul.f32.gmra.mxu0 %v1118
  %v1120 = vpop.f32.mrf.mxu0
  %v1121 = vadd.f32 %v933, %v1120
  %v1122 = vand.u32 %v452, 4294901760
  %v1123 = vsub.f32 %v452, %v1122
  %1124 = vmatmul.f32.gmra.mxu0 %v1123
  %v1125 = vpop.f32.mrf.mxu0
  %v1126 = vadd.f32 %v937, %v1125
  %v1127 = vand.u32 %v453, 4294901760
  %v1128 = vsub.f32 %v453, %v1127
  %1129 = vmatmul.f32.gmra.mxu0 %v1128
  %v1130 = vpop.f32.mrf.mxu0
  %v1131 = vadd.f32 %v941, %v1130
  %v1132 = vand.u32 %v454, 4294901760
  %v1133 = vsub.f32 %v454, %v1132
  %1134 = vmatmul.f32.gmra.mxu0 %v1133
  %v1135 = vpop.f32.mrf.mxu0
  %v1136 = vadd.f32 %v945, %v1135
  %v1137 = vand.u32 %v455, 4294901760
  %v1138 = vsub.f32 %v455, %v1137
  %1139 = vmatmul.f32.gmra.mxu0 %v1138
  %v1140 = vpop.f32.mrf.mxu0
  %v1141 = vadd.f32 %v949, %v1140
  %v1142 = vand.u32 %v456, 4294901760
  %v1143 = vsub.f32 %v456, %v1142
  %1144 = vmatmul.f32.gmra.mxu0 %v1143
  %v1145 = vpop.f32.mrf.mxu0
  %v1146 = vadd.f32 %v953, %v1145
  %v1147 = vand.u32 %v457, 4294901760
  %v1148 = vsub.f32 %v457, %v1147
  %1149 = vmatmul.f32.gmra.mxu0 %v1148
  %v1150 = vpop.f32.mrf.mxu0
  %v1151 = vadd.f32 %v957, %v1150
  %v1152 = vand.u32 %v458, 4294901760
  %v1153 = vsub.f32 %v458, %v1152
  %1154 = vmatmul.f32.gmra.mxu0 %v1153
  %v1155 = vpop.f32.mrf.mxu0
  %v1156 = vadd.f32 %v961, %v1155
  %v1157 = vand.u32 %v459, 4294901760
  %v1158 = vsub.f32 %v459, %v1157
  %1159 = vmatmul.f32.gmra.mxu0 %v1158
  %v1160 = vpop.f32.mrf.mxu0
  %v1161 = vadd.f32 %v965, %v1160
  %v1162 = vand.u32 %v460, 4294901760
  %v1163 = vsub.f32 %v460, %v1162
  %1164 = vmatmul.f32.gmra.mxu0 %v1163
  %v1165 = vpop.f32.mrf.mxu0
  %v1166 = vadd.f32 %v969, %v1165
  %v1167 = vand.u32 %v461, 4294901760
  %v1168 = vsub.f32 %v461, %v1167
  %1169 = vmatmul.f32.gmra.mxu0 %v1168
  %v1170 = vpop.f32.mrf.mxu0
  %v1171 = vadd.f32 %v973, %v1170
  %v1172 = vand.u32 %v462, 4294901760
  %v1173 = vsub.f32 %v462, %v1172
  %1174 = vmatmul.f32.gmra.mxu0 %v1173
  %v1175 = vpop.f32.mrf.mxu0
  %v1176 = vadd.f32 %v977, %v1175
  %v1177 = vand.u32 %v463, 4294901760
  %v1178 = vsub.f32 %v463, %v1177
  %1179 = vmatmul.f32.gmra.mxu0 %v1178
  %v1180 = vpop.f32.mrf.mxu0
  %v1181 = vadd.f32 %v981, %v1180
  %v1182 = vand.u32 %v464, 4294901760
  %v1183 = vsub.f32 %v464, %v1182
  %1184 = vmatmul.f32.gmra.mxu0 %v1183
  %v1185 = vpop.f32.mrf.mxu0
  %v1186 = vadd.f32 %v985, %v1185
  %v1187 = vand.u32 %v465, 4294901760
  %v1188 = vsub.f32 %v465, %v1187
  %1189 = vmatmul.f32.gmra.mxu0 %v1188
  %v1190 = vpop.f32.mrf.mxu0
  %v1191 = vadd.f32 %v989, %v1190
  %v1192 = vand.u32 %v466, 4294901760
  %v1193 = vsub.f32 %v466, %v1192
  %1194 = vmatmul.f32.gmra.mxu0 %v1193
  %v1195 = vpop.f32.mrf.mxu0
  %v1196 = vadd.f32 %v993, %v1195
  %v1197 = vand.u32 %v467, 4294901760
  %v1198 = vsub.f32 %v467, %v1197
  %1199 = vmatmul.f32.gmra.mxu0 %v1198
  %v1200 = vpop.f32.mrf.mxu0
  %v1201 = vadd.f32 %v997, %v1200
  %v1202 = vand.u32 %v468, 4294901760
  %v1203 = vsub.f32 %v468, %v1202
  %1204 = vmatmul.f32.gmra.mxu0 %v1203
  %v1205 = vpop.f32.mrf.mxu0
  %v1206 = vadd.f32 %v1001, %v1205
  %v1207 = vand.u32 %v469, 4294901760
  %v1208 = vsub.f32 %v469, %v1207
  %1209 = vmatmul.f32.gmra.mxu0 %v1208
  %v1210 = vpop.f32.mrf.mxu0
  %v1211 = vadd.f32 %v1005, %v1210
  %v1212 = vand.u32 %v470, 4294901760
  %v1213 = vsub.f32 %v470, %v1212
  %1214 = vmatmul.f32.gmra.mxu0 %v1213
  %v1215 = vpop.f32.mrf.mxu0
  %v1216 = vadd.f32 %v1009, %v1215
  %v1217 = vand.u32 %v471, 4294901760
  %v1218 = vsub.f32 %v471, %v1217
  %1219 = vmatmul.f32.gmra.mxu0 %v1218
  %v1220 = vpop.f32.mrf.mxu0
  %v1221 = vadd.f32 %v1013, %v1220
  %v1222 = vand.u32 %v472, 4294901760
  %v1223 = vsub.f32 %v472, %v1222
  %1224 = vmatmul.f32.gmra.mxu0 %v1223
  %v1225 = vpop.f32.mrf.mxu0
  %v1226 = vadd.f32 %v1017, %v1225
  %1227 = vdwg.mxu0
  %v1228 = vand.u32 %v504, 4294901760
  %1229 = vmatpush.msra.mxu0 %v1228
  %v1230 = vand.u32 %v503, 4294901760
  %1231 = vmatpush.msra.mxu0 %v1230
  %v1232 = vand.u32 %v502, 4294901760
  %1233 = vmatpush.msra.mxu0 %v1232
  %v1234 = vand.u32 %v501, 4294901760
  %1235 = vmatpush.msra.mxu0 %v1234
  %v1236 = vand.u32 %v500, 4294901760
  %1237 = vmatpush.msra.mxu0 %v1236
  %v1238 = vand.u32 %v499, 4294901760
  %1239 = vmatpush.msra.mxu0 %v1238
  %v1240 = vand.u32 %v498, 4294901760
  %1241 = vmatpush.msra.mxu0 %v1240
  %v1242 = vand.u32 %v497, 4294901760
  %1243 = vmatpush.msra.mxu0 %v1242
  %v1244 = vand.u32 %v496, 4294901760
  %1245 = vmatpush.msra.mxu0 %v1244
  %v1246 = vand.u32 %v495, 4294901760
  %1247 = vmatpush.msra.mxu0 %v1246
  %v1248 = vand.u32 %v494, 4294901760
  %1249 = vmatpush.msra.mxu0 %v1248
  %v1250 = vand.u32 %v493, 4294901760
  %1251 = vmatpush.msra.mxu0 %v1250
  %v1252 = vand.u32 %v492, 4294901760
  %1253 = vmatpush.msra.mxu0 %v1252
  %v1254 = vand.u32 %v491, 4294901760
  %1255 = vmatpush.msra.mxu0 %v1254
  %v1256 = vand.u32 %v490, 4294901760
  %1257 = vmatpush.msra.mxu0 %v1256
  %v1258 = vand.u32 %v489, 4294901760
  %1259 = vmatpush.msra.mxu0 %v1258
  %v1260 = vand.u32 %v441, 4294901760
  %v1261 = vsub.f32 %v441, %v1260
  %v1262 = vand.u32 %v1261, 4294901760
  %1263 = vmatmul.f32.gmra.mxu0 %v1262
  %v1264 = vpop.f32.mrf.mxu0
  %v1265 = vadd.f32 %v1071, %v1264
  %v1266 = vand.u32 %v442, 4294901760
  %v1267 = vsub.f32 %v442, %v1266
  %v1268 = vand.u32 %v1267, 4294901760
  %1269 = vmatmul.f32.gmra.mxu0 %v1268
  %v1270 = vpop.f32.mrf.mxu0
  %v1271 = vadd.f32 %v1076, %v1270
  %v1272 = vand.u32 %v443, 4294901760
  %v1273 = vsub.f32 %v443, %v1272
  %v1274 = vand.u32 %v1273, 4294901760
  %1275 = vmatmul.f32.gmra.mxu0 %v1274
  %v1276 = vpop.f32.mrf.mxu0
  %v1277 = vadd.f32 %v1081, %v1276
  %v1278 = vand.u32 %v444, 4294901760
  %v1279 = vsub.f32 %v444, %v1278
  %v1280 = vand.u32 %v1279, 4294901760
  %1281 = vmatmul.f32.gmra.mxu0 %v1280
  %v1282 = vpop.f32.mrf.mxu0
  %v1283 = vadd.f32 %v1086, %v1282
  %v1284 = vand.u32 %v445, 4294901760
  %v1285 = vsub.f32 %v445, %v1284
  %v1286 = vand.u32 %v1285, 4294901760
  %1287 = vmatmul.f32.gmra.mxu0 %v1286
  %v1288 = vpop.f32.mrf.mxu0
  %v1289 = vadd.f32 %v1091, %v1288
  %v1290 = vand.u32 %v446, 4294901760
  %v1291 = vsub.f32 %v446, %v1290
  %v1292 = vand.u32 %v1291, 4294901760
  %1293 = vmatmul.f32.gmra.mxu0 %v1292
  %v1294 = vpop.f32.mrf.mxu0
  %v1295 = vadd.f32 %v1096, %v1294
  %v1296 = vand.u32 %v447, 4294901760
  %v1297 = vsub.f32 %v447, %v1296
  %v1298 = vand.u32 %v1297, 4294901760
  %1299 = vmatmul.f32.gmra.mxu0 %v1298
  %v1300 = vpop.f32.mrf.mxu0
  %v1301 = vadd.f32 %v1101, %v1300
  %v1302 = vand.u32 %v448, 4294901760
  %v1303 = vsub.f32 %v448, %v1302
  %v1304 = vand.u32 %v1303, 4294901760
  %1305 = vmatmul.f32.gmra.mxu0 %v1304
  %v1306 = vpop.f32.mrf.mxu0
  %v1307 = vadd.f32 %v1106, %v1306
  %v1308 = vand.u32 %v449, 4294901760
  %v1309 = vsub.f32 %v449, %v1308
  %v1310 = vand.u32 %v1309, 4294901760
  %1311 = vmatmul.f32.gmra.mxu0 %v1310
  %v1312 = vpop.f32.mrf.mxu0
  %v1313 = vadd.f32 %v1111, %v1312
  %v1314 = vand.u32 %v450, 4294901760
  %v1315 = vsub.f32 %v450, %v1314
  %v1316 = vand.u32 %v1315, 4294901760
  %1317 = vmatmul.f32.gmra.mxu0 %v1316
  %v1318 = vpop.f32.mrf.mxu0
  %v1319 = vadd.f32 %v1116, %v1318
  %v1320 = vand.u32 %v451, 4294901760
  %v1321 = vsub.f32 %v451, %v1320
  %v1322 = vand.u32 %v1321, 4294901760
  %1323 = vmatmul.f32.gmra.mxu0 %v1322
  %v1324 = vpop.f32.mrf.mxu0
  %v1325 = vadd.f32 %v1121, %v1324
  %v1326 = vand.u32 %v452, 4294901760
  %v1327 = vsub.f32 %v452, %v1326
  %v1328 = vand.u32 %v1327, 4294901760
  %1329 = vmatmul.f32.gmra.mxu0 %v1328
  %v1330 = vpop.f32.mrf.mxu0
  %v1331 = vadd.f32 %v1126, %v1330
  %v1332 = vand.u32 %v453, 4294901760
  %v1333 = vsub.f32 %v453, %v1332
  %v1334 = vand.u32 %v1333, 4294901760
  %1335 = vmatmul.f32.gmra.mxu0 %v1334
  %v1336 = vpop.f32.mrf.mxu0
  %v1337 = vadd.f32 %v1131, %v1336
  %v1338 = vand.u32 %v454, 4294901760
  %v1339 = vsub.f32 %v454, %v1338
  %v1340 = vand.u32 %v1339, 4294901760
  %1341 = vmatmul.f32.gmra.mxu0 %v1340
  %v1342 = vpop.f32.mrf.mxu0
  %v1343 = vadd.f32 %v1136, %v1342
  %v1344 = vand.u32 %v455, 4294901760
  %v1345 = vsub.f32 %v455, %v1344
  %v1346 = vand.u32 %v1345, 4294901760
  %1347 = vmatmul.f32.gmra.mxu0 %v1346
  %v1348 = vpop.f32.mrf.mxu0
  %v1349 = vadd.f32 %v1141, %v1348
  %v1350 = vand.u32 %v456, 4294901760
  %v1351 = vsub.f32 %v456, %v1350
  %v1352 = vand.u32 %v1351, 4294901760
  %1353 = vmatmul.f32.gmra.mxu0 %v1352
  %v1354 = vpop.f32.mrf.mxu0
  %v1355 = vadd.f32 %v1146, %v1354
  %v1356 = vand.u32 %v457, 4294901760
  %v1357 = vsub.f32 %v457, %v1356
  %v1358 = vand.u32 %v1357, 4294901760
  %1359 = vmatmul.f32.gmra.mxu0 %v1358
  %v1360 = vpop.f32.mrf.mxu0
  %v1361 = vadd.f32 %v1151, %v1360
  %v1362 = vand.u32 %v458, 4294901760
  %v1363 = vsub.f32 %v458, %v1362
  %v1364 = vand.u32 %v1363, 4294901760
  %1365 = vmatmul.f32.gmra.mxu0 %v1364
  %v1366 = vpop.f32.mrf.mxu0
  %v1367 = vadd.f32 %v1156, %v1366
  %v1368 = vand.u32 %v459, 4294901760
  %v1369 = vsub.f32 %v459, %v1368
  %v1370 = vand.u32 %v1369, 4294901760
  %1371 = vmatmul.f32.gmra.mxu0 %v1370
  %v1372 = vpop.f32.mrf.mxu0
  %v1373 = vadd.f32 %v1161, %v1372
  %v1374 = vand.u32 %v460, 4294901760
  %v1375 = vsub.f32 %v460, %v1374
  %v1376 = vand.u32 %v1375, 4294901760
  %1377 = vmatmul.f32.gmra.mxu0 %v1376
  %v1378 = vpop.f32.mrf.mxu0
  %v1379 = vadd.f32 %v1166, %v1378
  %v1380 = vand.u32 %v461, 4294901760
  %v1381 = vsub.f32 %v461, %v1380
  %v1382 = vand.u32 %v1381, 4294901760
  %1383 = vmatmul.f32.gmra.mxu0 %v1382
  %v1384 = vpop.f32.mrf.mxu0
  %v1385 = vadd.f32 %v1171, %v1384
  %v1386 = vand.u32 %v462, 4294901760
  %v1387 = vsub.f32 %v462, %v1386
  %v1388 = vand.u32 %v1387, 4294901760
  %1389 = vmatmul.f32.gmra.mxu0 %v1388
  %v1390 = vpop.f32.mrf.mxu0
  %v1391 = vadd.f32 %v1176, %v1390
  %v1392 = vand.u32 %v463, 4294901760
  %v1393 = vsub.f32 %v463, %v1392
  %v1394 = vand.u32 %v1393, 4294901760
  %1395 = vmatmul.f32.gmra.mxu0 %v1394
  %v1396 = vpop.f32.mrf.mxu0
  %v1397 = vadd.f32 %v1181, %v1396
  %v1398 = vand.u32 %v464, 4294901760
  %v1399 = vsub.f32 %v464, %v1398
  %v1400 = vand.u32 %v1399, 4294901760
  %1401 = vmatmul.f32.gmra.mxu0 %v1400
  %v1402 = vpop.f32.mrf.mxu0
  %v1403 = vadd.f32 %v1186, %v1402
  %v1404 = vand.u32 %v465, 4294901760
  %v1405 = vsub.f32 %v465, %v1404
  %v1406 = vand.u32 %v1405, 4294901760
  %1407 = vmatmul.f32.gmra.mxu0 %v1406
  %v1408 = vpop.f32.mrf.mxu0
  %v1409 = vadd.f32 %v1191, %v1408
  %v1410 = vand.u32 %v466, 4294901760
  %v1411 = vsub.f32 %v466, %v1410
  %v1412 = vand.u32 %v1411, 4294901760
  %1413 = vmatmul.f32.gmra.mxu0 %v1412
  %v1414 = vpop.f32.mrf.mxu0
  %v1415 = vadd.f32 %v1196, %v1414
  %v1416 = vand.u32 %v467, 4294901760
  %v1417 = vsub.f32 %v467, %v1416
  %v1418 = vand.u32 %v1417, 4294901760
  %1419 = vmatmul.f32.gmra.mxu0 %v1418
  %v1420 = vpop.f32.mrf.mxu0
  %v1421 = vadd.f32 %v1201, %v1420
  %v1422 = vand.u32 %v468, 4294901760
  %v1423 = vsub.f32 %v468, %v1422
  %v1424 = vand.u32 %v1423, 4294901760
  %1425 = vmatmul.f32.gmra.mxu0 %v1424
  %v1426 = vpop.f32.mrf.mxu0
  %v1427 = vadd.f32 %v1206, %v1426
  %v1428 = vand.u32 %v469, 4294901760
  %v1429 = vsub.f32 %v469, %v1428
  %v1430 = vand.u32 %v1429, 4294901760
  %1431 = vmatmul.f32.gmra.mxu0 %v1430
  %v1432 = vpop.f32.mrf.mxu0
  %v1433 = vadd.f32 %v1211, %v1432
  %v1434 = vand.u32 %v470, 4294901760
  %v1435 = vsub.f32 %v470, %v1434
  %v1436 = vand.u32 %v1435, 4294901760
  %1437 = vmatmul.f32.gmra.mxu0 %v1436
  %v1438 = vpop.f32.mrf.mxu0
  %v1439 = vadd.f32 %v1216, %v1438
  %v1440 = vand.u32 %v471, 4294901760
  %v1441 = vsub.f32 %v471, %v1440
  %v1442 = vand.u32 %v1441, 4294901760
  %1443 = vmatmul.f32.gmra.mxu0 %v1442
  %v1444 = vpop.f32.mrf.mxu0
  %v1445 = vadd.f32 %v1221, %v1444
  %v1446 = vand.u32 %v472, 4294901760
  %v1447 = vsub.f32 %v472, %v1446
  %v1448 = vand.u32 %v1447, 4294901760
  %1449 = vmatmul.f32.gmra.mxu0 %v1448
  %v1450 = vpop.f32.mrf.mxu0
  %v1451 = vadd.f32 %v1226, %v1450
  %1452 = vdwg.mxu0
  %v1453 = vand.u32 %v504, 4294901760
  %v1454 = vsub.f32 %v504, %v1453
  %v1455 = vand.u32 %v1454, 4294901760
  %1456 = vmatpush.msra.mxu0 %v1455
  %v1457 = vand.u32 %v503, 4294901760
  %v1458 = vsub.f32 %v503, %v1457
  %v1459 = vand.u32 %v1458, 4294901760
  %1460 = vmatpush.msra.mxu0 %v1459
  %v1461 = vand.u32 %v502, 4294901760
  %v1462 = vsub.f32 %v502, %v1461
  %v1463 = vand.u32 %v1462, 4294901760
  %1464 = vmatpush.msra.mxu0 %v1463
  %v1465 = vand.u32 %v501, 4294901760
  %v1466 = vsub.f32 %v501, %v1465
  %v1467 = vand.u32 %v1466, 4294901760
  %1468 = vmatpush.msra.mxu0 %v1467
  %v1469 = vand.u32 %v500, 4294901760
  %v1470 = vsub.f32 %v500, %v1469
  %v1471 = vand.u32 %v1470, 4294901760
  %1472 = vmatpush.msra.mxu0 %v1471
  %v1473 = vand.u32 %v499, 4294901760
  %v1474 = vsub.f32 %v499, %v1473
  %v1475 = vand.u32 %v1474, 4294901760
  %1476 = vmatpush.msra.mxu0 %v1475
  %v1477 = vand.u32 %v498, 4294901760
  %v1478 = vsub.f32 %v498, %v1477
  %v1479 = vand.u32 %v1478, 4294901760
  %1480 = vmatpush.msra.mxu0 %v1479
  %v1481 = vand.u32 %v497, 4294901760
  %v1482 = vsub.f32 %v497, %v1481
  %v1483 = vand.u32 %v1482, 4294901760
  %1484 = vmatpush.msra.mxu0 %v1483
  %v1485 = vand.u32 %v496, 4294901760
  %v1486 = vsub.f32 %v496, %v1485
  %v1487 = vand.u32 %v1486, 4294901760
  %1488 = vmatpush.msra.mxu0 %v1487
  %v1489 = vand.u32 %v495, 4294901760
  %v1490 = vsub.f32 %v495, %v1489
  %v1491 = vand.u32 %v1490, 4294901760
  %1492 = vmatpush.msra.mxu0 %v1491
  %v1493 = vand.u32 %v494, 4294901760
  %v1494 = vsub.f32 %v494, %v1493
  %v1495 = vand.u32 %v1494, 4294901760
  %1496 = vmatpush.msra.mxu0 %v1495
  %v1497 = vand.u32 %v493, 4294901760
  %v1498 = vsub.f32 %v493, %v1497
  %v1499 = vand.u32 %v1498, 4294901760
  %1500 = vmatpush.msra.mxu0 %v1499
  %v1501 = vand.u32 %v492, 4294901760
  %v1502 = vsub.f32 %v492, %v1501
  %v1503 = vand.u32 %v1502, 4294901760
  %1504 = vmatpush.msra.mxu0 %v1503
  %v1505 = vand.u32 %v491, 4294901760
  %v1506 = vsub.f32 %v491, %v1505
  %v1507 = vand.u32 %v1506, 4294901760
  %1508 = vmatpush.msra.mxu0 %v1507
  %v1509 = vand.u32 %v490, 4294901760
  %v1510 = vsub.f32 %v490, %v1509
  %v1511 = vand.u32 %v1510, 4294901760
  %1512 = vmatpush.msra.mxu0 %v1511
  %v1513 = vand.u32 %v489, 4294901760
  %v1514 = vsub.f32 %v489, %v1513
  %v1515 = vand.u32 %v1514, 4294901760
  %1516 = vmatpush.msra.mxu0 %v1515
  %v1517 = vand.u32 %v441, 4294901760
  %1518 = vmatmul.f32.gmra.mxu0 %v1517
  %v1519 = vpop.f32.mrf.mxu0
  %v1520 = vadd.f32 %v1265, %v1519
  %v1521 = vand.u32 %v442, 4294901760
  %1522 = vmatmul.f32.gmra.mxu0 %v1521
  %v1523 = vpop.f32.mrf.mxu0
  %v1524 = vadd.f32 %v1271, %v1523
  %v1525 = vand.u32 %v443, 4294901760
  %1526 = vmatmul.f32.gmra.mxu0 %v1525
  %v1527 = vpop.f32.mrf.mxu0
  %v1528 = vadd.f32 %v1277, %v1527
  %v1529 = vand.u32 %v444, 4294901760
  %1530 = vmatmul.f32.gmra.mxu0 %v1529
  %v1531 = vpop.f32.mrf.mxu0
  %v1532 = vadd.f32 %v1283, %v1531
  %v1533 = vand.u32 %v445, 4294901760
  %1534 = vmatmul.f32.gmra.mxu0 %v1533
  %v1535 = vpop.f32.mrf.mxu0
  %v1536 = vadd.f32 %v1289, %v1535
  %v1537 = vand.u32 %v446, 4294901760
  %1538 = vmatmul.f32.gmra.mxu0 %v1537
  %v1539 = vpop.f32.mrf.mxu0
  %v1540 = vadd.f32 %v1295, %v1539
  %v1541 = vand.u32 %v447, 4294901760
  %1542 = vmatmul.f32.gmra.mxu0 %v1541
  %v1543 = vpop.f32.mrf.mxu0
  %v1544 = vadd.f32 %v1301, %v1543
  %v1545 = vand.u32 %v448, 4294901760
  %1546 = vmatmul.f32.gmra.mxu0 %v1545
  %v1547 = vpop.f32.mrf.mxu0
  %v1548 = vadd.f32 %v1307, %v1547
  %v1549 = vand.u32 %v449, 4294901760
  %1550 = vmatmul.f32.gmra.mxu0 %v1549
  %v1551 = vpop.f32.mrf.mxu0
  %v1552 = vadd.f32 %v1313, %v1551
  %v1553 = vand.u32 %v450, 4294901760
  %1554 = vmatmul.f32.gmra.mxu0 %v1553
  %v1555 = vpop.f32.mrf.mxu0
  %v1556 = vadd.f32 %v1319, %v1555
  %v1557 = vand.u32 %v451, 4294901760
  %1558 = vmatmul.f32.gmra.mxu0 %v1557
  %v1559 = vpop.f32.mrf.mxu0
  %v1560 = vadd.f32 %v1325, %v1559
  %v1561 = vand.u32 %v452, 4294901760
  %1562 = vmatmul.f32.gmra.mxu0 %v1561
  %v1563 = vpop.f32.mrf.mxu0
  %v1564 = vadd.f32 %v1331, %v1563
  %v1565 = vand.u32 %v453, 4294901760
  %1566 = vmatmul.f32.gmra.mxu0 %v1565
  %v1567 = vpop.f32.mrf.mxu0
  %v1568 = vadd.f32 %v1337, %v1567
  %v1569 = vand.u32 %v454, 4294901760
  %1570 = vmatmul.f32.gmra.mxu0 %v1569
  %v1571 = vpop.f32.mrf.mxu0
  %v1572 = vadd.f32 %v1343, %v1571
  %v1573 = vand.u32 %v455, 4294901760
  %1574 = vmatmul.f32.gmra.mxu0 %v1573
  %v1575 = vpop.f32.mrf.mxu0
  %v1576 = vadd.f32 %v1349, %v1575
  %v1577 = vand.u32 %v456, 4294901760
  %1578 = vmatmul.f32.gmra.mxu0 %v1577
  %v1579 = vpop.f32.mrf.mxu0
  %v1580 = vadd.f32 %v1355, %v1579
  %v1581 = vand.u32 %v457, 4294901760
  %1582 = vmatmul.f32.gmra.mxu0 %v1581
  %v1583 = vpop.f32.mrf.mxu0
  %v1584 = vadd.f32 %v1361, %v1583
  %v1585 = vand.u32 %v458, 4294901760
  %1586 = vmatmul.f32.gmra.mxu0 %v1585
  %v1587 = vpop.f32.mrf.mxu0
  %v1588 = vadd.f32 %v1367, %v1587
  %v1589 = vand.u32 %v459, 4294901760
  %1590 = vmatmul.f32.gmra.mxu0 %v1589
  %v1591 = vpop.f32.mrf.mxu0
  %v1592 = vadd.f32 %v1373, %v1591
  %v1593 = vand.u32 %v460, 4294901760
  %1594 = vmatmul.f32.gmra.mxu0 %v1593
  %v1595 = vpop.f32.mrf.mxu0
  %v1596 = vadd.f32 %v1379, %v1595
  %v1597 = vand.u32 %v461, 4294901760
  %1598 = vmatmul.f32.gmra.mxu0 %v1597
  %v1599 = vpop.f32.mrf.mxu0
  %v1600 = vadd.f32 %v1385, %v1599
  %v1601 = vand.u32 %v462, 4294901760
  %1602 = vmatmul.f32.gmra.mxu0 %v1601
  %v1603 = vpop.f32.mrf.mxu0
  %v1604 = vadd.f32 %v1391, %v1603
  %v1605 = vand.u32 %v463, 4294901760
  %1606 = vmatmul.f32.gmra.mxu0 %v1605
  %v1607 = vpop.f32.mrf.mxu0
  %v1608 = vadd.f32 %v1397, %v1607
  %v1609 = vand.u32 %v464, 4294901760
  %1610 = vmatmul.f32.gmra.mxu0 %v1609
  %v1611 = vpop.f32.mrf.mxu0
  %v1612 = vadd.f32 %v1403, %v1611
  %v1613 = vand.u32 %v465, 4294901760
  %1614 = vmatmul.f32.gmra.mxu0 %v1613
  %v1615 = vpop.f32.mrf.mxu0
  %v1616 = vadd.f32 %v1409, %v1615
  %v1617 = vand.u32 %v466, 4294901760
  %1618 = vmatmul.f32.gmra.mxu0 %v1617
  %v1619 = vpop.f32.mrf.mxu0
  %v1620 = vadd.f32 %v1415, %v1619
  %v1621 = vand.u32 %v467, 4294901760
  %1622 = vmatmul.f32.gmra.mxu0 %v1621
  %v1623 = vpop.f32.mrf.mxu0
  %v1624 = vadd.f32 %v1421, %v1623
  %v1625 = vand.u32 %v468, 4294901760
  %1626 = vmatmul.f32.gmra.mxu0 %v1625
  %v1627 = vpop.f32.mrf.mxu0
  %v1628 = vadd.f32 %v1427, %v1627
  %v1629 = vand.u32 %v469, 4294901760
  %1630 = vmatmul.f32.gmra.mxu0 %v1629
  %v1631 = vpop.f32.mrf.mxu0
  %v1632 = vadd.f32 %v1433, %v1631
  %v1633 = vand.u32 %v470, 4294901760
  %1634 = vmatmul.f32.gmra.mxu0 %v1633
  %v1635 = vpop.f32.mrf.mxu0
  %v1636 = vadd.f32 %v1439, %v1635
  %v1637 = vand.u32 %v471, 4294901760
  %1638 = vmatmul.f32.gmra.mxu0 %v1637
  %v1639 = vpop.f32.mrf.mxu0
  %v1640 = vadd.f32 %v1445, %v1639
  %v1641 = vand.u32 %v472, 4294901760
  %1642 = vmatmul.f32.gmra.mxu0 %v1641
  %v1643 = vpop.f32.mrf.mxu0
  %v1644 = vadd.f32 %v1451, %v1643
  %1645 = vdwg.mxu0
  %v1646 = vand.u32 %v504, 4294901760
  %1647 = vmatpush.msra.mxu0 %v1646
  %v1648 = vand.u32 %v503, 4294901760
  %1649 = vmatpush.msra.mxu0 %v1648
  %v1650 = vand.u32 %v502, 4294901760
  %1651 = vmatpush.msra.mxu0 %v1650
  %v1652 = vand.u32 %v501, 4294901760
  %1653 = vmatpush.msra.mxu0 %v1652
  %v1654 = vand.u32 %v500, 4294901760
  %1655 = vmatpush.msra.mxu0 %v1654
  %v1656 = vand.u32 %v499, 4294901760
  %1657 = vmatpush.msra.mxu0 %v1656
  %v1658 = vand.u32 %v498, 4294901760
  %1659 = vmatpush.msra.mxu0 %v1658
  %v1660 = vand.u32 %v497, 4294901760
  %1661 = vmatpush.msra.mxu0 %v1660
  %v1662 = vand.u32 %v496, 4294901760
  %1663 = vmatpush.msra.mxu0 %v1662
  %v1664 = vand.u32 %v495, 4294901760
  %1665 = vmatpush.msra.mxu0 %v1664
  %v1666 = vand.u32 %v494, 4294901760
  %1667 = vmatpush.msra.mxu0 %v1666
  %v1668 = vand.u32 %v493, 4294901760
  %1669 = vmatpush.msra.mxu0 %v1668
  %v1670 = vand.u32 %v492, 4294901760
  %1671 = vmatpush.msra.mxu0 %v1670
  %v1672 = vand.u32 %v491, 4294901760
  %1673 = vmatpush.msra.mxu0 %v1672
  %v1674 = vand.u32 %v490, 4294901760
  %1675 = vmatpush.msra.mxu0 %v1674
  %v1676 = vand.u32 %v489, 4294901760
  %1677 = vmatpush.msra.mxu0 %v1676
  %v1678 = vand.u32 %v441, 4294901760
  %1679 = vmatmul.f32.gmra.mxu0 %v1678
  %v1680 = vpop.f32.mrf.mxu0
  %v1681 = vadd.f32 %v1520, %v1680
  %v1682 = vand.u32 %v442, 4294901760
  %1683 = vmatmul.f32.gmra.mxu0 %v1682
  %v1684 = vpop.f32.mrf.mxu0
  %v1685 = vadd.f32 %v1524, %v1684
  %v1686 = vand.u32 %v443, 4294901760
  %1687 = vmatmul.f32.gmra.mxu0 %v1686
  %v1688 = vpop.f32.mrf.mxu0
  %v1689 = vadd.f32 %v1528, %v1688
  %v1690 = vand.u32 %v444, 4294901760
  %1691 = vmatmul.f32.gmra.mxu0 %v1690
  %v1692 = vpop.f32.mrf.mxu0
  %v1693 = vadd.f32 %v1532, %v1692
  %v1694 = vand.u32 %v445, 4294901760
  %1695 = vmatmul.f32.gmra.mxu0 %v1694
  %v1696 = vpop.f32.mrf.mxu0
  %v1697 = vadd.f32 %v1536, %v1696
  %v1698 = vand.u32 %v446, 4294901760
  %1699 = vmatmul.f32.gmra.mxu0 %v1698
  %v1700 = vpop.f32.mrf.mxu0
  %v1701 = vadd.f32 %v1540, %v1700
  %v1702 = vand.u32 %v447, 4294901760
  %1703 = vmatmul.f32.gmra.mxu0 %v1702
  %v1704 = vpop.f32.mrf.mxu0
  %v1705 = vadd.f32 %v1544, %v1704
  %v1706 = vand.u32 %v448, 4294901760
  %1707 = vmatmul.f32.gmra.mxu0 %v1706
  %v1708 = vpop.f32.mrf.mxu0
  %v1709 = vadd.f32 %v1548, %v1708
  %v1710 = vand.u32 %v449, 4294901760
  %1711 = vmatmul.f32.gmra.mxu0 %v1710
  %v1712 = vpop.f32.mrf.mxu0
  %v1713 = vadd.f32 %v1552, %v1712
  %v1714 = vand.u32 %v450, 4294901760
  %1715 = vmatmul.f32.gmra.mxu0 %v1714
  %v1716 = vpop.f32.mrf.mxu0
  %v1717 = vadd.f32 %v1556, %v1716
  %v1718 = vand.u32 %v451, 4294901760
  %1719 = vmatmul.f32.gmra.mxu0 %v1718
  %v1720 = vpop.f32.mrf.mxu0
  %v1721 = vadd.f32 %v1560, %v1720
  %v1722 = vand.u32 %v452, 4294901760
  %1723 = vmatmul.f32.gmra.mxu0 %v1722
  %v1724 = vpop.f32.mrf.mxu0
  %v1725 = vadd.f32 %v1564, %v1724
  %v1726 = vand.u32 %v453, 4294901760
  %1727 = vmatmul.f32.gmra.mxu0 %v1726
  %v1728 = vpop.f32.mrf.mxu0
  %v1729 = vadd.f32 %v1568, %v1728
  %v1730 = vand.u32 %v454, 4294901760
  %1731 = vmatmul.f32.gmra.mxu0 %v1730
  %v1732 = vpop.f32.mrf.mxu0
  %v1733 = vadd.f32 %v1572, %v1732
  %v1734 = vand.u32 %v455, 4294901760
  %1735 = vmatmul.f32.gmra.mxu0 %v1734
  %v1736 = vpop.f32.mrf.mxu0
  %v1737 = vadd.f32 %v1576, %v1736
  %v1738 = vand.u32 %v456, 4294901760
  %1739 = vmatmul.f32.gmra.mxu0 %v1738
  %v1740 = vpop.f32.mrf.mxu0
  %v1741 = vadd.f32 %v1580, %v1740
  %v1742 = vand.u32 %v457, 4294901760
  %1743 = vmatmul.f32.gmra.mxu0 %v1742
  %v1744 = vpop.f32.mrf.mxu0
  %v1745 = vadd.f32 %v1584, %v1744
  %v1746 = vand.u32 %v458, 4294901760
  %1747 = vmatmul.f32.gmra.mxu0 %v1746
  %v1748 = vpop.f32.mrf.mxu0
  %v1749 = vadd.f32 %v1588, %v1748
  %v1750 = vand.u32 %v459, 4294901760
  %1751 = vmatmul.f32.gmra.mxu0 %v1750
  %v1752 = vpop.f32.mrf.mxu0
  %v1753 = vadd.f32 %v1592, %v1752
  %v1754 = vand.u32 %v460, 4294901760
  %1755 = vmatmul.f32.gmra.mxu0 %v1754
  %v1756 = vpop.f32.mrf.mxu0
  %v1757 = vadd.f32 %v1596, %v1756
  %v1758 = vand.u32 %v461, 4294901760
  %1759 = vmatmul.f32.gmra.mxu0 %v1758
  %v1760 = vpop.f32.mrf.mxu0
  %v1761 = vadd.f32 %v1600, %v1760
  %v1762 = vand.u32 %v462, 4294901760
  %1763 = vmatmul.f32.gmra.mxu0 %v1762
  %v1764 = vpop.f32.mrf.mxu0
  %v1765 = vadd.f32 %v1604, %v1764
  %v1766 = vand.u32 %v463, 4294901760
  %1767 = vmatmul.f32.gmra.mxu0 %v1766
  %v1768 = vpop.f32.mrf.mxu0
  %v1769 = vadd.f32 %v1608, %v1768
  %v1770 = vand.u32 %v464, 4294901760
  %1771 = vmatmul.f32.gmra.mxu0 %v1770
  %v1772 = vpop.f32.mrf.mxu0
  %v1773 = vadd.f32 %v1612, %v1772
  %v1774 = vand.u32 %v465, 4294901760
  %1775 = vmatmul.f32.gmra.mxu0 %v1774
  %v1776 = vpop.f32.mrf.mxu0
  %v1777 = vadd.f32 %v1616, %v1776
  %v1778 = vand.u32 %v466, 4294901760
  %1779 = vmatmul.f32.gmra.mxu0 %v1778
  %v1780 = vpop.f32.mrf.mxu0
  %v1781 = vadd.f32 %v1620, %v1780
  %v1782 = vand.u32 %v467, 4294901760
  %1783 = vmatmul.f32.gmra.mxu0 %v1782
  %v1784 = vpop.f32.mrf.mxu0
  %v1785 = vadd.f32 %v1624, %v1784
  %v1786 = vand.u32 %v468, 4294901760
  %1787 = vmatmul.f32.gmra.mxu0 %v1786
  %v1788 = vpop.f32.mrf.mxu0
  %v1789 = vadd.f32 %v1628, %v1788
  %v1790 = vand.u32 %v469, 4294901760
  %1791 = vmatmul.f32.gmra.mxu0 %v1790
  %v1792 = vpop.f32.mrf.mxu0
  %v1793 = vadd.f32 %v1632, %v1792
  %v1794 = vand.u32 %v470, 4294901760
  %1795 = vmatmul.f32.gmra.mxu0 %v1794
  %v1796 = vpop.f32.mrf.mxu0
  %v1797 = vadd.f32 %v1636, %v1796
  %v1798 = vand.u32 %v471, 4294901760
  %1799 = vmatmul.f32.gmra.mxu0 %v1798
  %v1800 = vpop.f32.mrf.mxu0
  %v1801 = vadd.f32 %v1640, %v1800
  %v1802 = vand.u32 %v472, 4294901760
  %1803 = vmatmul.f32.gmra.mxu0 %v1802
  %v1804 = vpop.f32.mrf.mxu0
  %v1805 = vadd.f32 %v1644, %v1804
  %1806 = vdwg.mxu0
  %v1807 = vand.u32 %v488, 4294901760
  %1808 = vmatpush.msra.mxu0 %v1807
  %v1809 = vand.u32 %v487, 4294901760
  %1810 = vmatpush.msra.mxu0 %v1809
  %v1811 = vand.u32 %v486, 4294901760
  %1812 = vmatpush.msra.mxu0 %v1811
  %v1813 = vand.u32 %v485, 4294901760
  %1814 = vmatpush.msra.mxu0 %v1813
  %v1815 = vand.u32 %v484, 4294901760
  %1816 = vmatpush.msra.mxu0 %v1815
  %v1817 = vand.u32 %v483, 4294901760
  %1818 = vmatpush.msra.mxu0 %v1817
  %v1819 = vand.u32 %v482, 4294901760
  %1820 = vmatpush.msra.mxu0 %v1819
  %v1821 = vand.u32 %v481, 4294901760
  %1822 = vmatpush.msra.mxu0 %v1821
  %v1823 = vand.u32 %v480, 4294901760
  %1824 = vmatpush.msra.mxu0 %v1823
  %v1825 = vand.u32 %v479, 4294901760
  %1826 = vmatpush.msra.mxu0 %v1825
  %v1827 = vand.u32 %v478, 4294901760
  %1828 = vmatpush.msra.mxu0 %v1827
  %v1829 = vand.u32 %v477, 4294901760
  %1830 = vmatpush.msra.mxu0 %v1829
  %v1831 = vand.u32 %v476, 4294901760
  %1832 = vmatpush.msra.mxu0 %v1831
  %v1833 = vand.u32 %v475, 4294901760
  %1834 = vmatpush.msra.mxu0 %v1833
  %v1835 = vand.u32 %v474, 4294901760
  %1836 = vmatpush.msra.mxu0 %v1835
  %v1837 = vand.u32 %v473, 4294901760
  %1838 = vmatpush.msra.mxu0 %v1837
  %v1839 = vand.u32 %v249, 4294901760
  %v1840 = vsub.f32 %v249, %v1839
  %v1841 = vand.u32 %v1840, 4294901760
  %v1842 = vsub.f32 %v1840, %v1841
  %v1843 = vand.u32 %v1842, 4294901760
  %1844 = vmatmul.f32.gmra.mxu0 %v1843
  %v1845 = vpop.f32.mrf.mxu0
  %v1846 = vadd.f32 %v1681, %v1845
  %v1847 = vand.u32 %v250, 4294901760
  %v1848 = vsub.f32 %v250, %v1847
  %v1849 = vand.u32 %v1848, 4294901760
  %v1850 = vsub.f32 %v1848, %v1849
  %v1851 = vand.u32 %v1850, 4294901760
  %1852 = vmatmul.f32.gmra.mxu0 %v1851
  %v1853 = vpop.f32.mrf.mxu0
  %v1854 = vadd.f32 %v1685, %v1853
  %v1855 = vand.u32 %v251, 4294901760
  %v1856 = vsub.f32 %v251, %v1855
  %v1857 = vand.u32 %v1856, 4294901760
  %v1858 = vsub.f32 %v1856, %v1857
  %v1859 = vand.u32 %v1858, 4294901760
  %1860 = vmatmul.f32.gmra.mxu0 %v1859
  %v1861 = vpop.f32.mrf.mxu0
  %v1862 = vadd.f32 %v1689, %v1861
  %v1863 = vand.u32 %v252, 4294901760
  %v1864 = vsub.f32 %v252, %v1863
  %v1865 = vand.u32 %v1864, 4294901760
  %v1866 = vsub.f32 %v1864, %v1865
  %v1867 = vand.u32 %v1866, 4294901760
  %1868 = vmatmul.f32.gmra.mxu0 %v1867
  %v1869 = vpop.f32.mrf.mxu0
  %v1870 = vadd.f32 %v1693, %v1869
  %v1871 = vand.u32 %v253, 4294901760
  %v1872 = vsub.f32 %v253, %v1871
  %v1873 = vand.u32 %v1872, 4294901760
  %v1874 = vsub.f32 %v1872, %v1873
  %v1875 = vand.u32 %v1874, 4294901760
  %1876 = vmatmul.f32.gmra.mxu0 %v1875
  %v1877 = vpop.f32.mrf.mxu0
  %v1878 = vadd.f32 %v1697, %v1877
  %v1879 = vand.u32 %v254, 4294901760
  %v1880 = vsub.f32 %v254, %v1879
  %v1881 = vand.u32 %v1880, 4294901760
  %v1882 = vsub.f32 %v1880, %v1881
  %v1883 = vand.u32 %v1882, 4294901760
  %1884 = vmatmul.f32.gmra.mxu0 %v1883
  %v1885 = vpop.f32.mrf.mxu0
  %v1886 = vadd.f32 %v1701, %v1885
  %v1887 = vand.u32 %v255, 4294901760
  %v1888 = vsub.f32 %v255, %v1887
  %v1889 = vand.u32 %v1888, 4294901760
  %v1890 = vsub.f32 %v1888, %v1889
  %v1891 = vand.u32 %v1890, 4294901760
  %1892 = vmatmul.f32.gmra.mxu0 %v1891
  %v1893 = vpop.f32.mrf.mxu0
  %v1894 = vadd.f32 %v1705, %v1893
  %v1895 = vand.u32 %v256, 4294901760
  %v1896 = vsub.f32 %v256, %v1895
  %v1897 = vand.u32 %v1896, 4294901760
  %v1898 = vsub.f32 %v1896, %v1897
  %v1899 = vand.u32 %v1898, 4294901760
  %1900 = vmatmul.f32.gmra.mxu0 %v1899
  %v1901 = vpop.f32.mrf.mxu0
  %v1902 = vadd.f32 %v1709, %v1901
  %v1903 = vand.u32 %v257, 4294901760
  %v1904 = vsub.f32 %v257, %v1903
  %v1905 = vand.u32 %v1904, 4294901760
  %v1906 = vsub.f32 %v1904, %v1905
  %v1907 = vand.u32 %v1906, 4294901760
  %1908 = vmatmul.f32.gmra.mxu0 %v1907
  %v1909 = vpop.f32.mrf.mxu0
  %v1910 = vadd.f32 %v1713, %v1909
  %v1911 = vand.u32 %v258, 4294901760
  %v1912 = vsub.f32 %v258, %v1911
  %v1913 = vand.u32 %v1912, 4294901760
  %v1914 = vsub.f32 %v1912, %v1913
  %v1915 = vand.u32 %v1914, 4294901760
  %1916 = vmatmul.f32.gmra.mxu0 %v1915
  %v1917 = vpop.f32.mrf.mxu0
  %v1918 = vadd.f32 %v1717, %v1917
  %v1919 = vand.u32 %v259, 4294901760
  %v1920 = vsub.f32 %v259, %v1919
  %v1921 = vand.u32 %v1920, 4294901760
  %v1922 = vsub.f32 %v1920, %v1921
  %v1923 = vand.u32 %v1922, 4294901760
  %1924 = vmatmul.f32.gmra.mxu0 %v1923
  %v1925 = vpop.f32.mrf.mxu0
  %v1926 = vadd.f32 %v1721, %v1925
  %v1927 = vand.u32 %v260, 4294901760
  %v1928 = vsub.f32 %v260, %v1927
  %v1929 = vand.u32 %v1928, 4294901760
  %v1930 = vsub.f32 %v1928, %v1929
  %v1931 = vand.u32 %v1930, 4294901760
  %1932 = vmatmul.f32.gmra.mxu0 %v1931
  %v1933 = vpop.f32.mrf.mxu0
  %v1934 = vadd.f32 %v1725, %v1933
  %v1935 = vand.u32 %v261, 4294901760
  %v1936 = vsub.f32 %v261, %v1935
  %v1937 = vand.u32 %v1936, 4294901760
  %v1938 = vsub.f32 %v1936, %v1937
  %v1939 = vand.u32 %v1938, 4294901760
  %1940 = vmatmul.f32.gmra.mxu0 %v1939
  %v1941 = vpop.f32.mrf.mxu0
  %v1942 = vadd.f32 %v1729, %v1941
  %v1943 = vand.u32 %v262, 4294901760
  %v1944 = vsub.f32 %v262, %v1943
  %v1945 = vand.u32 %v1944, 4294901760
  %v1946 = vsub.f32 %v1944, %v1945
  %v1947 = vand.u32 %v1946, 4294901760
  %1948 = vmatmul.f32.gmra.mxu0 %v1947
  %v1949 = vpop.f32.mrf.mxu0
  %v1950 = vadd.f32 %v1733, %v1949
  %v1951 = vand.u32 %v263, 4294901760
  %v1952 = vsub.f32 %v263, %v1951
  %v1953 = vand.u32 %v1952, 4294901760
  %v1954 = vsub.f32 %v1952, %v1953
  %v1955 = vand.u32 %v1954, 4294901760
  %1956 = vmatmul.f32.gmra.mxu0 %v1955
  %v1957 = vpop.f32.mrf.mxu0
  %v1958 = vadd.f32 %v1737, %v1957
  %v1959 = vand.u32 %v264, 4294901760
  %v1960 = vsub.f32 %v264, %v1959
  %v1961 = vand.u32 %v1960, 4294901760
  %v1962 = vsub.f32 %v1960, %v1961
  %v1963 = vand.u32 %v1962, 4294901760
  %1964 = vmatmul.f32.gmra.mxu0 %v1963
  %v1965 = vpop.f32.mrf.mxu0
  %v1966 = vadd.f32 %v1741, %v1965
  %v1967 = vand.u32 %v265, 4294901760
  %v1968 = vsub.f32 %v265, %v1967
  %v1969 = vand.u32 %v1968, 4294901760
  %v1970 = vsub.f32 %v1968, %v1969
  %v1971 = vand.u32 %v1970, 4294901760
  %1972 = vmatmul.f32.gmra.mxu0 %v1971
  %v1973 = vpop.f32.mrf.mxu0
  %v1974 = vadd.f32 %v1745, %v1973
  %v1975 = vand.u32 %v266, 4294901760
  %v1976 = vsub.f32 %v266, %v1975
  %v1977 = vand.u32 %v1976, 4294901760
  %v1978 = vsub.f32 %v1976, %v1977
  %v1979 = vand.u32 %v1978, 4294901760
  %1980 = vmatmul.f32.gmra.mxu0 %v1979
  %v1981 = vpop.f32.mrf.mxu0
  %v1982 = vadd.f32 %v1749, %v1981
  %v1983 = vand.u32 %v267, 4294901760
  %v1984 = vsub.f32 %v267, %v1983
  %v1985 = vand.u32 %v1984, 4294901760
  %v1986 = vsub.f32 %v1984, %v1985
  %v1987 = vand.u32 %v1986, 4294901760
  %1988 = vmatmul.f32.gmra.mxu0 %v1987
  %v1989 = vpop.f32.mrf.mxu0
  %v1990 = vadd.f32 %v1753, %v1989
  %v1991 = vand.u32 %v268, 4294901760
  %v1992 = vsub.f32 %v268, %v1991
  %v1993 = vand.u32 %v1992, 4294901760
  %v1994 = vsub.f32 %v1992, %v1993
  %v1995 = vand.u32 %v1994, 4294901760
  %1996 = vmatmul.f32.gmra.mxu0 %v1995
  %v1997 = vpop.f32.mrf.mxu0
  %v1998 = vadd.f32 %v1757, %v1997
  %v1999 = vand.u32 %v269, 4294901760
  %v2000 = vsub.f32 %v269, %v1999
  %v2001 = vand.u32 %v2000, 4294901760
  %v2002 = vsub.f32 %v2000, %v2001
  %v2003 = vand.u32 %v2002, 4294901760
  %2004 = vmatmul.f32.gmra.mxu0 %v2003
  %v2005 = vpop.f32.mrf.mxu0
  %v2006 = vadd.f32 %v1761, %v2005
  %v2007 = vand.u32 %v270, 4294901760
  %v2008 = vsub.f32 %v270, %v2007
  %v2009 = vand.u32 %v2008, 4294901760
  %v2010 = vsub.f32 %v2008, %v2009
  %v2011 = vand.u32 %v2010, 4294901760
  %2012 = vmatmul.f32.gmra.mxu0 %v2011
  %v2013 = vpop.f32.mrf.mxu0
  %v2014 = vadd.f32 %v1765, %v2013
  %v2015 = vand.u32 %v271, 4294901760
  %v2016 = vsub.f32 %v271, %v2015
  %v2017 = vand.u32 %v2016, 4294901760
  %v2018 = vsub.f32 %v2016, %v2017
  %v2019 = vand.u32 %v2018, 4294901760
  %2020 = vmatmul.f32.gmra.mxu0 %v2019
  %v2021 = vpop.f32.mrf.mxu0
  %v2022 = vadd.f32 %v1769, %v2021
  %v2023 = vand.u32 %v272, 4294901760
  %v2024 = vsub.f32 %v272, %v2023
  %v2025 = vand.u32 %v2024, 4294901760
  %v2026 = vsub.f32 %v2024, %v2025
  %v2027 = vand.u32 %v2026, 4294901760
  %2028 = vmatmul.f32.gmra.mxu0 %v2027
  %v2029 = vpop.f32.mrf.mxu0
  %v2030 = vadd.f32 %v1773, %v2029
  %v2031 = vand.u32 %v273, 4294901760
  %v2032 = vsub.f32 %v273, %v2031
  %v2033 = vand.u32 %v2032, 4294901760
  %v2034 = vsub.f32 %v2032, %v2033
  %v2035 = vand.u32 %v2034, 4294901760
  %2036 = vmatmul.f32.gmra.mxu0 %v2035
  %v2037 = vpop.f32.mrf.mxu0
  %v2038 = vadd.f32 %v1777, %v2037
  %v2039 = vand.u32 %v274, 4294901760
  %v2040 = vsub.f32 %v274, %v2039
  %v2041 = vand.u32 %v2040, 4294901760
  %v2042 = vsub.f32 %v2040, %v2041
  %v2043 = vand.u32 %v2042, 4294901760
  %2044 = vmatmul.f32.gmra.mxu0 %v2043
  %v2045 = vpop.f32.mrf.mxu0
  %v2046 = vadd.f32 %v1781, %v2045
  %v2047 = vand.u32 %v275, 4294901760
  %v2048 = vsub.f32 %v275, %v2047
  %v2049 = vand.u32 %v2048, 4294901760
  %v2050 = vsub.f32 %v2048, %v2049
  %v2051 = vand.u32 %v2050, 4294901760
  %2052 = vmatmul.f32.gmra.mxu0 %v2051
  %v2053 = vpop.f32.mrf.mxu0
  %v2054 = vadd.f32 %v1785, %v2053
  %v2055 = vand.u32 %v276, 4294901760
  %v2056 = vsub.f32 %v276, %v2055
  %v2057 = vand.u32 %v2056, 4294901760
  %v2058 = vsub.f32 %v2056, %v2057
  %v2059 = vand.u32 %v2058, 4294901760
  %2060 = vmatmul.f32.gmra.mxu0 %v2059
  %v2061 = vpop.f32.mrf.mxu0
  %v2062 = vadd.f32 %v1789, %v2061
  %v2063 = vand.u32 %v277, 4294901760
  %v2064 = vsub.f32 %v277, %v2063
  %v2065 = vand.u32 %v2064, 4294901760
  %v2066 = vsub.f32 %v2064, %v2065
  %v2067 = vand.u32 %v2066, 4294901760
  %2068 = vmatmul.f32.gmra.mxu0 %v2067
  %v2069 = vpop.f32.mrf.mxu0
  %v2070 = vadd.f32 %v1793, %v2069
  %v2071 = vand.u32 %v278, 4294901760
  %v2072 = vsub.f32 %v278, %v2071
  %v2073 = vand.u32 %v2072, 4294901760
  %v2074 = vsub.f32 %v2072, %v2073
  %v2075 = vand.u32 %v2074, 4294901760
  %2076 = vmatmul.f32.gmra.mxu0 %v2075
  %v2077 = vpop.f32.mrf.mxu0
  %v2078 = vadd.f32 %v1797, %v2077
  %v2079 = vand.u32 %v279, 4294901760
  %v2080 = vsub.f32 %v279, %v2079
  %v2081 = vand.u32 %v2080, 4294901760
  %v2082 = vsub.f32 %v2080, %v2081
  %v2083 = vand.u32 %v2082, 4294901760
  %2084 = vmatmul.f32.gmra.mxu0 %v2083
  %v2085 = vpop.f32.mrf.mxu0
  %v2086 = vadd.f32 %v1801, %v2085
  %v2087 = vand.u32 %v280, 4294901760
  %v2088 = vsub.f32 %v280, %v2087
  %v2089 = vand.u32 %v2088, 4294901760
  %v2090 = vsub.f32 %v2088, %v2089
  %v2091 = vand.u32 %v2090, 4294901760
  %2092 = vmatmul.f32.gmra.mxu0 %v2091
  %v2093 = vpop.f32.mrf.mxu0
  %v2094 = vadd.f32 %v1805, %v2093
  %2095 = vdwg.mxu0
  %v2096 = vand.u32 %v488, 4294901760
  %v2097 = vsub.f32 %v488, %v2096
  %v2098 = vand.u32 %v2097, 4294901760
  %v2099 = vsub.f32 %v2097, %v2098
  %v2100 = vand.u32 %v2099, 4294901760
  %2101 = vmatpush.msra.mxu0 %v2100
  %v2102 = vand.u32 %v487, 4294901760
  %v2103 = vsub.f32 %v487, %v2102
  %v2104 = vand.u32 %v2103, 4294901760
  %v2105 = vsub.f32 %v2103, %v2104
  %v2106 = vand.u32 %v2105, 4294901760
  %2107 = vmatpush.msra.mxu0 %v2106
  %v2108 = vand.u32 %v486, 4294901760
  %v2109 = vsub.f32 %v486, %v2108
  %v2110 = vand.u32 %v2109, 4294901760
  %v2111 = vsub.f32 %v2109, %v2110
  %v2112 = vand.u32 %v2111, 4294901760
  %2113 = vmatpush.msra.mxu0 %v2112
  %v2114 = vand.u32 %v485, 4294901760
  %v2115 = vsub.f32 %v485, %v2114
  %v2116 = vand.u32 %v2115, 4294901760
  %v2117 = vsub.f32 %v2115, %v2116
  %v2118 = vand.u32 %v2117, 4294901760
  %2119 = vmatpush.msra.mxu0 %v2118
  %v2120 = vand.u32 %v484, 4294901760
  %v2121 = vsub.f32 %v484, %v2120
  %v2122 = vand.u32 %v2121, 4294901760
  %v2123 = vsub.f32 %v2121, %v2122
  %v2124 = vand.u32 %v2123, 4294901760
  %2125 = vmatpush.msra.mxu0 %v2124
  %v2126 = vand.u32 %v483, 4294901760
  %v2127 = vsub.f32 %v483, %v2126
  %v2128 = vand.u32 %v2127, 4294901760
  %v2129 = vsub.f32 %v2127, %v2128
  %v2130 = vand.u32 %v2129, 4294901760
  %2131 = vmatpush.msra.mxu0 %v2130
  %v2132 = vand.u32 %v482, 4294901760
  %v2133 = vsub.f32 %v482, %v2132
  %v2134 = vand.u32 %v2133, 4294901760
  %v2135 = vsub.f32 %v2133, %v2134
  %v2136 = vand.u32 %v2135, 4294901760
  %2137 = vmatpush.msra.mxu0 %v2136
  %v2138 = vand.u32 %v481, 4294901760
  %v2139 = vsub.f32 %v481, %v2138
  %v2140 = vand.u32 %v2139, 4294901760
  %v2141 = vsub.f32 %v2139, %v2140
  %v2142 = vand.u32 %v2141, 4294901760
  %2143 = vmatpush.msra.mxu0 %v2142
  %v2144 = vand.u32 %v480, 4294901760
  %v2145 = vsub.f32 %v480, %v2144
  %v2146 = vand.u32 %v2145, 4294901760
  %v2147 = vsub.f32 %v2145, %v2146
  %v2148 = vand.u32 %v2147, 4294901760
  %2149 = vmatpush.msra.mxu0 %v2148
  %v2150 = vand.u32 %v479, 4294901760
  %v2151 = vsub.f32 %v479, %v2150
  %v2152 = vand.u32 %v2151, 4294901760
  %v2153 = vsub.f32 %v2151, %v2152
  %v2154 = vand.u32 %v2153, 4294901760
  %2155 = vmatpush.msra.mxu0 %v2154
  %v2156 = vand.u32 %v478, 4294901760
  %v2157 = vsub.f32 %v478, %v2156
  %v2158 = vand.u32 %v2157, 4294901760
  %v2159 = vsub.f32 %v2157, %v2158
  %v2160 = vand.u32 %v2159, 4294901760
  %2161 = vmatpush.msra.mxu0 %v2160
  %v2162 = vand.u32 %v477, 4294901760
  %v2163 = vsub.f32 %v477, %v2162
  %v2164 = vand.u32 %v2163, 4294901760
  %v2165 = vsub.f32 %v2163, %v2164
  %v2166 = vand.u32 %v2165, 4294901760
  %2167 = vmatpush.msra.mxu0 %v2166
  %v2168 = vand.u32 %v476, 4294901760
  %v2169 = vsub.f32 %v476, %v2168
  %v2170 = vand.u32 %v2169, 4294901760
  %v2171 = vsub.f32 %v2169, %v2170
  %v2172 = vand.u32 %v2171, 4294901760
  %2173 = vmatpush.msra.mxu0 %v2172
  %v2174 = vand.u32 %v475, 4294901760
  %v2175 = vsub.f32 %v475, %v2174
  %v2176 = vand.u32 %v2175, 4294901760
  %v2177 = vsub.f32 %v2175, %v2176
  %v2178 = vand.u32 %v2177, 4294901760
  %2179 = vmatpush.msra.mxu0 %v2178
  %v2180 = vand.u32 %v474, 4294901760
  %v2181 = vsub.f32 %v474, %v2180
  %v2182 = vand.u32 %v2181, 4294901760
  %v2183 = vsub.f32 %v2181, %v2182
  %v2184 = vand.u32 %v2183, 4294901760
  %2185 = vmatpush.msra.mxu0 %v2184
  %v2186 = vand.u32 %v473, 4294901760
  %v2187 = vsub.f32 %v473, %v2186
  %v2188 = vand.u32 %v2187, 4294901760
  %v2189 = vsub.f32 %v2187, %v2188
  %v2190 = vand.u32 %v2189, 4294901760
  %2191 = vmatpush.msra.mxu0 %v2190
  %v2192 = vand.u32 %v249, 4294901760
  %2193 = vmatmul.f32.gmra.mxu0 %v2192
  %v2194 = vpop.f32.mrf.mxu0
  %v2195 = vadd.f32 %v1846, %v2194
  %v2196 = vand.u32 %v250, 4294901760
  %2197 = vmatmul.f32.gmra.mxu0 %v2196
  %v2198 = vpop.f32.mrf.mxu0
  %v2199 = vadd.f32 %v1854, %v2198
  %v2200 = vand.u32 %v251, 4294901760
  %2201 = vmatmul.f32.gmra.mxu0 %v2200
  %v2202 = vpop.f32.mrf.mxu0
  %v2203 = vadd.f32 %v1862, %v2202
  %v2204 = vand.u32 %v252, 4294901760
  %2205 = vmatmul.f32.gmra.mxu0 %v2204
  %v2206 = vpop.f32.mrf.mxu0
  %v2207 = vadd.f32 %v1870, %v2206
  %v2208 = vand.u32 %v253, 4294901760
  %2209 = vmatmul.f32.gmra.mxu0 %v2208
  %v2210 = vpop.f32.mrf.mxu0
  %v2211 = vadd.f32 %v1878, %v2210
  %v2212 = vand.u32 %v254, 4294901760
  %2213 = vmatmul.f32.gmra.mxu0 %v2212
  %v2214 = vpop.f32.mrf.mxu0
  %v2215 = vadd.f32 %v1886, %v2214
  %v2216 = vand.u32 %v255, 4294901760
  %2217 = vmatmul.f32.gmra.mxu0 %v2216
  %v2218 = vpop.f32.mrf.mxu0
  %v2219 = vadd.f32 %v1894, %v2218
  %v2220 = vand.u32 %v256, 4294901760
  %2221 = vmatmul.f32.gmra.mxu0 %v2220
  %v2222 = vpop.f32.mrf.mxu0
  %v2223 = vadd.f32 %v1902, %v2222
  %v2224 = vand.u32 %v257, 4294901760
  %2225 = vmatmul.f32.gmra.mxu0 %v2224
  %v2226 = vpop.f32.mrf.mxu0
  %v2227 = vadd.f32 %v1910, %v2226
  %v2228 = vand.u32 %v258, 4294901760
  %2229 = vmatmul.f32.gmra.mxu0 %v2228
  %v2230 = vpop.f32.mrf.mxu0
  %v2231 = vadd.f32 %v1918, %v2230
  %v2232 = vand.u32 %v259, 4294901760
  %2233 = vmatmul.f32.gmra.mxu0 %v2232
  %v2234 = vpop.f32.mrf.mxu0
  %v2235 = vadd.f32 %v1926, %v2234
  %v2236 = vand.u32 %v260, 4294901760
  %2237 = vmatmul.f32.gmra.mxu0 %v2236
  %v2238 = vpop.f32.mrf.mxu0
  %v2239 = vadd.f32 %v1934, %v2238
  %v2240 = vand.u32 %v261, 4294901760
  %2241 = vmatmul.f32.gmra.mxu0 %v2240
  %v2242 = vpop.f32.mrf.mxu0
  %v2243 = vadd.f32 %v1942, %v2242
  %v2244 = vand.u32 %v262, 4294901760
  %2245 = vmatmul.f32.gmra.mxu0 %v2244
  %v2246 = vpop.f32.mrf.mxu0
  %v2247 = vadd.f32 %v1950, %v2246
  %v2248 = vand.u32 %v263, 4294901760
  %2249 = vmatmul.f32.gmra.mxu0 %v2248
  %v2250 = vpop.f32.mrf.mxu0
  %v2251 = vadd.f32 %v1958, %v2250
  %v2252 = vand.u32 %v264, 4294901760
  %2253 = vmatmul.f32.gmra.mxu0 %v2252
  %v2254 = vpop.f32.mrf.mxu0
  %v2255 = vadd.f32 %v1966, %v2254
  %v2256 = vand.u32 %v265, 4294901760
  %2257 = vmatmul.f32.gmra.mxu0 %v2256
  %v2258 = vpop.f32.mrf.mxu0
  %v2259 = vadd.f32 %v1974, %v2258
  %v2260 = vand.u32 %v266, 4294901760
  %2261 = vmatmul.f32.gmra.mxu0 %v2260
  %v2262 = vpop.f32.mrf.mxu0
  %v2263 = vadd.f32 %v1982, %v2262
  %v2264 = vand.u32 %v267, 4294901760
  %2265 = vmatmul.f32.gmra.mxu0 %v2264
  %v2266 = vpop.f32.mrf.mxu0
  %v2267 = vadd.f32 %v1990, %v2266
  %v2268 = vand.u32 %v268, 4294901760
  %2269 = vmatmul.f32.gmra.mxu0 %v2268
  %v2270 = vpop.f32.mrf.mxu0
  %v2271 = vadd.f32 %v1998, %v2270
  %v2272 = vand.u32 %v269, 4294901760
  %2273 = vmatmul.f32.gmra.mxu0 %v2272
  %v2274 = vpop.f32.mrf.mxu0
  %v2275 = vadd.f32 %v2006, %v2274
  %v2276 = vand.u32 %v270, 4294901760
  %2277 = vmatmul.f32.gmra.mxu0 %v2276
  %v2278 = vpop.f32.mrf.mxu0
  %v2279 = vadd.f32 %v2014, %v2278
  %v2280 = vand.u32 %v271, 4294901760
  %2281 = vmatmul.f32.gmra.mxu0 %v2280
  %v2282 = vpop.f32.mrf.mxu0
  %v2283 = vadd.f32 %v2022, %v2282
  %v2284 = vand.u32 %v272, 4294901760
  %2285 = vmatmul.f32.gmra.mxu0 %v2284
  %v2286 = vpop.f32.mrf.mxu0
  %v2287 = vadd.f32 %v2030, %v2286
  %v2288 = vand.u32 %v273, 4294901760
  %2289 = vmatmul.f32.gmra.mxu0 %v2288
  %v2290 = vpop.f32.mrf.mxu0
  %v2291 = vadd.f32 %v2038, %v2290
  %v2292 = vand.u32 %v274, 4294901760
  %2293 = vmatmul.f32.gmra.mxu0 %v2292
  %v2294 = vpop.f32.mrf.mxu0
  %v2295 = vadd.f32 %v2046, %v2294
  %v2296 = vand.u32 %v275, 4294901760
  %2297 = vmatmul.f32.gmra.mxu0 %v2296
  %v2298 = vpop.f32.mrf.mxu0
  %v2299 = vadd.f32 %v2054, %v2298
  %v2300 = vand.u32 %v276, 4294901760
  %2301 = vmatmul.f32.gmra.mxu0 %v2300
  %v2302 = vpop.f32.mrf.mxu0
  %v2303 = vadd.f32 %v2062, %v2302
  %v2304 = vand.u32 %v277, 4294901760
  %2305 = vmatmul.f32.gmra.mxu0 %v2304
  %v2306 = vpop.f32.mrf.mxu0
  %v2307 = vadd.f32 %v2070, %v2306
  %v2308 = vand.u32 %v278, 4294901760
  %2309 = vmatmul.f32.gmra.mxu0 %v2308
  %v2310 = vpop.f32.mrf.mxu0
  %v2311 = vadd.f32 %v2078, %v2310
  %v2312 = vand.u32 %v279, 4294901760
  %2313 = vmatmul.f32.gmra.mxu0 %v2312
  %v2314 = vpop.f32.mrf.mxu0
  %v2315 = vadd.f32 %v2086, %v2314
  %v2316 = vand.u32 %v280, 4294901760
  %2317 = vmatmul.f32.gmra.mxu0 %v2316
  %v2318 = vpop.f32.mrf.mxu0
  %v2319 = vadd.f32 %v2094, %v2318
  %2320 = vdwg.mxu0
  %v2321 = vand.u32 %v488, 4294901760
  %v2322 = vsub.f32 %v488, %v2321
  %2323 = vmatpush.msra.mxu0 %v2322
  %v2324 = vand.u32 %v487, 4294901760
  %v2325 = vsub.f32 %v487, %v2324
  %2326 = vmatpush.msra.mxu0 %v2325
  %v2327 = vand.u32 %v486, 4294901760
  %v2328 = vsub.f32 %v486, %v2327
  %2329 = vmatpush.msra.mxu0 %v2328
  %v2330 = vand.u32 %v485, 4294901760
  %v2331 = vsub.f32 %v485, %v2330
  %2332 = vmatpush.msra.mxu0 %v2331
  %v2333 = vand.u32 %v484, 4294901760
  %v2334 = vsub.f32 %v484, %v2333
  %2335 = vmatpush.msra.mxu0 %v2334
  %v2336 = vand.u32 %v483, 4294901760
  %v2337 = vsub.f32 %v483, %v2336
  %2338 = vmatpush.msra.mxu0 %v2337
  %v2339 = vand.u32 %v482, 4294901760
  %v2340 = vsub.f32 %v482, %v2339
  %2341 = vmatpush.msra.mxu0 %v2340
  %v2342 = vand.u32 %v481, 4294901760
  %v2343 = vsub.f32 %v481, %v2342
  %2344 = vmatpush.msra.mxu0 %v2343
  %v2345 = vand.u32 %v480, 4294901760
  %v2346 = vsub.f32 %v480, %v2345
  %2347 = vmatpush.msra.mxu0 %v2346
  %v2348 = vand.u32 %v479, 4294901760
  %v2349 = vsub.f32 %v479, %v2348
  %2350 = vmatpush.msra.mxu0 %v2349
  %v2351 = vand.u32 %v478, 4294901760
  %v2352 = vsub.f32 %v478, %v2351
  %2353 = vmatpush.msra.mxu0 %v2352
  %v2354 = vand.u32 %v477, 4294901760
  %v2355 = vsub.f32 %v477, %v2354
  %2356 = vmatpush.msra.mxu0 %v2355
  %v2357 = vand.u32 %v476, 4294901760
  %v2358 = vsub.f32 %v476, %v2357
  %2359 = vmatpush.msra.mxu0 %v2358
  %v2360 = vand.u32 %v475, 4294901760
  %v2361 = vsub.f32 %v475, %v2360
  %2362 = vmatpush.msra.mxu0 %v2361
  %v2363 = vand.u32 %v474, 4294901760
  %v2364 = vsub.f32 %v474, %v2363
  %2365 = vmatpush.msra.mxu0 %v2364
  %v2366 = vand.u32 %v473, 4294901760
  %v2367 = vsub.f32 %v473, %v2366
  %2368 = vmatpush.msra.mxu0 %v2367
  %v2369 = vand.u32 %v249, 4294901760
  %v2370 = vsub.f32 %v249, %v2369
  %2371 = vmatmul.f32.gmra.mxu0 %v2370
  %v2372 = vpop.f32.mrf.mxu0
  %v2373 = vadd.f32 %v2195, %v2372
  %v2374 = vand.u32 %v250, 4294901760
  %v2375 = vsub.f32 %v250, %v2374
  %2376 = vmatmul.f32.gmra.mxu0 %v2375
  %v2377 = vpop.f32.mrf.mxu0
  %v2378 = vadd.f32 %v2199, %v2377
  %v2379 = vand.u32 %v251, 4294901760
  %v2380 = vsub.f32 %v251, %v2379
  %2381 = vmatmul.f32.gmra.mxu0 %v2380
  %v2382 = vpop.f32.mrf.mxu0
  %v2383 = vadd.f32 %v2203, %v2382
  %v2384 = vand.u32 %v252, 4294901760
  %v2385 = vsub.f32 %v252, %v2384
  %2386 = vmatmul.f32.gmra.mxu0 %v2385
  %v2387 = vpop.f32.mrf.mxu0
  %v2388 = vadd.f32 %v2207, %v2387
  %v2389 = vand.u32 %v253, 4294901760
  %v2390 = vsub.f32 %v253, %v2389
  %2391 = vmatmul.f32.gmra.mxu0 %v2390
  %v2392 = vpop.f32.mrf.mxu0
  %v2393 = vadd.f32 %v2211, %v2392
  %v2394 = vand.u32 %v254, 4294901760
  %v2395 = vsub.f32 %v254, %v2394
  %2396 = vmatmul.f32.gmra.mxu0 %v2395
  %v2397 = vpop.f32.mrf.mxu0
  %v2398 = vadd.f32 %v2215, %v2397
  %v2399 = vand.u32 %v255, 4294901760
  %v2400 = vsub.f32 %v255, %v2399
  %2401 = vmatmul.f32.gmra.mxu0 %v2400
  %v2402 = vpop.f32.mrf.mxu0
  %v2403 = vadd.f32 %v2219, %v2402
  %v2404 = vand.u32 %v256, 4294901760
  %v2405 = vsub.f32 %v256, %v2404
  %2406 = vmatmul.f32.gmra.mxu0 %v2405
  %v2407 = vpop.f32.mrf.mxu0
  %v2408 = vadd.f32 %v2223, %v2407
  %v2409 = vand.u32 %v257, 4294901760
  %v2410 = vsub.f32 %v257, %v2409
  %2411 = vmatmul.f32.gmra.mxu0 %v2410
  %v2412 = vpop.f32.mrf.mxu0
  %v2413 = vadd.f32 %v2227, %v2412
  %v2414 = vand.u32 %v258, 4294901760
  %v2415 = vsub.f32 %v258, %v2414
  %2416 = vmatmul.f32.gmra.mxu0 %v2415
  %v2417 = vpop.f32.mrf.mxu0
  %v2418 = vadd.f32 %v2231, %v2417
  %v2419 = vand.u32 %v259, 4294901760
  %v2420 = vsub.f32 %v259, %v2419
  %2421 = vmatmul.f32.gmra.mxu0 %v2420
  %v2422 = vpop.f32.mrf.mxu0
  %v2423 = vadd.f32 %v2235, %v2422
  %v2424 = vand.u32 %v260, 4294901760
  %v2425 = vsub.f32 %v260, %v2424
  %2426 = vmatmul.f32.gmra.mxu0 %v2425
  %v2427 = vpop.f32.mrf.mxu0
  %v2428 = vadd.f32 %v2239, %v2427
  %v2429 = vand.u32 %v261, 4294901760
  %v2430 = vsub.f32 %v261, %v2429
  %2431 = vmatmul.f32.gmra.mxu0 %v2430
  %v2432 = vpop.f32.mrf.mxu0
  %v2433 = vadd.f32 %v2243, %v2432
  %v2434 = vand.u32 %v262, 4294901760
  %v2435 = vsub.f32 %v262, %v2434
  %2436 = vmatmul.f32.gmra.mxu0 %v2435
  %v2437 = vpop.f32.mrf.mxu0
  %v2438 = vadd.f32 %v2247, %v2437
  %v2439 = vand.u32 %v263, 4294901760
  %v2440 = vsub.f32 %v263, %v2439
  %2441 = vmatmul.f32.gmra.mxu0 %v2440
  %v2442 = vpop.f32.mrf.mxu0
  %v2443 = vadd.f32 %v2251, %v2442
  %v2444 = vand.u32 %v264, 4294901760
  %v2445 = vsub.f32 %v264, %v2444
  %2446 = vmatmul.f32.gmra.mxu0 %v2445
  %v2447 = vpop.f32.mrf.mxu0
  %v2448 = vadd.f32 %v2255, %v2447
  %v2449 = vand.u32 %v265, 4294901760
  %v2450 = vsub.f32 %v265, %v2449
  %2451 = vmatmul.f32.gmra.mxu0 %v2450
  %v2452 = vpop.f32.mrf.mxu0
  %v2453 = vadd.f32 %v2259, %v2452
  %v2454 = vand.u32 %v266, 4294901760
  %v2455 = vsub.f32 %v266, %v2454
  %2456 = vmatmul.f32.gmra.mxu0 %v2455
  %v2457 = vpop.f32.mrf.mxu0
  %v2458 = vadd.f32 %v2263, %v2457
  %v2459 = vand.u32 %v267, 4294901760
  %v2460 = vsub.f32 %v267, %v2459
  %2461 = vmatmul.f32.gmra.mxu0 %v2460
  %v2462 = vpop.f32.mrf.mxu0
  %v2463 = vadd.f32 %v2267, %v2462
  %v2464 = vand.u32 %v268, 4294901760
  %v2465 = vsub.f32 %v268, %v2464
  %2466 = vmatmul.f32.gmra.mxu0 %v2465
  %v2467 = vpop.f32.mrf.mxu0
  %v2468 = vadd.f32 %v2271, %v2467
  %v2469 = vand.u32 %v269, 4294901760
  %v2470 = vsub.f32 %v269, %v2469
  %2471 = vmatmul.f32.gmra.mxu0 %v2470
  %v2472 = vpop.f32.mrf.mxu0
  %v2473 = vadd.f32 %v2275, %v2472
  %v2474 = vand.u32 %v270, 4294901760
  %v2475 = vsub.f32 %v270, %v2474
  %2476 = vmatmul.f32.gmra.mxu0 %v2475
  %v2477 = vpop.f32.mrf.mxu0
  %v2478 = vadd.f32 %v2279, %v2477
  %v2479 = vand.u32 %v271, 4294901760
  %v2480 = vsub.f32 %v271, %v2479
  %2481 = vmatmul.f32.gmra.mxu0 %v2480
  %v2482 = vpop.f32.mrf.mxu0
  %v2483 = vadd.f32 %v2283, %v2482
  %v2484 = vand.u32 %v272, 4294901760
  %v2485 = vsub.f32 %v272, %v2484
  %2486 = vmatmul.f32.gmra.mxu0 %v2485
  %v2487 = vpop.f32.mrf.mxu0
  %v2488 = vadd.f32 %v2287, %v2487
  %v2489 = vand.u32 %v273, 4294901760
  %v2490 = vsub.f32 %v273, %v2489
  %2491 = vmatmul.f32.gmra.mxu0 %v2490
  %v2492 = vpop.f32.mrf.mxu0
  %v2493 = vadd.f32 %v2291, %v2492
  %v2494 = vand.u32 %v274, 4294901760
  %v2495 = vsub.f32 %v274, %v2494
  %2496 = vmatmul.f32.gmra.mxu0 %v2495
  %v2497 = vpop.f32.mrf.mxu0
  %v2498 = vadd.f32 %v2295, %v2497
  %v2499 = vand.u32 %v275, 4294901760
  %v2500 = vsub.f32 %v275, %v2499
  %2501 = vmatmul.f32.gmra.mxu0 %v2500
  %v2502 = vpop.f32.mrf.mxu0
  %v2503 = vadd.f32 %v2299, %v2502
  %v2504 = vand.u32 %v276, 4294901760
  %v2505 = vsub.f32 %v276, %v2504
  %2506 = vmatmul.f32.gmra.mxu0 %v2505
  %v2507 = vpop.f32.mrf.mxu0
  %v2508 = vadd.f32 %v2303, %v2507
  %v2509 = vand.u32 %v277, 4294901760
  %v2510 = vsub.f32 %v277, %v2509
  %2511 = vmatmul.f32.gmra.mxu0 %v2510
  %v2512 = vpop.f32.mrf.mxu0
  %v2513 = vadd.f32 %v2307, %v2512
  %v2514 = vand.u32 %v278, 4294901760
  %v2515 = vsub.f32 %v278, %v2514
  %2516 = vmatmul.f32.gmra.mxu0 %v2515
  %v2517 = vpop.f32.mrf.mxu0
  %v2518 = vadd.f32 %v2311, %v2517
  %v2519 = vand.u32 %v279, 4294901760
  %v2520 = vsub.f32 %v279, %v2519
  %2521 = vmatmul.f32.gmra.mxu0 %v2520
  %v2522 = vpop.f32.mrf.mxu0
  %v2523 = vadd.f32 %v2315, %v2522
  %v2524 = vand.u32 %v280, 4294901760
  %v2525 = vsub.f32 %v280, %v2524
  %2526 = vmatmul.f32.gmra.mxu0 %v2525
  %v2527 = vpop.f32.mrf.mxu0
  %v2528 = vadd.f32 %v2319, %v2527
  %2529 = vdwg.mxu0
  %v2530 = vand.u32 %v488, 4294901760
  %2531 = vmatpush.msra.mxu0 %v2530
  %v2532 = vand.u32 %v487, 4294901760
  %2533 = vmatpush.msra.mxu0 %v2532
  %v2534 = vand.u32 %v486, 4294901760
  %2535 = vmatpush.msra.mxu0 %v2534
  %v2536 = vand.u32 %v485, 4294901760
  %2537 = vmatpush.msra.mxu0 %v2536
  %v2538 = vand.u32 %v484, 4294901760
  %2539 = vmatpush.msra.mxu0 %v2538
  %v2540 = vand.u32 %v483, 4294901760
  %2541 = vmatpush.msra.mxu0 %v2540
  %v2542 = vand.u32 %v482, 4294901760
  %2543 = vmatpush.msra.mxu0 %v2542
  %v2544 = vand.u32 %v481, 4294901760
  %2545 = vmatpush.msra.mxu0 %v2544
  %v2546 = vand.u32 %v480, 4294901760
  %2547 = vmatpush.msra.mxu0 %v2546
  %v2548 = vand.u32 %v479, 4294901760
  %2549 = vmatpush.msra.mxu0 %v2548
  %v2550 = vand.u32 %v478, 4294901760
  %2551 = vmatpush.msra.mxu0 %v2550
  %v2552 = vand.u32 %v477, 4294901760
  %2553 = vmatpush.msra.mxu0 %v2552
  %v2554 = vand.u32 %v476, 4294901760
  %2555 = vmatpush.msra.mxu0 %v2554
  %v2556 = vand.u32 %v475, 4294901760
  %2557 = vmatpush.msra.mxu0 %v2556
  %v2558 = vand.u32 %v474, 4294901760
  %2559 = vmatpush.msra.mxu0 %v2558
  %v2560 = vand.u32 %v473, 4294901760
  %2561 = vmatpush.msra.mxu0 %v2560
  %v2562 = vand.u32 %v249, 4294901760
  %v2563 = vsub.f32 %v249, %v2562
  %v2564 = vand.u32 %v2563, 4294901760
  %2565 = vmatmul.f32.gmra.mxu0 %v2564
  %v2566 = vpop.f32.mrf.mxu0
  %v2567 = vadd.f32 %v2373, %v2566
  %v2568 = vand.u32 %v250, 4294901760
  %v2569 = vsub.f32 %v250, %v2568
  %v2570 = vand.u32 %v2569, 4294901760
  %2571 = vmatmul.f32.gmra.mxu0 %v2570
  %v2572 = vpop.f32.mrf.mxu0
  %v2573 = vadd.f32 %v2378, %v2572
  %v2574 = vand.u32 %v251, 4294901760
  %v2575 = vsub.f32 %v251, %v2574
  %v2576 = vand.u32 %v2575, 4294901760
  %2577 = vmatmul.f32.gmra.mxu0 %v2576
  %v2578 = vpop.f32.mrf.mxu0
  %v2579 = vadd.f32 %v2383, %v2578
  %v2580 = vand.u32 %v252, 4294901760
  %v2581 = vsub.f32 %v252, %v2580
  %v2582 = vand.u32 %v2581, 4294901760
  %2583 = vmatmul.f32.gmra.mxu0 %v2582
  %v2584 = vpop.f32.mrf.mxu0
  %v2585 = vadd.f32 %v2388, %v2584
  %v2586 = vand.u32 %v253, 4294901760
  %v2587 = vsub.f32 %v253, %v2586
  %v2588 = vand.u32 %v2587, 4294901760
  %2589 = vmatmul.f32.gmra.mxu0 %v2588
  %v2590 = vpop.f32.mrf.mxu0
  %v2591 = vadd.f32 %v2393, %v2590
  %v2592 = vand.u32 %v254, 4294901760
  %v2593 = vsub.f32 %v254, %v2592
  %v2594 = vand.u32 %v2593, 4294901760
  %2595 = vmatmul.f32.gmra.mxu0 %v2594
  %v2596 = vpop.f32.mrf.mxu0
  %v2597 = vadd.f32 %v2398, %v2596
  %v2598 = vand.u32 %v255, 4294901760
  %v2599 = vsub.f32 %v255, %v2598
  %v2600 = vand.u32 %v2599, 4294901760
  %2601 = vmatmul.f32.gmra.mxu0 %v2600
  %v2602 = vpop.f32.mrf.mxu0
  %v2603 = vadd.f32 %v2403, %v2602
  %v2604 = vand.u32 %v256, 4294901760
  %v2605 = vsub.f32 %v256, %v2604
  %v2606 = vand.u32 %v2605, 4294901760
  %2607 = vmatmul.f32.gmra.mxu0 %v2606
  %v2608 = vpop.f32.mrf.mxu0
  %v2609 = vadd.f32 %v2408, %v2608
  %v2610 = vand.u32 %v257, 4294901760
  %v2611 = vsub.f32 %v257, %v2610
  %v2612 = vand.u32 %v2611, 4294901760
  %2613 = vmatmul.f32.gmra.mxu0 %v2612
  %v2614 = vpop.f32.mrf.mxu0
  %v2615 = vadd.f32 %v2413, %v2614
  %v2616 = vand.u32 %v258, 4294901760
  %v2617 = vsub.f32 %v258, %v2616
  %v2618 = vand.u32 %v2617, 4294901760
  %2619 = vmatmul.f32.gmra.mxu0 %v2618
  %v2620 = vpop.f32.mrf.mxu0
  %v2621 = vadd.f32 %v2418, %v2620
  %v2622 = vand.u32 %v259, 4294901760
  %v2623 = vsub.f32 %v259, %v2622
  %v2624 = vand.u32 %v2623, 4294901760
  %2625 = vmatmul.f32.gmra.mxu0 %v2624
  %v2626 = vpop.f32.mrf.mxu0
  %v2627 = vadd.f32 %v2423, %v2626
  %v2628 = vand.u32 %v260, 4294901760
  %v2629 = vsub.f32 %v260, %v2628
  %v2630 = vand.u32 %v2629, 4294901760
  %2631 = vmatmul.f32.gmra.mxu0 %v2630
  %v2632 = vpop.f32.mrf.mxu0
  %v2633 = vadd.f32 %v2428, %v2632
  %v2634 = vand.u32 %v261, 4294901760
  %v2635 = vsub.f32 %v261, %v2634
  %v2636 = vand.u32 %v2635, 4294901760
  %2637 = vmatmul.f32.gmra.mxu0 %v2636
  %v2638 = vpop.f32.mrf.mxu0
  %v2639 = vadd.f32 %v2433, %v2638
  %v2640 = vand.u32 %v262, 4294901760
  %v2641 = vsub.f32 %v262, %v2640
  %v2642 = vand.u32 %v2641, 4294901760
  %2643 = vmatmul.f32.gmra.mxu0 %v2642
  %v2644 = vpop.f32.mrf.mxu0
  %v2645 = vadd.f32 %v2438, %v2644
  %v2646 = vand.u32 %v263, 4294901760
  %v2647 = vsub.f32 %v263, %v2646
  %v2648 = vand.u32 %v2647, 4294901760
  %2649 = vmatmul.f32.gmra.mxu0 %v2648
  %v2650 = vpop.f32.mrf.mxu0
  %v2651 = vadd.f32 %v2443, %v2650
  %v2652 = vand.u32 %v264, 4294901760
  %v2653 = vsub.f32 %v264, %v2652
  %v2654 = vand.u32 %v2653, 4294901760
  %2655 = vmatmul.f32.gmra.mxu0 %v2654
  %v2656 = vpop.f32.mrf.mxu0
  %v2657 = vadd.f32 %v2448, %v2656
  %v2658 = vand.u32 %v265, 4294901760
  %v2659 = vsub.f32 %v265, %v2658
  %v2660 = vand.u32 %v2659, 4294901760
  %2661 = vmatmul.f32.gmra.mxu0 %v2660
  %v2662 = vpop.f32.mrf.mxu0
  %v2663 = vadd.f32 %v2453, %v2662
  %v2664 = vand.u32 %v266, 4294901760
  %v2665 = vsub.f32 %v266, %v2664
  %v2666 = vand.u32 %v2665, 4294901760
  %2667 = vmatmul.f32.gmra.mxu0 %v2666
  %v2668 = vpop.f32.mrf.mxu0
  %v2669 = vadd.f32 %v2458, %v2668
  %v2670 = vand.u32 %v267, 4294901760
  %v2671 = vsub.f32 %v267, %v2670
  %v2672 = vand.u32 %v2671, 4294901760
  %2673 = vmatmul.f32.gmra.mxu0 %v2672
  %v2674 = vpop.f32.mrf.mxu0
  %v2675 = vadd.f32 %v2463, %v2674
  %v2676 = vand.u32 %v268, 4294901760
  %v2677 = vsub.f32 %v268, %v2676
  %v2678 = vand.u32 %v2677, 4294901760
  %2679 = vmatmul.f32.gmra.mxu0 %v2678
  %v2680 = vpop.f32.mrf.mxu0
  %v2681 = vadd.f32 %v2468, %v2680
  %v2682 = vand.u32 %v269, 4294901760
  %v2683 = vsub.f32 %v269, %v2682
  %v2684 = vand.u32 %v2683, 4294901760
  %2685 = vmatmul.f32.gmra.mxu0 %v2684
  %v2686 = vpop.f32.mrf.mxu0
  %v2687 = vadd.f32 %v2473, %v2686
  %v2688 = vand.u32 %v270, 4294901760
  %v2689 = vsub.f32 %v270, %v2688
  %v2690 = vand.u32 %v2689, 4294901760
  %2691 = vmatmul.f32.gmra.mxu0 %v2690
  %v2692 = vpop.f32.mrf.mxu0
  %v2693 = vadd.f32 %v2478, %v2692
  %v2694 = vand.u32 %v271, 4294901760
  %v2695 = vsub.f32 %v271, %v2694
  %v2696 = vand.u32 %v2695, 4294901760
  %2697 = vmatmul.f32.gmra.mxu0 %v2696
  %v2698 = vpop.f32.mrf.mxu0
  %v2699 = vadd.f32 %v2483, %v2698
  %v2700 = vand.u32 %v272, 4294901760
  %v2701 = vsub.f32 %v272, %v2700
  %v2702 = vand.u32 %v2701, 4294901760
  %2703 = vmatmul.f32.gmra.mxu0 %v2702
  %v2704 = vpop.f32.mrf.mxu0
  %v2705 = vadd.f32 %v2488, %v2704
  %v2706 = vand.u32 %v273, 4294901760
  %v2707 = vsub.f32 %v273, %v2706
  %v2708 = vand.u32 %v2707, 4294901760
  %2709 = vmatmul.f32.gmra.mxu0 %v2708
  %v2710 = vpop.f32.mrf.mxu0
  %v2711 = vadd.f32 %v2493, %v2710
  %v2712 = vand.u32 %v274, 4294901760
  %v2713 = vsub.f32 %v274, %v2712
  %v2714 = vand.u32 %v2713, 4294901760
  %2715 = vmatmul.f32.gmra.mxu0 %v2714
  %v2716 = vpop.f32.mrf.mxu0
  %v2717 = vadd.f32 %v2498, %v2716
  %v2718 = vand.u32 %v275, 4294901760
  %v2719 = vsub.f32 %v275, %v2718
  %v2720 = vand.u32 %v2719, 4294901760
  %2721 = vmatmul.f32.gmra.mxu0 %v2720
  %v2722 = vpop.f32.mrf.mxu0
  %v2723 = vadd.f32 %v2503, %v2722
  %v2724 = vand.u32 %v276, 4294901760
  %v2725 = vsub.f32 %v276, %v2724
  %v2726 = vand.u32 %v2725, 4294901760
  %2727 = vmatmul.f32.gmra.mxu0 %v2726
  %v2728 = vpop.f32.mrf.mxu0
  %v2729 = vadd.f32 %v2508, %v2728
  %v2730 = vand.u32 %v277, 4294901760
  %v2731 = vsub.f32 %v277, %v2730
  %v2732 = vand.u32 %v2731, 4294901760
  %2733 = vmatmul.f32.gmra.mxu0 %v2732
  %v2734 = vpop.f32.mrf.mxu0
  %v2735 = vadd.f32 %v2513, %v2734
  %v2736 = vand.u32 %v278, 4294901760
  %v2737 = vsub.f32 %v278, %v2736
  %v2738 = vand.u32 %v2737, 4294901760
  %2739 = vmatmul.f32.gmra.mxu0 %v2738
  %v2740 = vpop.f32.mrf.mxu0
  %v2741 = vadd.f32 %v2518, %v2740
  %v2742 = vand.u32 %v279, 4294901760
  %v2743 = vsub.f32 %v279, %v2742
  %v2744 = vand.u32 %v2743, 4294901760
  %2745 = vmatmul.f32.gmra.mxu0 %v2744
  %v2746 = vpop.f32.mrf.mxu0
  %v2747 = vadd.f32 %v2523, %v2746
  %v2748 = vand.u32 %v280, 4294901760
  %v2749 = vsub.f32 %v280, %v2748
  %v2750 = vand.u32 %v2749, 4294901760
  %2751 = vmatmul.f32.gmra.mxu0 %v2750
  %v2752 = vpop.f32.mrf.mxu0
  %v2753 = vadd.f32 %v2528, %v2752
  %2754 = vdwg.mxu0
  %v2755 = vand.u32 %v488, 4294901760
  %v2756 = vsub.f32 %v488, %v2755
  %v2757 = vand.u32 %v2756, 4294901760
  %2758 = vmatpush.msra.mxu0 %v2757
  %v2759 = vand.u32 %v487, 4294901760
  %v2760 = vsub.f32 %v487, %v2759
  %v2761 = vand.u32 %v2760, 4294901760
  %2762 = vmatpush.msra.mxu0 %v2761
  %v2763 = vand.u32 %v486, 4294901760
  %v2764 = vsub.f32 %v486, %v2763
  %v2765 = vand.u32 %v2764, 4294901760
  %2766 = vmatpush.msra.mxu0 %v2765
  %v2767 = vand.u32 %v485, 4294901760
  %v2768 = vsub.f32 %v485, %v2767
  %v2769 = vand.u32 %v2768, 4294901760
  %2770 = vmatpush.msra.mxu0 %v2769
  %v2771 = vand.u32 %v484, 4294901760
  %v2772 = vsub.f32 %v484, %v2771
  %v2773 = vand.u32 %v2772, 4294901760
  %2774 = vmatpush.msra.mxu0 %v2773
  %v2775 = vand.u32 %v483, 4294901760
  %v2776 = vsub.f32 %v483, %v2775
  %v2777 = vand.u32 %v2776, 4294901760
  %2778 = vmatpush.msra.mxu0 %v2777
  %v2779 = vand.u32 %v482, 4294901760
  %v2780 = vsub.f32 %v482, %v2779
  %v2781 = vand.u32 %v2780, 4294901760
  %2782 = vmatpush.msra.mxu0 %v2781
  %v2783 = vand.u32 %v481, 4294901760
  %v2784 = vsub.f32 %v481, %v2783
  %v2785 = vand.u32 %v2784, 4294901760
  %2786 = vmatpush.msra.mxu0 %v2785
  %v2787 = vand.u32 %v480, 4294901760
  %v2788 = vsub.f32 %v480, %v2787
  %v2789 = vand.u32 %v2788, 4294901760
  %2790 = vmatpush.msra.mxu0 %v2789
  %v2791 = vand.u32 %v479, 4294901760
  %v2792 = vsub.f32 %v479, %v2791
  %v2793 = vand.u32 %v2792, 4294901760
  %2794 = vmatpush.msra.mxu0 %v2793
  %v2795 = vand.u32 %v478, 4294901760
  %v2796 = vsub.f32 %v478, %v2795
  %v2797 = vand.u32 %v2796, 4294901760
  %2798 = vmatpush.msra.mxu0 %v2797
  %v2799 = vand.u32 %v477, 4294901760
  %v2800 = vsub.f32 %v477, %v2799
  %v2801 = vand.u32 %v2800, 4294901760
  %2802 = vmatpush.msra.mxu0 %v2801
  %v2803 = vand.u32 %v476, 4294901760
  %v2804 = vsub.f32 %v476, %v2803
  %v2805 = vand.u32 %v2804, 4294901760
  %2806 = vmatpush.msra.mxu0 %v2805
  %v2807 = vand.u32 %v475, 4294901760
  %v2808 = vsub.f32 %v475, %v2807
  %v2809 = vand.u32 %v2808, 4294901760
  %2810 = vmatpush.msra.mxu0 %v2809
  %v2811 = vand.u32 %v474, 4294901760
  %v2812 = vsub.f32 %v474, %v2811
  %v2813 = vand.u32 %v2812, 4294901760
  %2814 = vmatpush.msra.mxu0 %v2813
  %v2815 = vand.u32 %v473, 4294901760
  %v2816 = vsub.f32 %v473, %v2815
  %v2817 = vand.u32 %v2816, 4294901760
  %2818 = vmatpush.msra.mxu0 %v2817
  %v2819 = vand.u32 %v249, 4294901760
  %2820 = vmatmul.f32.gmra.mxu0 %v2819
  %v2821 = vpop.f32.mrf.mxu0
  %v2822 = vadd.f32 %v2567, %v2821
  %v2823 = vand.u32 %v250, 4294901760
  %2824 = vmatmul.f32.gmra.mxu0 %v2823
  %v2825 = vpop.f32.mrf.mxu0
  %v2826 = vadd.f32 %v2573, %v2825
  %v2827 = vand.u32 %v251, 4294901760
  %2828 = vmatmul.f32.gmra.mxu0 %v2827
  %v2829 = vpop.f32.mrf.mxu0
  %v2830 = vadd.f32 %v2579, %v2829
  %v2831 = vand.u32 %v252, 4294901760
  %2832 = vmatmul.f32.gmra.mxu0 %v2831
  %v2833 = vpop.f32.mrf.mxu0
  %v2834 = vadd.f32 %v2585, %v2833
  %v2835 = vand.u32 %v253, 4294901760
  %2836 = vmatmul.f32.gmra.mxu0 %v2835
  %v2837 = vpop.f32.mrf.mxu0
  %v2838 = vadd.f32 %v2591, %v2837
  %v2839 = vand.u32 %v254, 4294901760
  %2840 = vmatmul.f32.gmra.mxu0 %v2839
  %v2841 = vpop.f32.mrf.mxu0
  %v2842 = vadd.f32 %v2597, %v2841
  %v2843 = vand.u32 %v255, 4294901760
  %2844 = vmatmul.f32.gmra.mxu0 %v2843
  %v2845 = vpop.f32.mrf.mxu0
  %v2846 = vadd.f32 %v2603, %v2845
  %v2847 = vand.u32 %v256, 4294901760
  %2848 = vmatmul.f32.gmra.mxu0 %v2847
  %v2849 = vpop.f32.mrf.mxu0
  %v2850 = vadd.f32 %v2609, %v2849
  %v2851 = vand.u32 %v257, 4294901760
  %2852 = vmatmul.f32.gmra.mxu0 %v2851
  %v2853 = vpop.f32.mrf.mxu0
  %v2854 = vadd.f32 %v2615, %v2853
  %v2855 = vand.u32 %v258, 4294901760
  %2856 = vmatmul.f32.gmra.mxu0 %v2855
  %v2857 = vpop.f32.mrf.mxu0
  %v2858 = vadd.f32 %v2621, %v2857
  %v2859 = vand.u32 %v259, 4294901760
  %2860 = vmatmul.f32.gmra.mxu0 %v2859
  %v2861 = vpop.f32.mrf.mxu0
  %v2862 = vadd.f32 %v2627, %v2861
  %v2863 = vand.u32 %v260, 4294901760
  %2864 = vmatmul.f32.gmra.mxu0 %v2863
  %v2865 = vpop.f32.mrf.mxu0
  %v2866 = vadd.f32 %v2633, %v2865
  %v2867 = vand.u32 %v261, 4294901760
  %2868 = vmatmul.f32.gmra.mxu0 %v2867
  %v2869 = vpop.f32.mrf.mxu0
  %v2870 = vadd.f32 %v2639, %v2869
  %v2871 = vand.u32 %v262, 4294901760
  %2872 = vmatmul.f32.gmra.mxu0 %v2871
  %v2873 = vpop.f32.mrf.mxu0
  %v2874 = vadd.f32 %v2645, %v2873
  %v2875 = vand.u32 %v263, 4294901760
  %2876 = vmatmul.f32.gmra.mxu0 %v2875
  %v2877 = vpop.f32.mrf.mxu0
  %v2878 = vadd.f32 %v2651, %v2877
  %v2879 = vand.u32 %v264, 4294901760
  %2880 = vmatmul.f32.gmra.mxu0 %v2879
  %v2881 = vpop.f32.mrf.mxu0
  %v2882 = vadd.f32 %v2657, %v2881
  %v2883 = vand.u32 %v265, 4294901760
  %2884 = vmatmul.f32.gmra.mxu0 %v2883
  %v2885 = vpop.f32.mrf.mxu0
  %v2886 = vadd.f32 %v2663, %v2885
  %v2887 = vand.u32 %v266, 4294901760
  %2888 = vmatmul.f32.gmra.mxu0 %v2887
  %v2889 = vpop.f32.mrf.mxu0
  %v2890 = vadd.f32 %v2669, %v2889
  %v2891 = vand.u32 %v267, 4294901760
  %2892 = vmatmul.f32.gmra.mxu0 %v2891
  %v2893 = vpop.f32.mrf.mxu0
  %v2894 = vadd.f32 %v2675, %v2893
  %v2895 = vand.u32 %v268, 4294901760
  %2896 = vmatmul.f32.gmra.mxu0 %v2895
  %v2897 = vpop.f32.mrf.mxu0
  %v2898 = vadd.f32 %v2681, %v2897
  %v2899 = vand.u32 %v269, 4294901760
  %2900 = vmatmul.f32.gmra.mxu0 %v2899
  %v2901 = vpop.f32.mrf.mxu0
  %v2902 = vadd.f32 %v2687, %v2901
  %v2903 = vand.u32 %v270, 4294901760
  %2904 = vmatmul.f32.gmra.mxu0 %v2903
  %v2905 = vpop.f32.mrf.mxu0
  %v2906 = vadd.f32 %v2693, %v2905
  %v2907 = vand.u32 %v271, 4294901760
  %2908 = vmatmul.f32.gmra.mxu0 %v2907
  %v2909 = vpop.f32.mrf.mxu0
  %v2910 = vadd.f32 %v2699, %v2909
  %v2911 = vand.u32 %v272, 4294901760
  %2912 = vmatmul.f32.gmra.mxu0 %v2911
  %v2913 = vpop.f32.mrf.mxu0
  %v2914 = vadd.f32 %v2705, %v2913
  %v2915 = vand.u32 %v273, 4294901760
  %2916 = vmatmul.f32.gmra.mxu0 %v2915
  %v2917 = vpop.f32.mrf.mxu0
  %v2918 = vadd.f32 %v2711, %v2917
  %v2919 = vand.u32 %v274, 4294901760
  %2920 = vmatmul.f32.gmra.mxu0 %v2919
  %v2921 = vpop.f32.mrf.mxu0
  %v2922 = vadd.f32 %v2717, %v2921
  %v2923 = vand.u32 %v275, 4294901760
  %2924 = vmatmul.f32.gmra.mxu0 %v2923
  %v2925 = vpop.f32.mrf.mxu0
  %v2926 = vadd.f32 %v2723, %v2925
  %v2927 = vand.u32 %v276, 4294901760
  %2928 = vmatmul.f32.gmra.mxu0 %v2927
  %v2929 = vpop.f32.mrf.mxu0
  %v2930 = vadd.f32 %v2729, %v2929
  %v2931 = vand.u32 %v277, 4294901760
  %2932 = vmatmul.f32.gmra.mxu0 %v2931
  %v2933 = vpop.f32.mrf.mxu0
  %v2934 = vadd.f32 %v2735, %v2933
  %v2935 = vand.u32 %v278, 4294901760
  %2936 = vmatmul.f32.gmra.mxu0 %v2935
  %v2937 = vpop.f32.mrf.mxu0
  %v2938 = vadd.f32 %v2741, %v2937
  %v2939 = vand.u32 %v279, 4294901760
  %2940 = vmatmul.f32.gmra.mxu0 %v2939
  %v2941 = vpop.f32.mrf.mxu0
  %v2942 = vadd.f32 %v2747, %v2941
  %v2943 = vand.u32 %v280, 4294901760
  %2944 = vmatmul.f32.gmra.mxu0 %v2943
  %v2945 = vpop.f32.mrf.mxu0
  %v2946 = vadd.f32 %v2753, %v2945
  %2947 = vdwg.mxu0
  %v2948 = vand.u32 %v488, 4294901760
  %2949 = vmatpush.msra.mxu0 %v2948
  %v2950 = vand.u32 %v487, 4294901760
  %2951 = vmatpush.msra.mxu0 %v2950
  %v2952 = vand.u32 %v486, 4294901760
  %2953 = vmatpush.msra.mxu0 %v2952
  %v2954 = vand.u32 %v485, 4294901760
  %2955 = vmatpush.msra.mxu0 %v2954
  %v2956 = vand.u32 %v484, 4294901760
  %2957 = vmatpush.msra.mxu0 %v2956
  %v2958 = vand.u32 %v483, 4294901760
  %2959 = vmatpush.msra.mxu0 %v2958
  %v2960 = vand.u32 %v482, 4294901760
  %2961 = vmatpush.msra.mxu0 %v2960
  %v2962 = vand.u32 %v481, 4294901760
  %2963 = vmatpush.msra.mxu0 %v2962
  %v2964 = vand.u32 %v480, 4294901760
  %2965 = vmatpush.msra.mxu0 %v2964
  %v2966 = vand.u32 %v479, 4294901760
  %2967 = vmatpush.msra.mxu0 %v2966
  %v2968 = vand.u32 %v478, 4294901760
  %2969 = vmatpush.msra.mxu0 %v2968
  %v2970 = vand.u32 %v477, 4294901760
  %2971 = vmatpush.msra.mxu0 %v2970
  %v2972 = vand.u32 %v476, 4294901760
  %2973 = vmatpush.msra.mxu0 %v2972
  %v2974 = vand.u32 %v475, 4294901760
  %2975 = vmatpush.msra.mxu0 %v2974
  %v2976 = vand.u32 %v474, 4294901760
  %2977 = vmatpush.msra.mxu0 %v2976
  %v2978 = vand.u32 %v473, 4294901760
  %2979 = vmatpush.msra.mxu0 %v2978
  %v2980 = vand.u32 %v249, 4294901760
  %2981 = vmatmul.f32.gmra.mxu0 %v2980
  %v2982 = vpop.f32.mrf.mxu0
  %v2983 = vadd.f32 %v2822, %v2982
  %v2984 = vand.u32 %v250, 4294901760
  %2985 = vmatmul.f32.gmra.mxu0 %v2984
  %v2986 = vpop.f32.mrf.mxu0
  %v2987 = vadd.f32 %v2826, %v2986
  %v2988 = vand.u32 %v251, 4294901760
  %2989 = vmatmul.f32.gmra.mxu0 %v2988
  %v2990 = vpop.f32.mrf.mxu0
  %v2991 = vadd.f32 %v2830, %v2990
  %v2992 = vand.u32 %v252, 4294901760
  %2993 = vmatmul.f32.gmra.mxu0 %v2992
  %v2994 = vpop.f32.mrf.mxu0
  %v2995 = vadd.f32 %v2834, %v2994
  %v2996 = vand.u32 %v253, 4294901760
  %2997 = vmatmul.f32.gmra.mxu0 %v2996
  %v2998 = vpop.f32.mrf.mxu0
  %v2999 = vadd.f32 %v2838, %v2998
  %v3000 = vand.u32 %v254, 4294901760
  %3001 = vmatmul.f32.gmra.mxu0 %v3000
  %v3002 = vpop.f32.mrf.mxu0
  %v3003 = vadd.f32 %v2842, %v3002
  %v3004 = vand.u32 %v255, 4294901760
  %3005 = vmatmul.f32.gmra.mxu0 %v3004
  %v3006 = vpop.f32.mrf.mxu0
  %v3007 = vadd.f32 %v2846, %v3006
  %v3008 = vand.u32 %v256, 4294901760
  %3009 = vmatmul.f32.gmra.mxu0 %v3008
  %v3010 = vpop.f32.mrf.mxu0
  %v3011 = vadd.f32 %v2850, %v3010
  %v3012 = vand.u32 %v257, 4294901760
  %3013 = vmatmul.f32.gmra.mxu0 %v3012
  %v3014 = vpop.f32.mrf.mxu0
  %v3015 = vadd.f32 %v2854, %v3014
  %v3016 = vand.u32 %v258, 4294901760
  %3017 = vmatmul.f32.gmra.mxu0 %v3016
  %v3018 = vpop.f32.mrf.mxu0
  %v3019 = vadd.f32 %v2858, %v3018
  %v3020 = vand.u32 %v259, 4294901760
  %3021 = vmatmul.f32.gmra.mxu0 %v3020
  %v3022 = vpop.f32.mrf.mxu0
  %v3023 = vadd.f32 %v2862, %v3022
  %v3024 = vand.u32 %v260, 4294901760
  %3025 = vmatmul.f32.gmra.mxu0 %v3024
  %v3026 = vpop.f32.mrf.mxu0
  %v3027 = vadd.f32 %v2866, %v3026
  %v3028 = vand.u32 %v261, 4294901760
  %3029 = vmatmul.f32.gmra.mxu0 %v3028
  %v3030 = vpop.f32.mrf.mxu0
  %v3031 = vadd.f32 %v2870, %v3030
  %v3032 = vand.u32 %v262, 4294901760
  %3033 = vmatmul.f32.gmra.mxu0 %v3032
  %v3034 = vpop.f32.mrf.mxu0
  %v3035 = vadd.f32 %v2874, %v3034
  %v3036 = vand.u32 %v263, 4294901760
  %3037 = vmatmul.f32.gmra.mxu0 %v3036
  %v3038 = vpop.f32.mrf.mxu0
  %v3039 = vadd.f32 %v2878, %v3038
  %v3040 = vand.u32 %v264, 4294901760
  %3041 = vmatmul.f32.gmra.mxu0 %v3040
  %v3042 = vpop.f32.mrf.mxu0
  %v3043 = vadd.f32 %v2882, %v3042
  %v3044 = vand.u32 %v265, 4294901760
  %3045 = vmatmul.f32.gmra.mxu0 %v3044
  %v3046 = vpop.f32.mrf.mxu0
  %v3047 = vadd.f32 %v2886, %v3046
  %v3048 = vand.u32 %v266, 4294901760
  %3049 = vmatmul.f32.gmra.mxu0 %v3048
  %v3050 = vpop.f32.mrf.mxu0
  %v3051 = vadd.f32 %v2890, %v3050
  %v3052 = vand.u32 %v267, 4294901760
  %3053 = vmatmul.f32.gmra.mxu0 %v3052
  %v3054 = vpop.f32.mrf.mxu0
  %v3055 = vadd.f32 %v2894, %v3054
  %v3056 = vand.u32 %v268, 4294901760
  %3057 = vmatmul.f32.gmra.mxu0 %v3056
  %v3058 = vpop.f32.mrf.mxu0
  %v3059 = vadd.f32 %v2898, %v3058
  %v3060 = vand.u32 %v269, 4294901760
  %3061 = vmatmul.f32.gmra.mxu0 %v3060
  %v3062 = vpop.f32.mrf.mxu0
  %v3063 = vadd.f32 %v2902, %v3062
  %v3064 = vand.u32 %v270, 4294901760
  %3065 = vmatmul.f32.gmra.mxu0 %v3064
  %v3066 = vpop.f32.mrf.mxu0
  %v3067 = vadd.f32 %v2906, %v3066
  %v3068 = vand.u32 %v271, 4294901760
  %3069 = vmatmul.f32.gmra.mxu0 %v3068
  %v3070 = vpop.f32.mrf.mxu0
  %v3071 = vadd.f32 %v2910, %v3070
  %v3072 = vand.u32 %v272, 4294901760
  %3073 = vmatmul.f32.gmra.mxu0 %v3072
  %v3074 = vpop.f32.mrf.mxu0
  %v3075 = vadd.f32 %v2914, %v3074
  %v3076 = vand.u32 %v273, 4294901760
  %3077 = vmatmul.f32.gmra.mxu0 %v3076
  %v3078 = vpop.f32.mrf.mxu0
  %v3079 = vadd.f32 %v2918, %v3078
  %v3080 = vand.u32 %v274, 4294901760
  %3081 = vmatmul.f32.gmra.mxu0 %v3080
  %v3082 = vpop.f32.mrf.mxu0
  %v3083 = vadd.f32 %v2922, %v3082
  %v3084 = vand.u32 %v275, 4294901760
  %3085 = vmatmul.f32.gmra.mxu0 %v3084
  %v3086 = vpop.f32.mrf.mxu0
  %v3087 = vadd.f32 %v2926, %v3086
  %v3088 = vand.u32 %v276, 4294901760
  %3089 = vmatmul.f32.gmra.mxu0 %v3088
  %v3090 = vpop.f32.mrf.mxu0
  %v3091 = vadd.f32 %v2930, %v3090
  %v3092 = vand.u32 %v277, 4294901760
  %3093 = vmatmul.f32.gmra.mxu0 %v3092
  %v3094 = vpop.f32.mrf.mxu0
  %v3095 = vadd.f32 %v2934, %v3094
  %v3096 = vand.u32 %v278, 4294901760
  %3097 = vmatmul.f32.gmra.mxu0 %v3096
  %v3098 = vpop.f32.mrf.mxu0
  %v3099 = vadd.f32 %v2938, %v3098
  %v3100 = vand.u32 %v279, 4294901760
  %3101 = vmatmul.f32.gmra.mxu0 %v3100
  %v3102 = vpop.f32.mrf.mxu0
  %v3103 = vadd.f32 %v2942, %v3102
  %v3104 = vand.u32 %v280, 4294901760
  %3105 = vmatmul.f32.gmra.mxu0 %v3104
  %v3106 = vpop.f32.mrf.mxu0
  %v3107 = vadd.f32 %v2946, %v3106
  %3108 = vdwg.mxu0
  %v3109 = vld [vmem:[%s4] sm:$0xff]
  %v3110 = vld [vmem:[%s4 + $0x8] sm:$0xff]
  %v3111 = vld [vmem:[%s4 + $0x10] sm:$0xff]
  %v3112 = vld [vmem:[%s4 + $0x18] sm:$0xff]
  %v3113 = vld [vmem:[%s4 + $0x20] sm:$0xff]
  %v3114 = vld [vmem:[%s4 + $0x28] sm:$0xff]
  %v3115 = vld [vmem:[%s4 + $0x30] sm:$0xff]
  %v3116 = vld [vmem:[%s4 + $0x38] sm:$0xff]
  %v3117 = vld [vmem:[%s4 + $0x40] sm:$0xff]
  %v3118 = vld [vmem:[%s4 + $0x48] sm:$0xff]
  %v3119 = vld [vmem:[%s4 + $0x50] sm:$0xff]
  %v3120 = vld [vmem:[%s4 + $0x58] sm:$0xff]
  %v3121 = vld [vmem:[%s4 + $0x60] sm:$0xff]
  %v3122 = vld [vmem:[%s4 + $0x68] sm:$0xff]
  %v3123 = vld [vmem:[%s4 + $0x70] sm:$0xff]
  %v3124 = vld [vmem:[%s4 + $0x78] sm:$0xff]
  %v3125 = vld [vmem:[%s5] sm:$0x1]
  %v3127 = vperm.slane %v3125, 0
  %v3129 = vand.u32 %v3124, 4294901760
  %3130 = vmatpush.msra.mxu0 %v3129
  %v3131 = vand.u32 %v3123, 4294901760
  %3132 = vmatpush.msra.mxu0 %v3131
  %v3133 = vand.u32 %v3122, 4294901760
  %3134 = vmatpush.msra.mxu0 %v3133
  %v3135 = vand.u32 %v3121, 4294901760
  %3136 = vmatpush.msra.mxu0 %v3135
  %v3137 = vand.u32 %v3120, 4294901760
  %3138 = vmatpush.msra.mxu0 %v3137
  %v3139 = vand.u32 %v3119, 4294901760
  %3140 = vmatpush.msra.mxu0 %v3139
  %v3141 = vand.u32 %v3118, 4294901760
  %3142 = vmatpush.msra.mxu0 %v3141
  %v3143 = vand.u32 %v3117, 4294901760
  %3144 = vmatpush.msra.mxu0 %v3143
  %v3145 = vand.u32 %v3116, 4294901760
  %3146 = vmatpush.msra.mxu0 %v3145
  %v3147 = vand.u32 %v3115, 4294901760
  %3148 = vmatpush.msra.mxu0 %v3147
  %v3149 = vand.u32 %v3114, 4294901760
  %3150 = vmatpush.msra.mxu0 %v3149
  %v3151 = vand.u32 %v3113, 4294901760
  %3152 = vmatpush.msra.mxu0 %v3151
  %v3153 = vand.u32 %v3112, 4294901760
  %3154 = vmatpush.msra.mxu0 %v3153
  %v3155 = vand.u32 %v3111, 4294901760
  %3156 = vmatpush.msra.mxu0 %v3155
  %v3157 = vand.u32 %v3110, 4294901760
  %3158 = vmatpush.msra.mxu0 %v3157
  %v3159 = vand.u32 %v3109, 4294901760
  %3160 = vmatpush.msra.mxu0 %v3159
  %v3161 = vand.u32 %v2983, 4294901760
  %v3162 = vsub.f32 %v2983, %v3161
  %v3163 = vand.u32 %v3162, 4294901760
  %v3164 = vsub.f32 %v3162, %v3163
  %v3165 = vand.u32 %v3164, 4294901760
  %3166 = vmatmul.f32.gmra.mxu0 %v3165
  %v3167 = vpop.f32.mrf.mxu0
  %v3168 = vadd.f32 %v3127, %v3167
  %v3169 = vand.u32 %v2987, 4294901760
  %v3170 = vsub.f32 %v2987, %v3169
  %v3171 = vand.u32 %v3170, 4294901760
  %v3172 = vsub.f32 %v3170, %v3171
  %v3173 = vand.u32 %v3172, 4294901760
  %3174 = vmatmul.f32.gmra.mxu0 %v3173
  %v3175 = vpop.f32.mrf.mxu0
  %v3176 = vadd.f32 %v3127, %v3175
  %v3177 = vand.u32 %v2991, 4294901760
  %v3178 = vsub.f32 %v2991, %v3177
  %v3179 = vand.u32 %v3178, 4294901760
  %v3180 = vsub.f32 %v3178, %v3179
  %v3181 = vand.u32 %v3180, 4294901760
  %3182 = vmatmul.f32.gmra.mxu0 %v3181
  %v3183 = vpop.f32.mrf.mxu0
  %v3184 = vadd.f32 %v3127, %v3183
  %v3185 = vand.u32 %v2995, 4294901760
  %v3186 = vsub.f32 %v2995, %v3185
  %v3187 = vand.u32 %v3186, 4294901760
  %v3188 = vsub.f32 %v3186, %v3187
  %v3189 = vand.u32 %v3188, 4294901760
  %3190 = vmatmul.f32.gmra.mxu0 %v3189
  %v3191 = vpop.f32.mrf.mxu0
  %v3192 = vadd.f32 %v3127, %v3191
  %v3193 = vand.u32 %v2999, 4294901760
  %v3194 = vsub.f32 %v2999, %v3193
  %v3195 = vand.u32 %v3194, 4294901760
  %v3196 = vsub.f32 %v3194, %v3195
  %v3197 = vand.u32 %v3196, 4294901760
  %3198 = vmatmul.f32.gmra.mxu0 %v3197
  %v3199 = vpop.f32.mrf.mxu0
  %v3200 = vadd.f32 %v3127, %v3199
  %v3201 = vand.u32 %v3003, 4294901760
  %v3202 = vsub.f32 %v3003, %v3201
  %v3203 = vand.u32 %v3202, 4294901760
  %v3204 = vsub.f32 %v3202, %v3203
  %v3205 = vand.u32 %v3204, 4294901760
  %3206 = vmatmul.f32.gmra.mxu0 %v3205
  %v3207 = vpop.f32.mrf.mxu0
  %v3208 = vadd.f32 %v3127, %v3207
  %v3209 = vand.u32 %v3007, 4294901760
  %v3210 = vsub.f32 %v3007, %v3209
  %v3211 = vand.u32 %v3210, 4294901760
  %v3212 = vsub.f32 %v3210, %v3211
  %v3213 = vand.u32 %v3212, 4294901760
  %3214 = vmatmul.f32.gmra.mxu0 %v3213
  %v3215 = vpop.f32.mrf.mxu0
  %v3216 = vadd.f32 %v3127, %v3215
  %v3217 = vand.u32 %v3011, 4294901760
  %v3218 = vsub.f32 %v3011, %v3217
  %v3219 = vand.u32 %v3218, 4294901760
  %v3220 = vsub.f32 %v3218, %v3219
  %v3221 = vand.u32 %v3220, 4294901760
  %3222 = vmatmul.f32.gmra.mxu0 %v3221
  %v3223 = vpop.f32.mrf.mxu0
  %v3224 = vadd.f32 %v3127, %v3223
  %v3225 = vand.u32 %v3015, 4294901760
  %v3226 = vsub.f32 %v3015, %v3225
  %v3227 = vand.u32 %v3226, 4294901760
  %v3228 = vsub.f32 %v3226, %v3227
  %v3229 = vand.u32 %v3228, 4294901760
  %3230 = vmatmul.f32.gmra.mxu0 %v3229
  %v3231 = vpop.f32.mrf.mxu0
  %v3232 = vadd.f32 %v3127, %v3231
  %v3233 = vand.u32 %v3019, 4294901760
  %v3234 = vsub.f32 %v3019, %v3233
  %v3235 = vand.u32 %v3234, 4294901760
  %v3236 = vsub.f32 %v3234, %v3235
  %v3237 = vand.u32 %v3236, 4294901760
  %3238 = vmatmul.f32.gmra.mxu0 %v3237
  %v3239 = vpop.f32.mrf.mxu0
  %v3240 = vadd.f32 %v3127, %v3239
  %v3241 = vand.u32 %v3023, 4294901760
  %v3242 = vsub.f32 %v3023, %v3241
  %v3243 = vand.u32 %v3242, 4294901760
  %v3244 = vsub.f32 %v3242, %v3243
  %v3245 = vand.u32 %v3244, 4294901760
  %3246 = vmatmul.f32.gmra.mxu0 %v3245
  %v3247 = vpop.f32.mrf.mxu0
  %v3248 = vadd.f32 %v3127, %v3247
  %v3249 = vand.u32 %v3027, 4294901760
  %v3250 = vsub.f32 %v3027, %v3249
  %v3251 = vand.u32 %v3250, 4294901760
  %v3252 = vsub.f32 %v3250, %v3251
  %v3253 = vand.u32 %v3252, 4294901760
  %3254 = vmatmul.f32.gmra.mxu0 %v3253
  %v3255 = vpop.f32.mrf.mxu0
  %v3256 = vadd.f32 %v3127, %v3255
  %v3257 = vand.u32 %v3031, 4294901760
  %v3258 = vsub.f32 %v3031, %v3257
  %v3259 = vand.u32 %v3258, 4294901760
  %v3260 = vsub.f32 %v3258, %v3259
  %v3261 = vand.u32 %v3260, 4294901760
  %3262 = vmatmul.f32.gmra.mxu0 %v3261
  %v3263 = vpop.f32.mrf.mxu0
  %v3264 = vadd.f32 %v3127, %v3263
  %v3265 = vand.u32 %v3035, 4294901760
  %v3266 = vsub.f32 %v3035, %v3265
  %v3267 = vand.u32 %v3266, 4294901760
  %v3268 = vsub.f32 %v3266, %v3267
  %v3269 = vand.u32 %v3268, 4294901760
  %3270 = vmatmul.f32.gmra.mxu0 %v3269
  %v3271 = vpop.f32.mrf.mxu0
  %v3272 = vadd.f32 %v3127, %v3271
  %v3273 = vand.u32 %v3039, 4294901760
  %v3274 = vsub.f32 %v3039, %v3273
  %v3275 = vand.u32 %v3274, 4294901760
  %v3276 = vsub.f32 %v3274, %v3275
  %v3277 = vand.u32 %v3276, 4294901760
  %3278 = vmatmul.f32.gmra.mxu0 %v3277
  %v3279 = vpop.f32.mrf.mxu0
  %v3280 = vadd.f32 %v3127, %v3279
  %v3281 = vand.u32 %v3043, 4294901760
  %v3282 = vsub.f32 %v3043, %v3281
  %v3283 = vand.u32 %v3282, 4294901760
  %v3284 = vsub.f32 %v3282, %v3283
  %v3285 = vand.u32 %v3284, 4294901760
  %3286 = vmatmul.f32.gmra.mxu0 %v3285
  %v3287 = vpop.f32.mrf.mxu0
  %v3288 = vadd.f32 %v3127, %v3287
  %v3289 = vand.u32 %v3047, 4294901760
  %v3290 = vsub.f32 %v3047, %v3289
  %v3291 = vand.u32 %v3290, 4294901760
  %v3292 = vsub.f32 %v3290, %v3291
  %v3293 = vand.u32 %v3292, 4294901760
  %3294 = vmatmul.f32.gmra.mxu0 %v3293
  %v3295 = vpop.f32.mrf.mxu0
  %v3296 = vadd.f32 %v3127, %v3295
  %v3297 = vand.u32 %v3051, 4294901760
  %v3298 = vsub.f32 %v3051, %v3297
  %v3299 = vand.u32 %v3298, 4294901760
  %v3300 = vsub.f32 %v3298, %v3299
  %v3301 = vand.u32 %v3300, 4294901760
  %3302 = vmatmul.f32.gmra.mxu0 %v3301
  %v3303 = vpop.f32.mrf.mxu0
  %v3304 = vadd.f32 %v3127, %v3303
  %v3305 = vand.u32 %v3055, 4294901760
  %v3306 = vsub.f32 %v3055, %v3305
  %v3307 = vand.u32 %v3306, 4294901760
  %v3308 = vsub.f32 %v3306, %v3307
  %v3309 = vand.u32 %v3308, 4294901760
  %3310 = vmatmul.f32.gmra.mxu0 %v3309
  %v3311 = vpop.f32.mrf.mxu0
  %v3312 = vadd.f32 %v3127, %v3311
  %v3313 = vand.u32 %v3059, 4294901760
  %v3314 = vsub.f32 %v3059, %v3313
  %v3315 = vand.u32 %v3314, 4294901760
  %v3316 = vsub.f32 %v3314, %v3315
  %v3317 = vand.u32 %v3316, 4294901760
  %3318 = vmatmul.f32.gmra.mxu0 %v3317
  %v3319 = vpop.f32.mrf.mxu0
  %v3320 = vadd.f32 %v3127, %v3319
  %v3321 = vand.u32 %v3063, 4294901760
  %v3322 = vsub.f32 %v3063, %v3321
  %v3323 = vand.u32 %v3322, 4294901760
  %v3324 = vsub.f32 %v3322, %v3323
  %v3325 = vand.u32 %v3324, 4294901760
  %3326 = vmatmul.f32.gmra.mxu0 %v3325
  %v3327 = vpop.f32.mrf.mxu0
  %v3328 = vadd.f32 %v3127, %v3327
  %v3329 = vand.u32 %v3067, 4294901760
  %v3330 = vsub.f32 %v3067, %v3329
  %v3331 = vand.u32 %v3330, 4294901760
  %v3332 = vsub.f32 %v3330, %v3331
  %v3333 = vand.u32 %v3332, 4294901760
  %3334 = vmatmul.f32.gmra.mxu0 %v3333
  %v3335 = vpop.f32.mrf.mxu0
  %v3336 = vadd.f32 %v3127, %v3335
  %v3337 = vand.u32 %v3071, 4294901760
  %v3338 = vsub.f32 %v3071, %v3337
  %v3339 = vand.u32 %v3338, 4294901760
  %v3340 = vsub.f32 %v3338, %v3339
  %v3341 = vand.u32 %v3340, 4294901760
  %3342 = vmatmul.f32.gmra.mxu0 %v3341
  %v3343 = vpop.f32.mrf.mxu0
  %v3344 = vadd.f32 %v3127, %v3343
  %v3345 = vand.u32 %v3075, 4294901760
  %v3346 = vsub.f32 %v3075, %v3345
  %v3347 = vand.u32 %v3346, 4294901760
  %v3348 = vsub.f32 %v3346, %v3347
  %v3349 = vand.u32 %v3348, 4294901760
  %3350 = vmatmul.f32.gmra.mxu0 %v3349
  %v3351 = vpop.f32.mrf.mxu0
  %v3352 = vadd.f32 %v3127, %v3351
  %v3353 = vand.u32 %v3079, 4294901760
  %v3354 = vsub.f32 %v3079, %v3353
  %v3355 = vand.u32 %v3354, 4294901760
  %v3356 = vsub.f32 %v3354, %v3355
  %v3357 = vand.u32 %v3356, 4294901760
  %3358 = vmatmul.f32.gmra.mxu0 %v3357
  %v3359 = vpop.f32.mrf.mxu0
  %v3360 = vadd.f32 %v3127, %v3359
  %v3361 = vand.u32 %v3083, 4294901760
  %v3362 = vsub.f32 %v3083, %v3361
  %v3363 = vand.u32 %v3362, 4294901760
  %v3364 = vsub.f32 %v3362, %v3363
  %v3365 = vand.u32 %v3364, 4294901760
  %3366 = vmatmul.f32.gmra.mxu0 %v3365
  %v3367 = vpop.f32.mrf.mxu0
  %v3368 = vadd.f32 %v3127, %v3367
  %v3369 = vand.u32 %v3087, 4294901760
  %v3370 = vsub.f32 %v3087, %v3369
  %v3371 = vand.u32 %v3370, 4294901760
  %v3372 = vsub.f32 %v3370, %v3371
  %v3373 = vand.u32 %v3372, 4294901760
  %3374 = vmatmul.f32.gmra.mxu0 %v3373
  %v3375 = vpop.f32.mrf.mxu0
  %v3376 = vadd.f32 %v3127, %v3375
  %v3377 = vand.u32 %v3091, 4294901760
  %v3378 = vsub.f32 %v3091, %v3377
  %v3379 = vand.u32 %v3378, 4294901760
  %v3380 = vsub.f32 %v3378, %v3379
  %v3381 = vand.u32 %v3380, 4294901760
  %3382 = vmatmul.f32.gmra.mxu0 %v3381
  %v3383 = vpop.f32.mrf.mxu0
  %v3384 = vadd.f32 %v3127, %v3383
  %v3385 = vand.u32 %v3095, 4294901760
  %v3386 = vsub.f32 %v3095, %v3385
  %v3387 = vand.u32 %v3386, 4294901760
  %v3388 = vsub.f32 %v3386, %v3387
  %v3389 = vand.u32 %v3388, 4294901760
  %3390 = vmatmul.f32.gmra.mxu0 %v3389
  %v3391 = vpop.f32.mrf.mxu0
  %v3392 = vadd.f32 %v3127, %v3391
  %v3393 = vand.u32 %v3099, 4294901760
  %v3394 = vsub.f32 %v3099, %v3393
  %v3395 = vand.u32 %v3394, 4294901760
  %v3396 = vsub.f32 %v3394, %v3395
  %v3397 = vand.u32 %v3396, 4294901760
  %3398 = vmatmul.f32.gmra.mxu0 %v3397
  %v3399 = vpop.f32.mrf.mxu0
  %v3400 = vadd.f32 %v3127, %v3399
  %v3401 = vand.u32 %v3103, 4294901760
  %v3402 = vsub.f32 %v3103, %v3401
  %v3403 = vand.u32 %v3402, 4294901760
  %v3404 = vsub.f32 %v3402, %v3403
  %v3405 = vand.u32 %v3404, 4294901760
  %3406 = vmatmul.f32.gmra.mxu0 %v3405
  %v3407 = vpop.f32.mrf.mxu0
  %v3408 = vadd.f32 %v3127, %v3407
  %v3409 = vand.u32 %v3107, 4294901760
  %v3410 = vsub.f32 %v3107, %v3409
  %v3411 = vand.u32 %v3410, 4294901760
  %v3412 = vsub.f32 %v3410, %v3411
  %v3413 = vand.u32 %v3412, 4294901760
  %3414 = vmatmul.f32.gmra.mxu0 %v3413
  %v3415 = vpop.f32.mrf.mxu0
  %v3416 = vadd.f32 %v3127, %v3415
  %3417 = vdwg.mxu0
  %v3418 = vand.u32 %v3124, 4294901760
  %v3419 = vsub.f32 %v3124, %v3418
  %v3420 = vand.u32 %v3419, 4294901760
  %v3421 = vsub.f32 %v3419, %v3420
  %v3422 = vand.u32 %v3421, 4294901760
  %3423 = vmatpush.msra.mxu0 %v3422
  %v3424 = vand.u32 %v3123, 4294901760
  %v3425 = vsub.f32 %v3123, %v3424
  %v3426 = vand.u32 %v3425, 4294901760
  %v3427 = vsub.f32 %v3425, %v3426
  %v3428 = vand.u32 %v3427, 4294901760
  %3429 = vmatpush.msra.mxu0 %v3428
  %v3430 = vand.u32 %v3122, 4294901760
  %v3431 = vsub.f32 %v3122, %v3430
  %v3432 = vand.u32 %v3431, 4294901760
  %v3433 = vsub.f32 %v3431, %v3432
  %v3434 = vand.u32 %v3433, 4294901760
  %3435 = vmatpush.msra.mxu0 %v3434
  %v3436 = vand.u32 %v3121, 4294901760
  %v3437 = vsub.f32 %v3121, %v3436
  %v3438 = vand.u32 %v3437, 4294901760
  %v3439 = vsub.f32 %v3437, %v3438
  %v3440 = vand.u32 %v3439, 4294901760
  %3441 = vmatpush.msra.mxu0 %v3440
  %v3442 = vand.u32 %v3120, 4294901760
  %v3443 = vsub.f32 %v3120, %v3442
  %v3444 = vand.u32 %v3443, 4294901760
  %v3445 = vsub.f32 %v3443, %v3444
  %v3446 = vand.u32 %v3445, 4294901760
  %3447 = vmatpush.msra.mxu0 %v3446
  %v3448 = vand.u32 %v3119, 4294901760
  %v3449 = vsub.f32 %v3119, %v3448
  %v3450 = vand.u32 %v3449, 4294901760
  %v3451 = vsub.f32 %v3449, %v3450
  %v3452 = vand.u32 %v3451, 4294901760
  %3453 = vmatpush.msra.mxu0 %v3452
  %v3454 = vand.u32 %v3118, 4294901760
  %v3455 = vsub.f32 %v3118, %v3454
  %v3456 = vand.u32 %v3455, 4294901760
  %v3457 = vsub.f32 %v3455, %v3456
  %v3458 = vand.u32 %v3457, 4294901760
  %3459 = vmatpush.msra.mxu0 %v3458
  %v3460 = vand.u32 %v3117, 4294901760
  %v3461 = vsub.f32 %v3117, %v3460
  %v3462 = vand.u32 %v3461, 4294901760
  %v3463 = vsub.f32 %v3461, %v3462
  %v3464 = vand.u32 %v3463, 4294901760
  %3465 = vmatpush.msra.mxu0 %v3464
  %v3466 = vand.u32 %v3116, 4294901760
  %v3467 = vsub.f32 %v3116, %v3466
  %v3468 = vand.u32 %v3467, 4294901760
  %v3469 = vsub.f32 %v3467, %v3468
  %v3470 = vand.u32 %v3469, 4294901760
  %3471 = vmatpush.msra.mxu0 %v3470
  %v3472 = vand.u32 %v3115, 4294901760
  %v3473 = vsub.f32 %v3115, %v3472
  %v3474 = vand.u32 %v3473, 4294901760
  %v3475 = vsub.f32 %v3473, %v3474
  %v3476 = vand.u32 %v3475, 4294901760
  %3477 = vmatpush.msra.mxu0 %v3476
  %v3478 = vand.u32 %v3114, 4294901760
  %v3479 = vsub.f32 %v3114, %v3478
  %v3480 = vand.u32 %v3479, 4294901760
  %v3481 = vsub.f32 %v3479, %v3480
  %v3482 = vand.u32 %v3481, 4294901760
  %3483 = vmatpush.msra.mxu0 %v3482
  %v3484 = vand.u32 %v3113, 4294901760
  %v3485 = vsub.f32 %v3113, %v3484
  %v3486 = vand.u32 %v3485, 4294901760
  %v3487 = vsub.f32 %v3485, %v3486
  %v3488 = vand.u32 %v3487, 4294901760
  %3489 = vmatpush.msra.mxu0 %v3488
  %v3490 = vand.u32 %v3112, 4294901760
  %v3491 = vsub.f32 %v3112, %v3490
  %v3492 = vand.u32 %v3491, 4294901760
  %v3493 = vsub.f32 %v3491, %v3492
  %v3494 = vand.u32 %v3493, 4294901760
  %3495 = vmatpush.msra.mxu0 %v3494
  %v3496 = vand.u32 %v3111, 4294901760
  %v3497 = vsub.f32 %v3111, %v3496
  %v3498 = vand.u32 %v3497, 4294901760
  %v3499 = vsub.f32 %v3497, %v3498
  %v3500 = vand.u32 %v3499, 4294901760
  %3501 = vmatpush.msra.mxu0 %v3500
  %v3502 = vand.u32 %v3110, 4294901760
  %v3503 = vsub.f32 %v3110, %v3502
  %v3504 = vand.u32 %v3503, 4294901760
  %v3505 = vsub.f32 %v3503, %v3504
  %v3506 = vand.u32 %v3505, 4294901760
  %3507 = vmatpush.msra.mxu0 %v3506
  %v3508 = vand.u32 %v3109, 4294901760
  %v3509 = vsub.f32 %v3109, %v3508
  %v3510 = vand.u32 %v3509, 4294901760
  %v3511 = vsub.f32 %v3509, %v3510
  %v3512 = vand.u32 %v3511, 4294901760
  %3513 = vmatpush.msra.mxu0 %v3512
  %v3514 = vand.u32 %v2983, 4294901760
  %3515 = vmatmul.f32.gmra.mxu0 %v3514
  %v3516 = vpop.f32.mrf.mxu0
  %v3517 = vadd.f32 %v3168, %v3516
  %v3518 = vand.u32 %v2987, 4294901760
  %3519 = vmatmul.f32.gmra.mxu0 %v3518
  %v3520 = vpop.f32.mrf.mxu0
  %v3521 = vadd.f32 %v3176, %v3520
  %v3522 = vand.u32 %v2991, 4294901760
  %3523 = vmatmul.f32.gmra.mxu0 %v3522
  %v3524 = vpop.f32.mrf.mxu0
  %v3525 = vadd.f32 %v3184, %v3524
  %v3526 = vand.u32 %v2995, 4294901760
  %3527 = vmatmul.f32.gmra.mxu0 %v3526
  %v3528 = vpop.f32.mrf.mxu0
  %v3529 = vadd.f32 %v3192, %v3528
  %v3530 = vand.u32 %v2999, 4294901760
  %3531 = vmatmul.f32.gmra.mxu0 %v3530
  %v3532 = vpop.f32.mrf.mxu0
  %v3533 = vadd.f32 %v3200, %v3532
  %v3534 = vand.u32 %v3003, 4294901760
  %3535 = vmatmul.f32.gmra.mxu0 %v3534
  %v3536 = vpop.f32.mrf.mxu0
  %v3537 = vadd.f32 %v3208, %v3536
  %v3538 = vand.u32 %v3007, 4294901760
  %3539 = vmatmul.f32.gmra.mxu0 %v3538
  %v3540 = vpop.f32.mrf.mxu0
  %v3541 = vadd.f32 %v3216, %v3540
  %v3542 = vand.u32 %v3011, 4294901760
  %3543 = vmatmul.f32.gmra.mxu0 %v3542
  %v3544 = vpop.f32.mrf.mxu0
  %v3545 = vadd.f32 %v3224, %v3544
  %v3546 = vand.u32 %v3015, 4294901760
  %3547 = vmatmul.f32.gmra.mxu0 %v3546
  %v3548 = vpop.f32.mrf.mxu0
  %v3549 = vadd.f32 %v3232, %v3548
  %v3550 = vand.u32 %v3019, 4294901760
  %3551 = vmatmul.f32.gmra.mxu0 %v3550
  %v3552 = vpop.f32.mrf.mxu0
  %v3553 = vadd.f32 %v3240, %v3552
  %v3554 = vand.u32 %v3023, 4294901760
  %3555 = vmatmul.f32.gmra.mxu0 %v3554
  %v3556 = vpop.f32.mrf.mxu0
  %v3557 = vadd.f32 %v3248, %v3556
  %v3558 = vand.u32 %v3027, 4294901760
  %3559 = vmatmul.f32.gmra.mxu0 %v3558
  %v3560 = vpop.f32.mrf.mxu0
  %v3561 = vadd.f32 %v3256, %v3560
  %v3562 = vand.u32 %v3031, 4294901760
  %3563 = vmatmul.f32.gmra.mxu0 %v3562
  %v3564 = vpop.f32.mrf.mxu0
  %v3565 = vadd.f32 %v3264, %v3564
  %v3566 = vand.u32 %v3035, 4294901760
  %3567 = vmatmul.f32.gmra.mxu0 %v3566
  %v3568 = vpop.f32.mrf.mxu0
  %v3569 = vadd.f32 %v3272, %v3568
  %v3570 = vand.u32 %v3039, 4294901760
  %3571 = vmatmul.f32.gmra.mxu0 %v3570
  %v3572 = vpop.f32.mrf.mxu0
  %v3573 = vadd.f32 %v3280, %v3572
  %v3574 = vand.u32 %v3043, 4294901760
  %3575 = vmatmul.f32.gmra.mxu0 %v3574
  %v3576 = vpop.f32.mrf.mxu0
  %v3577 = vadd.f32 %v3288, %v3576
  %v3578 = vand.u32 %v3047, 4294901760
  %3579 = vmatmul.f32.gmra.mxu0 %v3578
  %v3580 = vpop.f32.mrf.mxu0
  %v3581 = vadd.f32 %v3296, %v3580
  %v3582 = vand.u32 %v3051, 4294901760
  %3583 = vmatmul.f32.gmra.mxu0 %v3582
  %v3584 = vpop.f32.mrf.mxu0
  %v3585 = vadd.f32 %v3304, %v3584
  %v3586 = vand.u32 %v3055, 4294901760
  %3587 = vmatmul.f32.gmra.mxu0 %v3586
  %v3588 = vpop.f32.mrf.mxu0
  %v3589 = vadd.f32 %v3312, %v3588
  %v3590 = vand.u32 %v3059, 4294901760
  %3591 = vmatmul.f32.gmra.mxu0 %v3590
  %v3592 = vpop.f32.mrf.mxu0
  %v3593 = vadd.f32 %v3320, %v3592
  %v3594 = vand.u32 %v3063, 4294901760
  %3595 = vmatmul.f32.gmra.mxu0 %v3594
  %v3596 = vpop.f32.mrf.mxu0
  %v3597 = vadd.f32 %v3328, %v3596
  %v3598 = vand.u32 %v3067, 4294901760
  %3599 = vmatmul.f32.gmra.mxu0 %v3598
  %v3600 = vpop.f32.mrf.mxu0
  %v3601 = vadd.f32 %v3336, %v3600
  %v3602 = vand.u32 %v3071, 4294901760
  %3603 = vmatmul.f32.gmra.mxu0 %v3602
  %v3604 = vpop.f32.mrf.mxu0
  %v3605 = vadd.f32 %v3344, %v3604
  %v3606 = vand.u32 %v3075, 4294901760
  %3607 = vmatmul.f32.gmra.mxu0 %v3606
  %v3608 = vpop.f32.mrf.mxu0
  %v3609 = vadd.f32 %v3352, %v3608
  %v3610 = vand.u32 %v3079, 4294901760
  %3611 = vmatmul.f32.gmra.mxu0 %v3610
  %v3612 = vpop.f32.mrf.mxu0
  %v3613 = vadd.f32 %v3360, %v3612
  %v3614 = vand.u32 %v3083, 4294901760
  %3615 = vmatmul.f32.gmra.mxu0 %v3614
  %v3616 = vpop.f32.mrf.mxu0
  %v3617 = vadd.f32 %v3368, %v3616
  %v3618 = vand.u32 %v3087, 4294901760
  %3619 = vmatmul.f32.gmra.mxu0 %v3618
  %v3620 = vpop.f32.mrf.mxu0
  %v3621 = vadd.f32 %v3376, %v3620
  %v3622 = vand.u32 %v3091, 4294901760
  %3623 = vmatmul.f32.gmra.mxu0 %v3622
  %v3624 = vpop.f32.mrf.mxu0
  %v3625 = vadd.f32 %v3384, %v3624
  %v3626 = vand.u32 %v3095, 4294901760
  %3627 = vmatmul.f32.gmra.mxu0 %v3626
  %v3628 = vpop.f32.mrf.mxu0
  %v3629 = vadd.f32 %v3392, %v3628
  %v3630 = vand.u32 %v3099, 4294901760
  %3631 = vmatmul.f32.gmra.mxu0 %v3630
  %v3632 = vpop.f32.mrf.mxu0
  %v3633 = vadd.f32 %v3400, %v3632
  %v3634 = vand.u32 %v3103, 4294901760
  %3635 = vmatmul.f32.gmra.mxu0 %v3634
  %v3636 = vpop.f32.mrf.mxu0
  %v3637 = vadd.f32 %v3408, %v3636
  %v3638 = vand.u32 %v3107, 4294901760
  %3639 = vmatmul.f32.gmra.mxu0 %v3638
  %v3640 = vpop.f32.mrf.mxu0
  %v3641 = vadd.f32 %v3416, %v3640
  %3642 = vdwg.mxu0
  %v3643 = vand.u32 %v3124, 4294901760
  %v3644 = vsub.f32 %v3124, %v3643
  %3645 = vmatpush.msra.mxu0 %v3644
  %v3646 = vand.u32 %v3123, 4294901760
  %v3647 = vsub.f32 %v3123, %v3646
  %3648 = vmatpush.msra.mxu0 %v3647
  %v3649 = vand.u32 %v3122, 4294901760
  %v3650 = vsub.f32 %v3122, %v3649
  %3651 = vmatpush.msra.mxu0 %v3650
  %v3652 = vand.u32 %v3121, 4294901760
  %v3653 = vsub.f32 %v3121, %v3652
  %3654 = vmatpush.msra.mxu0 %v3653
  %v3655 = vand.u32 %v3120, 4294901760
  %v3656 = vsub.f32 %v3120, %v3655
  %3657 = vmatpush.msra.mxu0 %v3656
  %v3658 = vand.u32 %v3119, 4294901760
  %v3659 = vsub.f32 %v3119, %v3658
  %3660 = vmatpush.msra.mxu0 %v3659
  %v3661 = vand.u32 %v3118, 4294901760
  %v3662 = vsub.f32 %v3118, %v3661
  %3663 = vmatpush.msra.mxu0 %v3662
  %v3664 = vand.u32 %v3117, 4294901760
  %v3665 = vsub.f32 %v3117, %v3664
  %3666 = vmatpush.msra.mxu0 %v3665
  %v3667 = vand.u32 %v3116, 4294901760
  %v3668 = vsub.f32 %v3116, %v3667
  %3669 = vmatpush.msra.mxu0 %v3668
  %v3670 = vand.u32 %v3115, 4294901760
  %v3671 = vsub.f32 %v3115, %v3670
  %3672 = vmatpush.msra.mxu0 %v3671
  %v3673 = vand.u32 %v3114, 4294901760
  %v3674 = vsub.f32 %v3114, %v3673
  %3675 = vmatpush.msra.mxu0 %v3674
  %v3676 = vand.u32 %v3113, 4294901760
  %v3677 = vsub.f32 %v3113, %v3676
  %3678 = vmatpush.msra.mxu0 %v3677
  %v3679 = vand.u32 %v3112, 4294901760
  %v3680 = vsub.f32 %v3112, %v3679
  %3681 = vmatpush.msra.mxu0 %v3680
  %v3682 = vand.u32 %v3111, 4294901760
  %v3683 = vsub.f32 %v3111, %v3682
  %3684 = vmatpush.msra.mxu0 %v3683
  %v3685 = vand.u32 %v3110, 4294901760
  %v3686 = vsub.f32 %v3110, %v3685
  %3687 = vmatpush.msra.mxu0 %v3686
  %v3688 = vand.u32 %v3109, 4294901760
  %v3689 = vsub.f32 %v3109, %v3688
  %3690 = vmatpush.msra.mxu0 %v3689
  %v3691 = vand.u32 %v2983, 4294901760
  %v3692 = vsub.f32 %v2983, %v3691
  %3693 = vmatmul.f32.gmra.mxu0 %v3692
  %v3694 = vpop.f32.mrf.mxu0
  %v3695 = vadd.f32 %v3517, %v3694
  %v3696 = vand.u32 %v2987, 4294901760
  %v3697 = vsub.f32 %v2987, %v3696
  %3698 = vmatmul.f32.gmra.mxu0 %v3697
  %v3699 = vpop.f32.mrf.mxu0
  %v3700 = vadd.f32 %v3521, %v3699
  %v3701 = vand.u32 %v2991, 4294901760
  %v3702 = vsub.f32 %v2991, %v3701
  %3703 = vmatmul.f32.gmra.mxu0 %v3702
  %v3704 = vpop.f32.mrf.mxu0
  %v3705 = vadd.f32 %v3525, %v3704
  %v3706 = vand.u32 %v2995, 4294901760
  %v3707 = vsub.f32 %v2995, %v3706
  %3708 = vmatmul.f32.gmra.mxu0 %v3707
  %v3709 = vpop.f32.mrf.mxu0
  %v3710 = vadd.f32 %v3529, %v3709
  %v3711 = vand.u32 %v2999, 4294901760
  %v3712 = vsub.f32 %v2999, %v3711
  %3713 = vmatmul.f32.gmra.mxu0 %v3712
  %v3714 = vpop.f32.mrf.mxu0
  %v3715 = vadd.f32 %v3533, %v3714
  %v3716 = vand.u32 %v3003, 4294901760
  %v3717 = vsub.f32 %v3003, %v3716
  %3718 = vmatmul.f32.gmra.mxu0 %v3717
  %v3719 = vpop.f32.mrf.mxu0
  %v3720 = vadd.f32 %v3537, %v3719
  %v3721 = vand.u32 %v3007, 4294901760
  %v3722 = vsub.f32 %v3007, %v3721
  %3723 = vmatmul.f32.gmra.mxu0 %v3722
  %v3724 = vpop.f32.mrf.mxu0
  %v3725 = vadd.f32 %v3541, %v3724
  %v3726 = vand.u32 %v3011, 4294901760
  %v3727 = vsub.f32 %v3011, %v3726
  %3728 = vmatmul.f32.gmra.mxu0 %v3727
  %v3729 = vpop.f32.mrf.mxu0
  %v3730 = vadd.f32 %v3545, %v3729
  %v3731 = vand.u32 %v3015, 4294901760
  %v3732 = vsub.f32 %v3015, %v3731
  %3733 = vmatmul.f32.gmra.mxu0 %v3732
  %v3734 = vpop.f32.mrf.mxu0
  %v3735 = vadd.f32 %v3549, %v3734
  %v3736 = vand.u32 %v3019, 4294901760
  %v3737 = vsub.f32 %v3019, %v3736
  %3738 = vmatmul.f32.gmra.mxu0 %v3737
  %v3739 = vpop.f32.mrf.mxu0
  %v3740 = vadd.f32 %v3553, %v3739
  %v3741 = vand.u32 %v3023, 4294901760
  %v3742 = vsub.f32 %v3023, %v3741
  %3743 = vmatmul.f32.gmra.mxu0 %v3742
  %v3744 = vpop.f32.mrf.mxu0
  %v3745 = vadd.f32 %v3557, %v3744
  %v3746 = vand.u32 %v3027, 4294901760
  %v3747 = vsub.f32 %v3027, %v3746
  %3748 = vmatmul.f32.gmra.mxu0 %v3747
  %v3749 = vpop.f32.mrf.mxu0
  %v3750 = vadd.f32 %v3561, %v3749
  %v3751 = vand.u32 %v3031, 4294901760
  %v3752 = vsub.f32 %v3031, %v3751
  %3753 = vmatmul.f32.gmra.mxu0 %v3752
  %v3754 = vpop.f32.mrf.mxu0
  %v3755 = vadd.f32 %v3565, %v3754
  %v3756 = vand.u32 %v3035, 4294901760
  %v3757 = vsub.f32 %v3035, %v3756
  %3758 = vmatmul.f32.gmra.mxu0 %v3757
  %v3759 = vpop.f32.mrf.mxu0
  %v3760 = vadd.f32 %v3569, %v3759
  %v3761 = vand.u32 %v3039, 4294901760
  %v3762 = vsub.f32 %v3039, %v3761
  %3763 = vmatmul.f32.gmra.mxu0 %v3762
  %v3764 = vpop.f32.mrf.mxu0
  %v3765 = vadd.f32 %v3573, %v3764
  %v3766 = vand.u32 %v3043, 4294901760
  %v3767 = vsub.f32 %v3043, %v3766
  %3768 = vmatmul.f32.gmra.mxu0 %v3767
  %v3769 = vpop.f32.mrf.mxu0
  %v3770 = vadd.f32 %v3577, %v3769
  %v3771 = vand.u32 %v3047, 4294901760
  %v3772 = vsub.f32 %v3047, %v3771
  %3773 = vmatmul.f32.gmra.mxu0 %v3772
  %v3774 = vpop.f32.mrf.mxu0
  %v3775 = vadd.f32 %v3581, %v3774
  %v3776 = vand.u32 %v3051, 4294901760
  %v3777 = vsub.f32 %v3051, %v3776
  %3778 = vmatmul.f32.gmra.mxu0 %v3777
  %v3779 = vpop.f32.mrf.mxu0
  %v3780 = vadd.f32 %v3585, %v3779
  %v3781 = vand.u32 %v3055, 4294901760
  %v3782 = vsub.f32 %v3055, %v3781
  %3783 = vmatmul.f32.gmra.mxu0 %v3782
  %v3784 = vpop.f32.mrf.mxu0
  %v3785 = vadd.f32 %v3589, %v3784
  %v3786 = vand.u32 %v3059, 4294901760
  %v3787 = vsub.f32 %v3059, %v3786
  %3788 = vmatmul.f32.gmra.mxu0 %v3787
  %v3789 = vpop.f32.mrf.mxu0
  %v3790 = vadd.f32 %v3593, %v3789
  %v3791 = vand.u32 %v3063, 4294901760
  %v3792 = vsub.f32 %v3063, %v3791
  %3793 = vmatmul.f32.gmra.mxu0 %v3792
  %v3794 = vpop.f32.mrf.mxu0
  %v3795 = vadd.f32 %v3597, %v3794
  %v3796 = vand.u32 %v3067, 4294901760
  %v3797 = vsub.f32 %v3067, %v3796
  %3798 = vmatmul.f32.gmra.mxu0 %v3797
  %v3799 = vpop.f32.mrf.mxu0
  %v3800 = vadd.f32 %v3601, %v3799
  %v3801 = vand.u32 %v3071, 4294901760
  %v3802 = vsub.f32 %v3071, %v3801
  %3803 = vmatmul.f32.gmra.mxu0 %v3802
  %v3804 = vpop.f32.mrf.mxu0
  %v3805 = vadd.f32 %v3605, %v3804
  %v3806 = vand.u32 %v3075, 4294901760
  %v3807 = vsub.f32 %v3075, %v3806
  %3808 = vmatmul.f32.gmra.mxu0 %v3807
  %v3809 = vpop.f32.mrf.mxu0
  %v3810 = vadd.f32 %v3609, %v3809
  %v3811 = vand.u32 %v3079, 4294901760
  %v3812 = vsub.f32 %v3079, %v3811
  %3813 = vmatmul.f32.gmra.mxu0 %v3812
  %v3814 = vpop.f32.mrf.mxu0
  %v3815 = vadd.f32 %v3613, %v3814
  %v3816 = vand.u32 %v3083, 4294901760
  %v3817 = vsub.f32 %v3083, %v3816
  %3818 = vmatmul.f32.gmra.mxu0 %v3817
  %v3819 = vpop.f32.mrf.mxu0
  %v3820 = vadd.f32 %v3617, %v3819
  %v3821 = vand.u32 %v3087, 4294901760
  %v3822 = vsub.f32 %v3087, %v3821
  %3823 = vmatmul.f32.gmra.mxu0 %v3822
  %v3824 = vpop.f32.mrf.mxu0
  %v3825 = vadd.f32 %v3621, %v3824
  %v3826 = vand.u32 %v3091, 4294901760
  %v3827 = vsub.f32 %v3091, %v3826
  %3828 = vmatmul.f32.gmra.mxu0 %v3827
  %v3829 = vpop.f32.mrf.mxu0
  %v3830 = vadd.f32 %v3625, %v3829
  %v3831 = vand.u32 %v3095, 4294901760
  %v3832 = vsub.f32 %v3095, %v3831
  %3833 = vmatmul.f32.gmra.mxu0 %v3832
  %v3834 = vpop.f32.mrf.mxu0
  %v3835 = vadd.f32 %v3629, %v3834
  %v3836 = vand.u32 %v3099, 4294901760
  %v3837 = vsub.f32 %v3099, %v3836
  %3838 = vmatmul.f32.gmra.mxu0 %v3837
  %v3839 = vpop.f32.mrf.mxu0
  %v3840 = vadd.f32 %v3633, %v3839
  %v3841 = vand.u32 %v3103, 4294901760
  %v3842 = vsub.f32 %v3103, %v3841
  %3843 = vmatmul.f32.gmra.mxu0 %v3842
  %v3844 = vpop.f32.mrf.mxu0
  %v3845 = vadd.f32 %v3637, %v3844
  %v3846 = vand.u32 %v3107, 4294901760
  %v3847 = vsub.f32 %v3107, %v3846
  %3848 = vmatmul.f32.gmra.mxu0 %v3847
  %v3849 = vpop.f32.mrf.mxu0
  %v3850 = vadd.f32 %v3641, %v3849
  %3851 = vdwg.mxu0
  %v3852 = vand.u32 %v3124, 4294901760
  %3853 = vmatpush.msra.mxu0 %v3852
  %v3854 = vand.u32 %v3123, 4294901760
  %3855 = vmatpush.msra.mxu0 %v3854
  %v3856 = vand.u32 %v3122, 4294901760
  %3857 = vmatpush.msra.mxu0 %v3856
  %v3858 = vand.u32 %v3121, 4294901760
  %3859 = vmatpush.msra.mxu0 %v3858
  %v3860 = vand.u32 %v3120, 4294901760
  %3861 = vmatpush.msra.mxu0 %v3860
  %v3862 = vand.u32 %v3119, 4294901760
  %3863 = vmatpush.msra.mxu0 %v3862
  %v3864 = vand.u32 %v3118, 4294901760
  %3865 = vmatpush.msra.mxu0 %v3864
  %v3866 = vand.u32 %v3117, 4294901760
  %3867 = vmatpush.msra.mxu0 %v3866
  %v3868 = vand.u32 %v3116, 4294901760
  %3869 = vmatpush.msra.mxu0 %v3868
  %v3870 = vand.u32 %v3115, 4294901760
  %3871 = vmatpush.msra.mxu0 %v3870
  %v3872 = vand.u32 %v3114, 4294901760
  %3873 = vmatpush.msra.mxu0 %v3872
  %v3874 = vand.u32 %v3113, 4294901760
  %3875 = vmatpush.msra.mxu0 %v3874
  %v3876 = vand.u32 %v3112, 4294901760
  %3877 = vmatpush.msra.mxu0 %v3876
  %v3878 = vand.u32 %v3111, 4294901760
  %3879 = vmatpush.msra.mxu0 %v3878
  %v3880 = vand.u32 %v3110, 4294901760
  %3881 = vmatpush.msra.mxu0 %v3880
  %v3882 = vand.u32 %v3109, 4294901760
  %3883 = vmatpush.msra.mxu0 %v3882
  %v3884 = vand.u32 %v2983, 4294901760
  %v3885 = vsub.f32 %v2983, %v3884
  %v3886 = vand.u32 %v3885, 4294901760
  %3887 = vmatmul.f32.gmra.mxu0 %v3886
  %v3888 = vpop.f32.mrf.mxu0
  %v3889 = vadd.f32 %v3695, %v3888
  %v3890 = vand.u32 %v2987, 4294901760
  %v3891 = vsub.f32 %v2987, %v3890
  %v3892 = vand.u32 %v3891, 4294901760
  %3893 = vmatmul.f32.gmra.mxu0 %v3892
  %v3894 = vpop.f32.mrf.mxu0
  %v3895 = vadd.f32 %v3700, %v3894
  %v3896 = vand.u32 %v2991, 4294901760
  %v3897 = vsub.f32 %v2991, %v3896
  %v3898 = vand.u32 %v3897, 4294901760
  %3899 = vmatmul.f32.gmra.mxu0 %v3898
  %v3900 = vpop.f32.mrf.mxu0
  %v3901 = vadd.f32 %v3705, %v3900
  %v3902 = vand.u32 %v2995, 4294901760
  %v3903 = vsub.f32 %v2995, %v3902
  %v3904 = vand.u32 %v3903, 4294901760
  %3905 = vmatmul.f32.gmra.mxu0 %v3904
  %v3906 = vpop.f32.mrf.mxu0
  %v3907 = vadd.f32 %v3710, %v3906
  %v3908 = vand.u32 %v2999, 4294901760
  %v3909 = vsub.f32 %v2999, %v3908
  %v3910 = vand.u32 %v3909, 4294901760
  %3911 = vmatmul.f32.gmra.mxu0 %v3910
  %v3912 = vpop.f32.mrf.mxu0
  %v3913 = vadd.f32 %v3715, %v3912
  %v3914 = vand.u32 %v3003, 4294901760
  %v3915 = vsub.f32 %v3003, %v3914
  %v3916 = vand.u32 %v3915, 4294901760
  %3917 = vmatmul.f32.gmra.mxu0 %v3916
  %v3918 = vpop.f32.mrf.mxu0
  %v3919 = vadd.f32 %v3720, %v3918
  %v3920 = vand.u32 %v3007, 4294901760
  %v3921 = vsub.f32 %v3007, %v3920
  %v3922 = vand.u32 %v3921, 4294901760
  %3923 = vmatmul.f32.gmra.mxu0 %v3922
  %v3924 = vpop.f32.mrf.mxu0
  %v3925 = vadd.f32 %v3725, %v3924
  %v3926 = vand.u32 %v3011, 4294901760
  %v3927 = vsub.f32 %v3011, %v3926
  %v3928 = vand.u32 %v3927, 4294901760
  %3929 = vmatmul.f32.gmra.mxu0 %v3928
  %v3930 = vpop.f32.mrf.mxu0
  %v3931 = vadd.f32 %v3730, %v3930
  %v3932 = vand.u32 %v3015, 4294901760
  %v3933 = vsub.f32 %v3015, %v3932
  %v3934 = vand.u32 %v3933, 4294901760
  %3935 = vmatmul.f32.gmra.mxu0 %v3934
  %v3936 = vpop.f32.mrf.mxu0
  %v3937 = vadd.f32 %v3735, %v3936
  %v3938 = vand.u32 %v3019, 4294901760
  %v3939 = vsub.f32 %v3019, %v3938
  %v3940 = vand.u32 %v3939, 4294901760
  %3941 = vmatmul.f32.gmra.mxu0 %v3940
  %v3942 = vpop.f32.mrf.mxu0
  %v3943 = vadd.f32 %v3740, %v3942
  %v3944 = vand.u32 %v3023, 4294901760
  %v3945 = vsub.f32 %v3023, %v3944
  %v3946 = vand.u32 %v3945, 4294901760
  %3947 = vmatmul.f32.gmra.mxu0 %v3946
  %v3948 = vpop.f32.mrf.mxu0
  %v3949 = vadd.f32 %v3745, %v3948
  %v3950 = vand.u32 %v3027, 4294901760
  %v3951 = vsub.f32 %v3027, %v3950
  %v3952 = vand.u32 %v3951, 4294901760
  %3953 = vmatmul.f32.gmra.mxu0 %v3952
  %v3954 = vpop.f32.mrf.mxu0
  %v3955 = vadd.f32 %v3750, %v3954
  %v3956 = vand.u32 %v3031, 4294901760
  %v3957 = vsub.f32 %v3031, %v3956
  %v3958 = vand.u32 %v3957, 4294901760
  %3959 = vmatmul.f32.gmra.mxu0 %v3958
  %v3960 = vpop.f32.mrf.mxu0
  %v3961 = vadd.f32 %v3755, %v3960
  %v3962 = vand.u32 %v3035, 4294901760
  %v3963 = vsub.f32 %v3035, %v3962
  %v3964 = vand.u32 %v3963, 4294901760
  %3965 = vmatmul.f32.gmra.mxu0 %v3964
  %v3966 = vpop.f32.mrf.mxu0
  %v3967 = vadd.f32 %v3760, %v3966
  %v3968 = vand.u32 %v3039, 4294901760
  %v3969 = vsub.f32 %v3039, %v3968
  %v3970 = vand.u32 %v3969, 4294901760
  %3971 = vmatmul.f32.gmra.mxu0 %v3970
  %v3972 = vpop.f32.mrf.mxu0
  %v3973 = vadd.f32 %v3765, %v3972
  %v3974 = vand.u32 %v3043, 4294901760
  %v3975 = vsub.f32 %v3043, %v3974
  %v3976 = vand.u32 %v3975, 4294901760
  %3977 = vmatmul.f32.gmra.mxu0 %v3976
  %v3978 = vpop.f32.mrf.mxu0
  %v3979 = vadd.f32 %v3770, %v3978
  %v3980 = vand.u32 %v3047, 4294901760
  %v3981 = vsub.f32 %v3047, %v3980
  %v3982 = vand.u32 %v3981, 4294901760
  %3983 = vmatmul.f32.gmra.mxu0 %v3982
  %v3984 = vpop.f32.mrf.mxu0
  %v3985 = vadd.f32 %v3775, %v3984
  %v3986 = vand.u32 %v3051, 4294901760
  %v3987 = vsub.f32 %v3051, %v3986
  %v3988 = vand.u32 %v3987, 4294901760
  %3989 = vmatmul.f32.gmra.mxu0 %v3988
  %v3990 = vpop.f32.mrf.mxu0
  %v3991 = vadd.f32 %v3780, %v3990
  %v3992 = vand.u32 %v3055, 4294901760
  %v3993 = vsub.f32 %v3055, %v3992
  %v3994 = vand.u32 %v3993, 4294901760
  %3995 = vmatmul.f32.gmra.mxu0 %v3994
  %v3996 = vpop.f32.mrf.mxu0
  %v3997 = vadd.f32 %v3785, %v3996
  %v3998 = vand.u32 %v3059, 4294901760
  %v3999 = vsub.f32 %v3059, %v3998
  %v4000 = vand.u32 %v3999, 4294901760
  %4001 = vmatmul.f32.gmra.mxu0 %v4000
  %v4002 = vpop.f32.mrf.mxu0
  %v4003 = vadd.f32 %v3790, %v4002
  %v4004 = vand.u32 %v3063, 4294901760
  %v4005 = vsub.f32 %v3063, %v4004
  %v4006 = vand.u32 %v4005, 4294901760
  %4007 = vmatmul.f32.gmra.mxu0 %v4006
  %v4008 = vpop.f32.mrf.mxu0
  %v4009 = vadd.f32 %v3795, %v4008
  %v4010 = vand.u32 %v3067, 4294901760
  %v4011 = vsub.f32 %v3067, %v4010
  %v4012 = vand.u32 %v4011, 4294901760
  %4013 = vmatmul.f32.gmra.mxu0 %v4012
  %v4014 = vpop.f32.mrf.mxu0
  %v4015 = vadd.f32 %v3800, %v4014
  %v4016 = vand.u32 %v3071, 4294901760
  %v4017 = vsub.f32 %v3071, %v4016
  %v4018 = vand.u32 %v4017, 4294901760
  %4019 = vmatmul.f32.gmra.mxu0 %v4018
  %v4020 = vpop.f32.mrf.mxu0
  %v4021 = vadd.f32 %v3805, %v4020
  %v4022 = vand.u32 %v3075, 4294901760
  %v4023 = vsub.f32 %v3075, %v4022
  %v4024 = vand.u32 %v4023, 4294901760
  %4025 = vmatmul.f32.gmra.mxu0 %v4024
  %v4026 = vpop.f32.mrf.mxu0
  %v4027 = vadd.f32 %v3810, %v4026
  %v4028 = vand.u32 %v3079, 4294901760
  %v4029 = vsub.f32 %v3079, %v4028
  %v4030 = vand.u32 %v4029, 4294901760
  %4031 = vmatmul.f32.gmra.mxu0 %v4030
  %v4032 = vpop.f32.mrf.mxu0
  %v4033 = vadd.f32 %v3815, %v4032
  %v4034 = vand.u32 %v3083, 4294901760
  %v4035 = vsub.f32 %v3083, %v4034
  %v4036 = vand.u32 %v4035, 4294901760
  %4037 = vmatmul.f32.gmra.mxu0 %v4036
  %v4038 = vpop.f32.mrf.mxu0
  %v4039 = vadd.f32 %v3820, %v4038
  %v4040 = vand.u32 %v3087, 4294901760
  %v4041 = vsub.f32 %v3087, %v4040
  %v4042 = vand.u32 %v4041, 4294901760
  %4043 = vmatmul.f32.gmra.mxu0 %v4042
  %v4044 = vpop.f32.mrf.mxu0
  %v4045 = vadd.f32 %v3825, %v4044
  %v4046 = vand.u32 %v3091, 4294901760
  %v4047 = vsub.f32 %v3091, %v4046
  %v4048 = vand.u32 %v4047, 4294901760
  %4049 = vmatmul.f32.gmra.mxu0 %v4048
  %v4050 = vpop.f32.mrf.mxu0
  %v4051 = vadd.f32 %v3830, %v4050
  %v4052 = vand.u32 %v3095, 4294901760
  %v4053 = vsub.f32 %v3095, %v4052
  %v4054 = vand.u32 %v4053, 4294901760
  %4055 = vmatmul.f32.gmra.mxu0 %v4054
  %v4056 = vpop.f32.mrf.mxu0
  %v4057 = vadd.f32 %v3835, %v4056
  %v4058 = vand.u32 %v3099, 4294901760
  %v4059 = vsub.f32 %v3099, %v4058
  %v4060 = vand.u32 %v4059, 4294901760
  %4061 = vmatmul.f32.gmra.mxu0 %v4060
  %v4062 = vpop.f32.mrf.mxu0
  %v4063 = vadd.f32 %v3840, %v4062
  %v4064 = vand.u32 %v3103, 4294901760
  %v4065 = vsub.f32 %v3103, %v4064
  %v4066 = vand.u32 %v4065, 4294901760
  %4067 = vmatmul.f32.gmra.mxu0 %v4066
  %v4068 = vpop.f32.mrf.mxu0
  %v4069 = vadd.f32 %v3845, %v4068
  %v4070 = vand.u32 %v3107, 4294901760
  %v4071 = vsub.f32 %v3107, %v4070
  %v4072 = vand.u32 %v4071, 4294901760
  %4073 = vmatmul.f32.gmra.mxu0 %v4072
  %v4074 = vpop.f32.mrf.mxu0
  %v4075 = vadd.f32 %v3850, %v4074
  %4076 = vdwg.mxu0
  %v4077 = vand.u32 %v3124, 4294901760
  %v4078 = vsub.f32 %v3124, %v4077
  %v4079 = vand.u32 %v4078, 4294901760
  %4080 = vmatpush.msra.mxu0 %v4079
  %v4081 = vand.u32 %v3123, 4294901760
  %v4082 = vsub.f32 %v3123, %v4081
  %v4083 = vand.u32 %v4082, 4294901760
  %4084 = vmatpush.msra.mxu0 %v4083
  %v4085 = vand.u32 %v3122, 4294901760
  %v4086 = vsub.f32 %v3122, %v4085
  %v4087 = vand.u32 %v4086, 4294901760
  %4088 = vmatpush.msra.mxu0 %v4087
  %v4089 = vand.u32 %v3121, 4294901760
  %v4090 = vsub.f32 %v3121, %v4089
  %v4091 = vand.u32 %v4090, 4294901760
  %4092 = vmatpush.msra.mxu0 %v4091
  %v4093 = vand.u32 %v3120, 4294901760
  %v4094 = vsub.f32 %v3120, %v4093
  %v4095 = vand.u32 %v4094, 4294901760
  %4096 = vmatpush.msra.mxu0 %v4095
  %v4097 = vand.u32 %v3119, 4294901760
  %v4098 = vsub.f32 %v3119, %v4097
  %v4099 = vand.u32 %v4098, 4294901760
  %4100 = vmatpush.msra.mxu0 %v4099
  %v4101 = vand.u32 %v3118, 4294901760
  %v4102 = vsub.f32 %v3118, %v4101
  %v4103 = vand.u32 %v4102, 4294901760
  %4104 = vmatpush.msra.mxu0 %v4103
  %v4105 = vand.u32 %v3117, 4294901760
  %v4106 = vsub.f32 %v3117, %v4105
  %v4107 = vand.u32 %v4106, 4294901760
  %4108 = vmatpush.msra.mxu0 %v4107
  %v4109 = vand.u32 %v3116, 4294901760
  %v4110 = vsub.f32 %v3116, %v4109
  %v4111 = vand.u32 %v4110, 4294901760
  %4112 = vmatpush.msra.mxu0 %v4111
  %v4113 = vand.u32 %v3115, 4294901760
  %v4114 = vsub.f32 %v3115, %v4113
  %v4115 = vand.u32 %v4114, 4294901760
  %4116 = vmatpush.msra.mxu0 %v4115
  %v4117 = vand.u32 %v3114, 4294901760
  %v4118 = vsub.f32 %v3114, %v4117
  %v4119 = vand.u32 %v4118, 4294901760
  %4120 = vmatpush.msra.mxu0 %v4119
  %v4121 = vand.u32 %v3113, 4294901760
  %v4122 = vsub.f32 %v3113, %v4121
  %v4123 = vand.u32 %v4122, 4294901760
  %4124 = vmatpush.msra.mxu0 %v4123
  %v4125 = vand.u32 %v3112, 4294901760
  %v4126 = vsub.f32 %v3112, %v4125
  %v4127 = vand.u32 %v4126, 4294901760
  %4128 = vmatpush.msra.mxu0 %v4127
  %v4129 = vand.u32 %v3111, 4294901760
  %v4130 = vsub.f32 %v3111, %v4129
  %v4131 = vand.u32 %v4130, 4294901760
  %4132 = vmatpush.msra.mxu0 %v4131
  %v4133 = vand.u32 %v3110, 4294901760
  %v4134 = vsub.f32 %v3110, %v4133
  %v4135 = vand.u32 %v4134, 4294901760
  %4136 = vmatpush.msra.mxu0 %v4135
  %v4137 = vand.u32 %v3109, 4294901760
  %v4138 = vsub.f32 %v3109, %v4137
  %v4139 = vand.u32 %v4138, 4294901760
  %4140 = vmatpush.msra.mxu0 %v4139
  %v4141 = vand.u32 %v2983, 4294901760
  %4142 = vmatmul.f32.gmra.mxu0 %v4141
  %v4143 = vpop.f32.mrf.mxu0
  %v4144 = vadd.f32 %v3889, %v4143
  %v4145 = vand.u32 %v2987, 4294901760
  %4146 = vmatmul.f32.gmra.mxu0 %v4145
  %v4147 = vpop.f32.mrf.mxu0
  %v4148 = vadd.f32 %v3895, %v4147
  %v4149 = vand.u32 %v2991, 4294901760
  %4150 = vmatmul.f32.gmra.mxu0 %v4149
  %v4151 = vpop.f32.mrf.mxu0
  %v4152 = vadd.f32 %v3901, %v4151
  %v4153 = vand.u32 %v2995, 4294901760
  %4154 = vmatmul.f32.gmra.mxu0 %v4153
  %v4155 = vpop.f32.mrf.mxu0
  %v4156 = vadd.f32 %v3907, %v4155
  %v4157 = vand.u32 %v2999, 4294901760
  %4158 = vmatmul.f32.gmra.mxu0 %v4157
  %v4159 = vpop.f32.mrf.mxu0
  %v4160 = vadd.f32 %v3913, %v4159
  %v4161 = vand.u32 %v3003, 4294901760
  %4162 = vmatmul.f32.gmra.mxu0 %v4161
  %v4163 = vpop.f32.mrf.mxu0
  %v4164 = vadd.f32 %v3919, %v4163
  %v4165 = vand.u32 %v3007, 4294901760
  %4166 = vmatmul.f32.gmra.mxu0 %v4165
  %v4167 = vpop.f32.mrf.mxu0
  %v4168 = vadd.f32 %v3925, %v4167
  %v4169 = vand.u32 %v3011, 4294901760
  %4170 = vmatmul.f32.gmra.mxu0 %v4169
  %v4171 = vpop.f32.mrf.mxu0
  %v4172 = vadd.f32 %v3931, %v4171
  %v4173 = vand.u32 %v3015, 4294901760
  %4174 = vmatmul.f32.gmra.mxu0 %v4173
  %v4175 = vpop.f32.mrf.mxu0
  %v4176 = vadd.f32 %v3937, %v4175
  %v4177 = vand.u32 %v3019, 4294901760
  %4178 = vmatmul.f32.gmra.mxu0 %v4177
  %v4179 = vpop.f32.mrf.mxu0
  %v4180 = vadd.f32 %v3943, %v4179
  %v4181 = vand.u32 %v3023, 4294901760
  %4182 = vmatmul.f32.gmra.mxu0 %v4181
  %v4183 = vpop.f32.mrf.mxu0
  %v4184 = vadd.f32 %v3949, %v4183
  %v4185 = vand.u32 %v3027, 4294901760
  %4186 = vmatmul.f32.gmra.mxu0 %v4185
  %v4187 = vpop.f32.mrf.mxu0
  %v4188 = vadd.f32 %v3955, %v4187
  %v4189 = vand.u32 %v3031, 4294901760
  %4190 = vmatmul.f32.gmra.mxu0 %v4189
  %v4191 = vpop.f32.mrf.mxu0
  %v4192 = vadd.f32 %v3961, %v4191
  %v4193 = vand.u32 %v3035, 4294901760
  %4194 = vmatmul.f32.gmra.mxu0 %v4193
  %v4195 = vpop.f32.mrf.mxu0
  %v4196 = vadd.f32 %v3967, %v4195
  %v4197 = vand.u32 %v3039, 4294901760
  %4198 = vmatmul.f32.gmra.mxu0 %v4197
  %v4199 = vpop.f32.mrf.mxu0
  %v4200 = vadd.f32 %v3973, %v4199
  %v4201 = vand.u32 %v3043, 4294901760
  %4202 = vmatmul.f32.gmra.mxu0 %v4201
  %v4203 = vpop.f32.mrf.mxu0
  %v4204 = vadd.f32 %v3979, %v4203
  %v4205 = vand.u32 %v3047, 4294901760
  %4206 = vmatmul.f32.gmra.mxu0 %v4205
  %v4207 = vpop.f32.mrf.mxu0
  %v4208 = vadd.f32 %v3985, %v4207
  %v4209 = vand.u32 %v3051, 4294901760
  %4210 = vmatmul.f32.gmra.mxu0 %v4209
  %v4211 = vpop.f32.mrf.mxu0
  %v4212 = vadd.f32 %v3991, %v4211
  %v4213 = vand.u32 %v3055, 4294901760
  %4214 = vmatmul.f32.gmra.mxu0 %v4213
  %v4215 = vpop.f32.mrf.mxu0
  %v4216 = vadd.f32 %v3997, %v4215
  %v4217 = vand.u32 %v3059, 4294901760
  %4218 = vmatmul.f32.gmra.mxu0 %v4217
  %v4219 = vpop.f32.mrf.mxu0
  %v4220 = vadd.f32 %v4003, %v4219
  %v4221 = vand.u32 %v3063, 4294901760
  %4222 = vmatmul.f32.gmra.mxu0 %v4221
  %v4223 = vpop.f32.mrf.mxu0
  %v4224 = vadd.f32 %v4009, %v4223
  %v4225 = vand.u32 %v3067, 4294901760
  %4226 = vmatmul.f32.gmra.mxu0 %v4225
  %v4227 = vpop.f32.mrf.mxu0
  %v4228 = vadd.f32 %v4015, %v4227
  %v4229 = vand.u32 %v3071, 4294901760
  %4230 = vmatmul.f32.gmra.mxu0 %v4229
  %v4231 = vpop.f32.mrf.mxu0
  %v4232 = vadd.f32 %v4021, %v4231
  %v4233 = vand.u32 %v3075, 4294901760
  %4234 = vmatmul.f32.gmra.mxu0 %v4233
  %v4235 = vpop.f32.mrf.mxu0
  %v4236 = vadd.f32 %v4027, %v4235
  %v4237 = vand.u32 %v3079, 4294901760
  %4238 = vmatmul.f32.gmra.mxu0 %v4237
  %v4239 = vpop.f32.mrf.mxu0
  %v4240 = vadd.f32 %v4033, %v4239
  %v4241 = vand.u32 %v3083, 4294901760
  %4242 = vmatmul.f32.gmra.mxu0 %v4241
  %v4243 = vpop.f32.mrf.mxu0
  %v4244 = vadd.f32 %v4039, %v4243
  %v4245 = vand.u32 %v3087, 4294901760
  %4246 = vmatmul.f32.gmra.mxu0 %v4245
  %v4247 = vpop.f32.mrf.mxu0
  %v4248 = vadd.f32 %v4045, %v4247
  %v4249 = vand.u32 %v3091, 4294901760
  %4250 = vmatmul.f32.gmra.mxu0 %v4249
  %v4251 = vpop.f32.mrf.mxu0
  %v4252 = vadd.f32 %v4051, %v4251
  %v4253 = vand.u32 %v3095, 4294901760
  %4254 = vmatmul.f32.gmra.mxu0 %v4253
  %v4255 = vpop.f32.mrf.mxu0
  %v4256 = vadd.f32 %v4057, %v4255
  %v4257 = vand.u32 %v3099, 4294901760
  %4258 = vmatmul.f32.gmra.mxu0 %v4257
  %v4259 = vpop.f32.mrf.mxu0
  %v4260 = vadd.f32 %v4063, %v4259
  %v4261 = vand.u32 %v3103, 4294901760
  %4262 = vmatmul.f32.gmra.mxu0 %v4261
  %v4263 = vpop.f32.mrf.mxu0
  %v4264 = vadd.f32 %v4069, %v4263
  %v4265 = vand.u32 %v3107, 4294901760
  %4266 = vmatmul.f32.gmra.mxu0 %v4265
  %v4267 = vpop.f32.mrf.mxu0
  %v4268 = vadd.f32 %v4075, %v4267
  %4269 = vdwg.mxu0
  %v4270 = vand.u32 %v3124, 4294901760
  %4271 = vmatpush.msra.mxu0 %v4270
  %v4272 = vand.u32 %v3123, 4294901760
  %4273 = vmatpush.msra.mxu0 %v4272
  %v4274 = vand.u32 %v3122, 4294901760
  %4275 = vmatpush.msra.mxu0 %v4274
  %v4276 = vand.u32 %v3121, 4294901760
  %4277 = vmatpush.msra.mxu0 %v4276
  %v4278 = vand.u32 %v3120, 4294901760
  %4279 = vmatpush.msra.mxu0 %v4278
  %v4280 = vand.u32 %v3119, 4294901760
  %4281 = vmatpush.msra.mxu0 %v4280
  %v4282 = vand.u32 %v3118, 4294901760
  %4283 = vmatpush.msra.mxu0 %v4282
  %v4284 = vand.u32 %v3117, 4294901760
  %4285 = vmatpush.msra.mxu0 %v4284
  %v4286 = vand.u32 %v3116, 4294901760
  %4287 = vmatpush.msra.mxu0 %v4286
  %v4288 = vand.u32 %v3115, 4294901760
  %4289 = vmatpush.msra.mxu0 %v4288
  %v4290 = vand.u32 %v3114, 4294901760
  %4291 = vmatpush.msra.mxu0 %v4290
  %v4292 = vand.u32 %v3113, 4294901760
  %4293 = vmatpush.msra.mxu0 %v4292
  %v4294 = vand.u32 %v3112, 4294901760
  %4295 = vmatpush.msra.mxu0 %v4294
  %v4296 = vand.u32 %v3111, 4294901760
  %4297 = vmatpush.msra.mxu0 %v4296
  %v4298 = vand.u32 %v3110, 4294901760
  %4299 = vmatpush.msra.mxu0 %v4298
  %v4300 = vand.u32 %v3109, 4294901760
  %4301 = vmatpush.msra.mxu0 %v4300
  %v4302 = vand.u32 %v2983, 4294901760
  %4303 = vmatmul.f32.gmra.mxu0 %v4302
  %v4304 = vpop.f32.mrf.mxu0
  %v4305 = vadd.f32 %v4144, %v4304
  %v4306 = vand.u32 %v2987, 4294901760
  %4307 = vmatmul.f32.gmra.mxu0 %v4306
  %v4308 = vpop.f32.mrf.mxu0
  %v4309 = vadd.f32 %v4148, %v4308
  %v4310 = vand.u32 %v2991, 4294901760
  %4311 = vmatmul.f32.gmra.mxu0 %v4310
  %v4312 = vpop.f32.mrf.mxu0
  %v4313 = vadd.f32 %v4152, %v4312
  %v4314 = vand.u32 %v2995, 4294901760
  %4315 = vmatmul.f32.gmra.mxu0 %v4314
  %v4316 = vpop.f32.mrf.mxu0
  %v4317 = vadd.f32 %v4156, %v4316
  %v4318 = vand.u32 %v2999, 4294901760
  %4319 = vmatmul.f32.gmra.mxu0 %v4318
  %v4320 = vpop.f32.mrf.mxu0
  %v4321 = vadd.f32 %v4160, %v4320
  %v4322 = vand.u32 %v3003, 4294901760
  %4323 = vmatmul.f32.gmra.mxu0 %v4322
  %v4324 = vpop.f32.mrf.mxu0
  %v4325 = vadd.f32 %v4164, %v4324
  %v4326 = vand.u32 %v3007, 4294901760
  %4327 = vmatmul.f32.gmra.mxu0 %v4326
  %v4328 = vpop.f32.mrf.mxu0
  %v4329 = vadd.f32 %v4168, %v4328
  %v4330 = vand.u32 %v3011, 4294901760
  %4331 = vmatmul.f32.gmra.mxu0 %v4330
  %v4332 = vpop.f32.mrf.mxu0
  %v4333 = vadd.f32 %v4172, %v4332
  %v4334 = vand.u32 %v3015, 4294901760
  %4335 = vmatmul.f32.gmra.mxu0 %v4334
  %v4336 = vpop.f32.mrf.mxu0
  %v4337 = vadd.f32 %v4176, %v4336
  %v4338 = vand.u32 %v3019, 4294901760
  %4339 = vmatmul.f32.gmra.mxu0 %v4338
  %v4340 = vpop.f32.mrf.mxu0
  %v4341 = vadd.f32 %v4180, %v4340
  %v4342 = vand.u32 %v3023, 4294901760
  %4343 = vmatmul.f32.gmra.mxu0 %v4342
  %v4344 = vpop.f32.mrf.mxu0
  %v4345 = vadd.f32 %v4184, %v4344
  %v4346 = vand.u32 %v3027, 4294901760
  %4347 = vmatmul.f32.gmra.mxu0 %v4346
  %v4348 = vpop.f32.mrf.mxu0
  %v4349 = vadd.f32 %v4188, %v4348
  %v4350 = vand.u32 %v3031, 4294901760
  %4351 = vmatmul.f32.gmra.mxu0 %v4350
  %v4352 = vpop.f32.mrf.mxu0
  %v4353 = vadd.f32 %v4192, %v4352
  %v4354 = vand.u32 %v3035, 4294901760
  %4355 = vmatmul.f32.gmra.mxu0 %v4354
  %v4356 = vpop.f32.mrf.mxu0
  %v4357 = vadd.f32 %v4196, %v4356
  %v4358 = vand.u32 %v3039, 4294901760
  %4359 = vmatmul.f32.gmra.mxu0 %v4358
  %v4360 = vpop.f32.mrf.mxu0
  %v4361 = vadd.f32 %v4200, %v4360
  %v4362 = vand.u32 %v3043, 4294901760
  %4363 = vmatmul.f32.gmra.mxu0 %v4362
  %v4364 = vpop.f32.mrf.mxu0
  %v4365 = vadd.f32 %v4204, %v4364
  %v4366 = vand.u32 %v3047, 4294901760
  %4367 = vmatmul.f32.gmra.mxu0 %v4366
  %v4368 = vpop.f32.mrf.mxu0
  %v4369 = vadd.f32 %v4208, %v4368
  %v4370 = vand.u32 %v3051, 4294901760
  %4371 = vmatmul.f32.gmra.mxu0 %v4370
  %v4372 = vpop.f32.mrf.mxu0
  %v4373 = vadd.f32 %v4212, %v4372
  %v4374 = vand.u32 %v3055, 4294901760
  %4375 = vmatmul.f32.gmra.mxu0 %v4374
  %v4376 = vpop.f32.mrf.mxu0
  %v4377 = vadd.f32 %v4216, %v4376
  %v4378 = vand.u32 %v3059, 4294901760
  %4379 = vmatmul.f32.gmra.mxu0 %v4378
  %v4380 = vpop.f32.mrf.mxu0
  %v4381 = vadd.f32 %v4220, %v4380
  %v4382 = vand.u32 %v3063, 4294901760
  %4383 = vmatmul.f32.gmra.mxu0 %v4382
  %v4384 = vpop.f32.mrf.mxu0
  %v4385 = vadd.f32 %v4224, %v4384
  %v4386 = vand.u32 %v3067, 4294901760
  %4387 = vmatmul.f32.gmra.mxu0 %v4386
  %v4388 = vpop.f32.mrf.mxu0
  %v4389 = vadd.f32 %v4228, %v4388
  %v4390 = vand.u32 %v3071, 4294901760
  %4391 = vmatmul.f32.gmra.mxu0 %v4390
  %v4392 = vpop.f32.mrf.mxu0
  %v4393 = vadd.f32 %v4232, %v4392
  %v4394 = vand.u32 %v3075, 4294901760
  %4395 = vmatmul.f32.gmra.mxu0 %v4394
  %v4396 = vpop.f32.mrf.mxu0
  %v4397 = vadd.f32 %v4236, %v4396
  %v4398 = vand.u32 %v3079, 4294901760
  %4399 = vmatmul.f32.gmra.mxu0 %v4398
  %v4400 = vpop.f32.mrf.mxu0
  %v4401 = vadd.f32 %v4240, %v4400
  %v4402 = vand.u32 %v3083, 4294901760
  %4403 = vmatmul.f32.gmra.mxu0 %v4402
  %v4404 = vpop.f32.mrf.mxu0
  %v4405 = vadd.f32 %v4244, %v4404
  %v4406 = vand.u32 %v3087, 4294901760
  %4407 = vmatmul.f32.gmra.mxu0 %v4406
  %v4408 = vpop.f32.mrf.mxu0
  %v4409 = vadd.f32 %v4248, %v4408
  %v4410 = vand.u32 %v3091, 4294901760
  %4411 = vmatmul.f32.gmra.mxu0 %v4410
  %v4412 = vpop.f32.mrf.mxu0
  %v4413 = vadd.f32 %v4252, %v4412
  %v4414 = vand.u32 %v3095, 4294901760
  %4415 = vmatmul.f32.gmra.mxu0 %v4414
  %v4416 = vpop.f32.mrf.mxu0
  %v4417 = vadd.f32 %v4256, %v4416
  %v4418 = vand.u32 %v3099, 4294901760
  %4419 = vmatmul.f32.gmra.mxu0 %v4418
  %v4420 = vpop.f32.mrf.mxu0
  %v4421 = vadd.f32 %v4260, %v4420
  %v4422 = vand.u32 %v3103, 4294901760
  %4423 = vmatmul.f32.gmra.mxu0 %v4422
  %v4424 = vpop.f32.mrf.mxu0
  %v4425 = vadd.f32 %v4264, %v4424
  %v4426 = vand.u32 %v3107, 4294901760
  %4427 = vmatmul.f32.gmra.mxu0 %v4426
  %v4428 = vpop.f32.mrf.mxu0
  %v4429 = vadd.f32 %v4268, %v4428
  %4430 = vdwg.mxu0
  %vm4431 = vcmask 64512
  %v4432 = vsel %vm4431, %v4305, -inf
  %4433 = vmax.xlane.f32.xlu0 %v4432
  %v4434 = vpop.xlane.xlu0 %4433
  %v4435 = vsel %vm4431, %v4309, -inf
  %4436 = vmax.xlane.f32.xlu0 %v4435
  %v4437 = vpop.xlane.xlu0 %4436
  %v4438 = vsel %vm4431, %v4313, -inf
  %4439 = vmax.xlane.f32.xlu0 %v4438
  %v4440 = vpop.xlane.xlu0 %4439
  %v4441 = vsel %vm4431, %v4317, -inf
  %4442 = vmax.xlane.f32.xlu0 %v4441
  %v4443 = vpop.xlane.xlu0 %4442
  %v4444 = vsel %vm4431, %v4321, -inf
  %4445 = vmax.xlane.f32.xlu0 %v4444
  %v4446 = vpop.xlane.xlu0 %4445
  %v4447 = vsel %vm4431, %v4325, -inf
  %4448 = vmax.xlane.f32.xlu0 %v4447
  %v4449 = vpop.xlane.xlu0 %4448
  %v4450 = vsel %vm4431, %v4329, -inf
  %4451 = vmax.xlane.f32.xlu0 %v4450
  %v4452 = vpop.xlane.xlu0 %4451
  %v4453 = vsel %vm4431, %v4333, -inf
  %4454 = vmax.xlane.f32.xlu0 %v4453
  %v4455 = vpop.xlane.xlu0 %4454
  %v4456 = vsel %vm4431, %v4337, -inf
  %4457 = vmax.xlane.f32.xlu0 %v4456
  %v4458 = vpop.xlane.xlu0 %4457
  %v4459 = vsel %vm4431, %v4341, -inf
  %4460 = vmax.xlane.f32.xlu0 %v4459
  %v4461 = vpop.xlane.xlu0 %4460
  %v4462 = vsel %vm4431, %v4345, -inf
  %4463 = vmax.xlane.f32.xlu0 %v4462
  %v4464 = vpop.xlane.xlu0 %4463
  %v4465 = vsel %vm4431, %v4349, -inf
  %4466 = vmax.xlane.f32.xlu0 %v4465
  %v4467 = vpop.xlane.xlu0 %4466
  %v4468 = vsel %vm4431, %v4353, -inf
  %4469 = vmax.xlane.f32.xlu0 %v4468
  %v4470 = vpop.xlane.xlu0 %4469
  %v4471 = vsel %vm4431, %v4357, -inf
  %4472 = vmax.xlane.f32.xlu0 %v4471
  %v4473 = vpop.xlane.xlu0 %4472
  %v4474 = vsel %vm4431, %v4361, -inf
  %4475 = vmax.xlane.f32.xlu0 %v4474
  %v4476 = vpop.xlane.xlu0 %4475
  %v4477 = vsel %vm4431, %v4365, -inf
  %4478 = vmax.xlane.f32.xlu0 %v4477
  %v4479 = vpop.xlane.xlu0 %4478
  %v4480 = vsel %vm4431, %v4369, -inf
  %4481 = vmax.xlane.f32.xlu0 %v4480
  %v4482 = vpop.xlane.xlu0 %4481
  %v4483 = vsel %vm4431, %v4373, -inf
  %4484 = vmax.xlane.f32.xlu0 %v4483
  %v4485 = vpop.xlane.xlu0 %4484
  %v4486 = vsel %vm4431, %v4377, -inf
  %4487 = vmax.xlane.f32.xlu0 %v4486
  %v4488 = vpop.xlane.xlu0 %4487
  %v4489 = vsel %vm4431, %v4381, -inf
  %4490 = vmax.xlane.f32.xlu0 %v4489
  %v4491 = vpop.xlane.xlu0 %4490
  %v4492 = vsel %vm4431, %v4385, -inf
  %4493 = vmax.xlane.f32.xlu0 %v4492
  %v4494 = vpop.xlane.xlu0 %4493
  %v4495 = vsel %vm4431, %v4389, -inf
  %4496 = vmax.xlane.f32.xlu0 %v4495
  %v4497 = vpop.xlane.xlu0 %4496
  %v4498 = vsel %vm4431, %v4393, -inf
  %4499 = vmax.xlane.f32.xlu0 %v4498
  %v4500 = vpop.xlane.xlu0 %4499
  %v4501 = vsel %vm4431, %v4397, -inf
  %4502 = vmax.xlane.f32.xlu0 %v4501
  %v4503 = vpop.xlane.xlu0 %4502
  %v4504 = vsel %vm4431, %v4401, -inf
  %4505 = vmax.xlane.f32.xlu0 %v4504
  %v4506 = vpop.xlane.xlu0 %4505
  %v4507 = vsel %vm4431, %v4405, -inf
  %4508 = vmax.xlane.f32.xlu0 %v4507
  %v4509 = vpop.xlane.xlu0 %4508
  %v4510 = vsel %vm4431, %v4409, -inf
  %4511 = vmax.xlane.f32.xlu0 %v4510
  %v4512 = vpop.xlane.xlu0 %4511
  %v4513 = vsel %vm4431, %v4413, -inf
  %4514 = vmax.xlane.f32.xlu0 %v4513
  %v4515 = vpop.xlane.xlu0 %4514
  %v4516 = vsel %vm4431, %v4417, -inf
  %4517 = vmax.xlane.f32.xlu0 %v4516
  %v4518 = vpop.xlane.xlu0 %4517
  %v4519 = vsel %vm4431, %v4421, -inf
  %4520 = vmax.xlane.f32.xlu0 %v4519
  %v4521 = vpop.xlane.xlu0 %4520
  %v4522 = vsel %vm4431, %v4425, -inf
  %4523 = vmax.xlane.f32.xlu0 %v4522
  %v4524 = vpop.xlane.xlu0 %4523
  %v4525 = vsel %vm4431, %v4429, -inf
  %4526 = vmax.xlane.f32.xlu0 %v4525
  %v4527 = vpop.xlane.xlu0 %4526
  %v4528 = vsub.f32 %v4305, %v4434
  %v4529 = vsub.f32 %v4309, %v4437
  %v4530 = vsub.f32 %v4313, %v4440
  %v4531 = vsub.f32 %v4317, %v4443
  %v4532 = vsub.f32 %v4321, %v4446
  %v4533 = vsub.f32 %v4325, %v4449
  %v4534 = vsub.f32 %v4329, %v4452
  %v4535 = vsub.f32 %v4333, %v4455
  %v4536 = vsub.f32 %v4337, %v4458
  %v4537 = vsub.f32 %v4341, %v4461
  %v4538 = vsub.f32 %v4345, %v4464
  %v4539 = vsub.f32 %v4349, %v4467
  %v4540 = vsub.f32 %v4353, %v4470
  %v4541 = vsub.f32 %v4357, %v4473
  %v4542 = vsub.f32 %v4361, %v4476
  %v4543 = vsub.f32 %v4365, %v4479
  %v4544 = vsub.f32 %v4369, %v4482
  %v4545 = vsub.f32 %v4373, %v4485
  %v4546 = vsub.f32 %v4377, %v4488
  %v4547 = vsub.f32 %v4381, %v4491
  %v4548 = vsub.f32 %v4385, %v4494
  %v4549 = vsub.f32 %v4389, %v4497
  %v4550 = vsub.f32 %v4393, %v4500
  %v4551 = vsub.f32 %v4397, %v4503
  %v4552 = vsub.f32 %v4401, %v4506
  %v4553 = vsub.f32 %v4405, %v4509
  %v4554 = vsub.f32 %v4409, %v4512
  %v4555 = vsub.f32 %v4413, %v4515
  %v4556 = vsub.f32 %v4417, %v4518
  %v4557 = vsub.f32 %v4421, %v4521
  %v4558 = vsub.f32 %v4425, %v4524
  %v4559 = vsub.f32 %v4429, %v4527
  %v4560 = vmul.f32 %v4528, 1.442695
  %v4561 = vpow.pop %v4560
  %v4562 = vmul.f32 %v4529, 1.442695
  %v4563 = vpow.pop %v4562
  %v4564 = vmul.f32 %v4530, 1.442695
  %v4565 = vpow.pop %v4564
  %v4566 = vmul.f32 %v4531, 1.442695
  %v4567 = vpow.pop %v4566
  %v4568 = vmul.f32 %v4532, 1.442695
  %v4569 = vpow.pop %v4568
  %v4570 = vmul.f32 %v4533, 1.442695
  %v4571 = vpow.pop %v4570
  %v4572 = vmul.f32 %v4534, 1.442695
  %v4573 = vpow.pop %v4572
  %v4574 = vmul.f32 %v4535, 1.442695
  %v4575 = vpow.pop %v4574
  %v4576 = vmul.f32 %v4536, 1.442695
  %v4577 = vpow.pop %v4576
  %v4578 = vmul.f32 %v4537, 1.442695
  %v4579 = vpow.pop %v4578
  %v4580 = vmul.f32 %v4538, 1.442695
  %v4581 = vpow.pop %v4580
  %v4582 = vmul.f32 %v4539, 1.442695
  %v4583 = vpow.pop %v4582
  %v4584 = vmul.f32 %v4540, 1.442695
  %v4585 = vpow.pop %v4584
  %v4586 = vmul.f32 %v4541, 1.442695
  %v4587 = vpow.pop %v4586
  %v4588 = vmul.f32 %v4542, 1.442695
  %v4589 = vpow.pop %v4588
  %v4590 = vmul.f32 %v4543, 1.442695
  %v4591 = vpow.pop %v4590
  %v4592 = vmul.f32 %v4544, 1.442695
  %v4593 = vpow.pop %v4592
  %v4594 = vmul.f32 %v4545, 1.442695
  %v4595 = vpow.pop %v4594
  %v4596 = vmul.f32 %v4546, 1.442695
  %v4597 = vpow.pop %v4596
  %v4598 = vmul.f32 %v4547, 1.442695
  %v4599 = vpow.pop %v4598
  %v4600 = vmul.f32 %v4548, 1.442695
  %v4601 = vpow.pop %v4600
  %v4602 = vmul.f32 %v4549, 1.442695
  %v4603 = vpow.pop %v4602
  %v4604 = vmul.f32 %v4550, 1.442695
  %v4605 = vpow.pop %v4604
  %v4606 = vmul.f32 %v4551, 1.442695
  %v4607 = vpow.pop %v4606
  %v4608 = vmul.f32 %v4552, 1.442695
  %v4609 = vpow.pop %v4608
  %v4610 = vmul.f32 %v4553, 1.442695
  %v4611 = vpow.pop %v4610
  %v4612 = vmul.f32 %v4554, 1.442695
  %v4613 = vpow.pop %v4612
  %v4614 = vmul.f32 %v4555, 1.442695
  %v4615 = vpow.pop %v4614
  %v4616 = vmul.f32 %v4556, 1.442695
  %v4617 = vpow.pop %v4616
  %v4618 = vmul.f32 %v4557, 1.442695
  %v4619 = vpow.pop %v4618
  %v4620 = vmul.f32 %v4558, 1.442695
  %v4621 = vpow.pop %v4620
  %v4622 = vmul.f32 %v4559, 1.442695
  %v4623 = vpow.pop %v4622
  %v4624 = vsel %vm4431, %v4561, 0.0
  %4625 = vadd.xlane.f32.xlu0 %v4624
  %v4626 = vpop.xlane.xlu0 %4625
  %v4627 = vsel %vm4431, %v4563, 0.0
  %4628 = vadd.xlane.f32.xlu0 %v4627
  %v4629 = vpop.xlane.xlu0 %4628
  %v4630 = vsel %vm4431, %v4565, 0.0
  %4631 = vadd.xlane.f32.xlu0 %v4630
  %v4632 = vpop.xlane.xlu0 %4631
  %v4633 = vsel %vm4431, %v4567, 0.0
  %4634 = vadd.xlane.f32.xlu0 %v4633
  %v4635 = vpop.xlane.xlu0 %4634
  %v4636 = vsel %vm4431, %v4569, 0.0
  %4637 = vadd.xlane.f32.xlu0 %v4636
  %v4638 = vpop.xlane.xlu0 %4637
  %v4639 = vsel %vm4431, %v4571, 0.0
  %4640 = vadd.xlane.f32.xlu0 %v4639
  %v4641 = vpop.xlane.xlu0 %4640
  %v4642 = vsel %vm4431, %v4573, 0.0
  %4643 = vadd.xlane.f32.xlu0 %v4642
  %v4644 = vpop.xlane.xlu0 %4643
  %v4645 = vsel %vm4431, %v4575, 0.0
  %4646 = vadd.xlane.f32.xlu0 %v4645
  %v4647 = vpop.xlane.xlu0 %4646
  %v4648 = vsel %vm4431, %v4577, 0.0
  %4649 = vadd.xlane.f32.xlu0 %v4648
  %v4650 = vpop.xlane.xlu0 %4649
  %v4651 = vsel %vm4431, %v4579, 0.0
  %4652 = vadd.xlane.f32.xlu0 %v4651
  %v4653 = vpop.xlane.xlu0 %4652
  %v4654 = vsel %vm4431, %v4581, 0.0
  %4655 = vadd.xlane.f32.xlu0 %v4654
  %v4656 = vpop.xlane.xlu0 %4655
  %v4657 = vsel %vm4431, %v4583, 0.0
  %4658 = vadd.xlane.f32.xlu0 %v4657
  %v4659 = vpop.xlane.xlu0 %4658
  %v4660 = vsel %vm4431, %v4585, 0.0
  %4661 = vadd.xlane.f32.xlu0 %v4660
  %v4662 = vpop.xlane.xlu0 %4661
  %v4663 = vsel %vm4431, %v4587, 0.0
  %4664 = vadd.xlane.f32.xlu0 %v4663
  %v4665 = vpop.xlane.xlu0 %4664
  %v4666 = vsel %vm4431, %v4589, 0.0
  %4667 = vadd.xlane.f32.xlu0 %v4666
  %v4668 = vpop.xlane.xlu0 %4667
  %v4669 = vsel %vm4431, %v4591, 0.0
  %4670 = vadd.xlane.f32.xlu0 %v4669
  %v4671 = vpop.xlane.xlu0 %4670
  %v4672 = vsel %vm4431, %v4593, 0.0
  %4673 = vadd.xlane.f32.xlu0 %v4672
  %v4674 = vpop.xlane.xlu0 %4673
  %v4675 = vsel %vm4431, %v4595, 0.0
  %4676 = vadd.xlane.f32.xlu0 %v4675
  %v4677 = vpop.xlane.xlu0 %4676
  %v4678 = vsel %vm4431, %v4597, 0.0
  %4679 = vadd.xlane.f32.xlu0 %v4678
  %v4680 = vpop.xlane.xlu0 %4679
  %v4681 = vsel %vm4431, %v4599, 0.0
  %4682 = vadd.xlane.f32.xlu0 %v4681
  %v4683 = vpop.xlane.xlu0 %4682
  %v4684 = vsel %vm4431, %v4601, 0.0
  %4685 = vadd.xlane.f32.xlu0 %v4684
  %v4686 = vpop.xlane.xlu0 %4685
  %v4687 = vsel %vm4431, %v4603, 0.0
  %4688 = vadd.xlane.f32.xlu0 %v4687
  %v4689 = vpop.xlane.xlu0 %4688
  %v4690 = vsel %vm4431, %v4605, 0.0
  %4691 = vadd.xlane.f32.xlu0 %v4690
  %v4692 = vpop.xlane.xlu0 %4691
  %v4693 = vsel %vm4431, %v4607, 0.0
  %4694 = vadd.xlane.f32.xlu0 %v4693
  %v4695 = vpop.xlane.xlu0 %4694
  %v4696 = vsel %vm4431, %v4609, 0.0
  %4697 = vadd.xlane.f32.xlu0 %v4696
  %v4698 = vpop.xlane.xlu0 %4697
  %v4699 = vsel %vm4431, %v4611, 0.0
  %4700 = vadd.xlane.f32.xlu0 %v4699
  %v4701 = vpop.xlane.xlu0 %4700
  %v4702 = vsel %vm4431, %v4613, 0.0
  %4703 = vadd.xlane.f32.xlu0 %v4702
  %v4704 = vpop.xlane.xlu0 %4703
  %v4705 = vsel %vm4431, %v4615, 0.0
  %4706 = vadd.xlane.f32.xlu0 %v4705
  %v4707 = vpop.xlane.xlu0 %4706
  %v4708 = vsel %vm4431, %v4617, 0.0
  %4709 = vadd.xlane.f32.xlu0 %v4708
  %v4710 = vpop.xlane.xlu0 %4709
  %v4711 = vsel %vm4431, %v4619, 0.0
  %4712 = vadd.xlane.f32.xlu0 %v4711
  %v4713 = vpop.xlane.xlu0 %4712
  %v4714 = vsel %vm4431, %v4621, 0.0
  %4715 = vadd.xlane.f32.xlu0 %v4714
  %v4716 = vpop.xlane.xlu0 %4715
  %v4717 = vsel %vm4431, %v4623, 0.0
  %4718 = vadd.xlane.f32.xlu0 %v4717
  %v4719 = vpop.xlane.xlu0 %4718
  %v4720 = vrcp.pop %v4626
  %v4721 = vmul.f32 %v4626, %v4720
  %v4722 = vsub.f32 1.0, %v4721
  %v4723 = vmul.f32 %v4720, %v4722
  %v4724 = vadd.f32 %v4720, %v4723
  %vm4725 = vweird.f32 %v4626
  %vm4726 = vweird.f32 %v4720
  %vm4727 = vmor %vm4725, %vm4726
  %v4728 = vsel %vm4727, %v4720, %v4724
  %v4729 = vand.u32 2147483647, %v4626
  %vm4730 = vcmp.eq.f32.partialorder %v4729, 8.507059e+37
  %v4731 = vand.u32 %v4626, 2147483648
  %v4732 = vor.u32 1.1754944e-38, %v4731
  %v4733 = vsel %vm4730, %v4732, %v4728
  %v4734 = vrcp.pop %v4629
  %v4735 = vmul.f32 %v4629, %v4734
  %v4736 = vsub.f32 1.0, %v4735
  %v4737 = vmul.f32 %v4734, %v4736
  %v4738 = vadd.f32 %v4734, %v4737
  %vm4739 = vweird.f32 %v4629
  %vm4740 = vweird.f32 %v4734
  %vm4741 = vmor %vm4739, %vm4740
  %v4742 = vsel %vm4741, %v4734, %v4738
  %v4743 = vand.u32 2147483647, %v4629
  %vm4744 = vcmp.eq.f32.partialorder %v4743, 8.507059e+37
  %v4745 = vand.u32 %v4629, 2147483648
  %v4746 = vor.u32 1.1754944e-38, %v4745
  %v4747 = vsel %vm4744, %v4746, %v4742
  %v4748 = vrcp.pop %v4632
  %v4749 = vmul.f32 %v4632, %v4748
  %v4750 = vsub.f32 1.0, %v4749
  %v4751 = vmul.f32 %v4748, %v4750
  %v4752 = vadd.f32 %v4748, %v4751
  %vm4753 = vweird.f32 %v4632
  %vm4754 = vweird.f32 %v4748
  %vm4755 = vmor %vm4753, %vm4754
  %v4756 = vsel %vm4755, %v4748, %v4752
  %v4757 = vand.u32 2147483647, %v4632
  %vm4758 = vcmp.eq.f32.partialorder %v4757, 8.507059e+37
  %v4759 = vand.u32 %v4632, 2147483648
  %v4760 = vor.u32 1.1754944e-38, %v4759
  %v4761 = vsel %vm4758, %v4760, %v4756
  %v4762 = vrcp.pop %v4635
  %v4763 = vmul.f32 %v4635, %v4762
  %v4764 = vsub.f32 1.0, %v4763
  %v4765 = vmul.f32 %v4762, %v4764
  %v4766 = vadd.f32 %v4762, %v4765
  %vm4767 = vweird.f32 %v4635
  %vm4768 = vweird.f32 %v4762
  %vm4769 = vmor %vm4767, %vm4768
  %v4770 = vsel %vm4769, %v4762, %v4766
  %v4771 = vand.u32 2147483647, %v4635
  %vm4772 = vcmp.eq.f32.partialorder %v4771, 8.507059e+37
  %v4773 = vand.u32 %v4635, 2147483648
  %v4774 = vor.u32 1.1754944e-38, %v4773
  %v4775 = vsel %vm4772, %v4774, %v4770
  %v4776 = vrcp.pop %v4638
  %v4777 = vmul.f32 %v4638, %v4776
  %v4778 = vsub.f32 1.0, %v4777
  %v4779 = vmul.f32 %v4776, %v4778
  %v4780 = vadd.f32 %v4776, %v4779
  %vm4781 = vweird.f32 %v4638
  %vm4782 = vweird.f32 %v4776
  %vm4783 = vmor %vm4781, %vm4782
  %v4784 = vsel %vm4783, %v4776, %v4780
  %v4785 = vand.u32 2147483647, %v4638
  %vm4786 = vcmp.eq.f32.partialorder %v4785, 8.507059e+37
  %v4787 = vand.u32 %v4638, 2147483648
  %v4788 = vor.u32 1.1754944e-38, %v4787
  %v4789 = vsel %vm4786, %v4788, %v4784
  %v4790 = vrcp.pop %v4641
  %v4791 = vmul.f32 %v4641, %v4790
  %v4792 = vsub.f32 1.0, %v4791
  %v4793 = vmul.f32 %v4790, %v4792
  %v4794 = vadd.f32 %v4790, %v4793
  %vm4795 = vweird.f32 %v4641
  %vm4796 = vweird.f32 %v4790
  %vm4797 = vmor %vm4795, %vm4796
  %v4798 = vsel %vm4797, %v4790, %v4794
  %v4799 = vand.u32 2147483647, %v4641
  %vm4800 = vcmp.eq.f32.partialorder %v4799, 8.507059e+37
  %v4801 = vand.u32 %v4641, 2147483648
  %v4802 = vor.u32 1.1754944e-38, %v4801
  %v4803 = vsel %vm4800, %v4802, %v4798
  %v4804 = vrcp.pop %v4644
  %v4805 = vmul.f32 %v4644, %v4804
  %v4806 = vsub.f32 1.0, %v4805
  %v4807 = vmul.f32 %v4804, %v4806
  %v4808 = vadd.f32 %v4804, %v4807
  %vm4809 = vweird.f32 %v4644
  %vm4810 = vweird.f32 %v4804
  %vm4811 = vmor %vm4809, %vm4810
  %v4812 = vsel %vm4811, %v4804, %v4808
  %v4813 = vand.u32 2147483647, %v4644
  %vm4814 = vcmp.eq.f32.partialorder %v4813, 8.507059e+37
  %v4815 = vand.u32 %v4644, 2147483648
  %v4816 = vor.u32 1.1754944e-38, %v4815
  %v4817 = vsel %vm4814, %v4816, %v4812
  %v4818 = vrcp.pop %v4647
  %v4819 = vmul.f32 %v4647, %v4818
  %v4820 = vsub.f32 1.0, %v4819
  %v4821 = vmul.f32 %v4818, %v4820
  %v4822 = vadd.f32 %v4818, %v4821
  %vm4823 = vweird.f32 %v4647
  %vm4824 = vweird.f32 %v4818
  %vm4825 = vmor %vm4823, %vm4824
  %v4826 = vsel %vm4825, %v4818, %v4822
  %v4827 = vand.u32 2147483647, %v4647
  %vm4828 = vcmp.eq.f32.partialorder %v4827, 8.507059e+37
  %v4829 = vand.u32 %v4647, 2147483648
  %v4830 = vor.u32 1.1754944e-38, %v4829
  %v4831 = vsel %vm4828, %v4830, %v4826
  %v4832 = vrcp.pop %v4650
  %v4833 = vmul.f32 %v4650, %v4832
  %v4834 = vsub.f32 1.0, %v4833
  %v4835 = vmul.f32 %v4832, %v4834
  %v4836 = vadd.f32 %v4832, %v4835
  %vm4837 = vweird.f32 %v4650
  %vm4838 = vweird.f32 %v4832
  %vm4839 = vmor %vm4837, %vm4838
  %v4840 = vsel %vm4839, %v4832, %v4836
  %v4841 = vand.u32 2147483647, %v4650
  %vm4842 = vcmp.eq.f32.partialorder %v4841, 8.507059e+37
  %v4843 = vand.u32 %v4650, 2147483648
  %v4844 = vor.u32 1.1754944e-38, %v4843
  %v4845 = vsel %vm4842, %v4844, %v4840
  %v4846 = vrcp.pop %v4653
  %v4847 = vmul.f32 %v4653, %v4846
  %v4848 = vsub.f32 1.0, %v4847
  %v4849 = vmul.f32 %v4846, %v4848
  %v4850 = vadd.f32 %v4846, %v4849
  %vm4851 = vweird.f32 %v4653
  %vm4852 = vweird.f32 %v4846
  %vm4853 = vmor %vm4851, %vm4852
  %v4854 = vsel %vm4853, %v4846, %v4850
  %v4855 = vand.u32 2147483647, %v4653
  %vm4856 = vcmp.eq.f32.partialorder %v4855, 8.507059e+37
  %v4857 = vand.u32 %v4653, 2147483648
  %v4858 = vor.u32 1.1754944e-38, %v4857
  %v4859 = vsel %vm4856, %v4858, %v4854
  %v4860 = vrcp.pop %v4656
  %v4861 = vmul.f32 %v4656, %v4860
  %v4862 = vsub.f32 1.0, %v4861
  %v4863 = vmul.f32 %v4860, %v4862
  %v4864 = vadd.f32 %v4860, %v4863
  %vm4865 = vweird.f32 %v4656
  %vm4866 = vweird.f32 %v4860
  %vm4867 = vmor %vm4865, %vm4866
  %v4868 = vsel %vm4867, %v4860, %v4864
  %v4869 = vand.u32 2147483647, %v4656
  %vm4870 = vcmp.eq.f32.partialorder %v4869, 8.507059e+37
  %v4871 = vand.u32 %v4656, 2147483648
  %v4872 = vor.u32 1.1754944e-38, %v4871
  %v4873 = vsel %vm4870, %v4872, %v4868
  %v4874 = vrcp.pop %v4659
  %v4875 = vmul.f32 %v4659, %v4874
  %v4876 = vsub.f32 1.0, %v4875
  %v4877 = vmul.f32 %v4874, %v4876
  %v4878 = vadd.f32 %v4874, %v4877
  %vm4879 = vweird.f32 %v4659
  %vm4880 = vweird.f32 %v4874
  %vm4881 = vmor %vm4879, %vm4880
  %v4882 = vsel %vm4881, %v4874, %v4878
  %v4883 = vand.u32 2147483647, %v4659
  %vm4884 = vcmp.eq.f32.partialorder %v4883, 8.507059e+37
  %v4885 = vand.u32 %v4659, 2147483648
  %v4886 = vor.u32 1.1754944e-38, %v4885
  %v4887 = vsel %vm4884, %v4886, %v4882
  %v4888 = vrcp.pop %v4662
  %v4889 = vmul.f32 %v4662, %v4888
  %v4890 = vsub.f32 1.0, %v4889
  %v4891 = vmul.f32 %v4888, %v4890
  %v4892 = vadd.f32 %v4888, %v4891
  %vm4893 = vweird.f32 %v4662
  %vm4894 = vweird.f32 %v4888
  %vm4895 = vmor %vm4893, %vm4894
  %v4896 = vsel %vm4895, %v4888, %v4892
  %v4897 = vand.u32 2147483647, %v4662
  %vm4898 = vcmp.eq.f32.partialorder %v4897, 8.507059e+37
  %v4899 = vand.u32 %v4662, 2147483648
  %v4900 = vor.u32 1.1754944e-38, %v4899
  %v4901 = vsel %vm4898, %v4900, %v4896
  %v4902 = vrcp.pop %v4665
  %v4903 = vmul.f32 %v4665, %v4902
  %v4904 = vsub.f32 1.0, %v4903
  %v4905 = vmul.f32 %v4902, %v4904
  %v4906 = vadd.f32 %v4902, %v4905
  %vm4907 = vweird.f32 %v4665
  %vm4908 = vweird.f32 %v4902
  %vm4909 = vmor %vm4907, %vm4908
  %v4910 = vsel %vm4909, %v4902, %v4906
  %v4911 = vand.u32 2147483647, %v4665
  %vm4912 = vcmp.eq.f32.partialorder %v4911, 8.507059e+37
  %v4913 = vand.u32 %v4665, 2147483648
  %v4914 = vor.u32 1.1754944e-38, %v4913
  %v4915 = vsel %vm4912, %v4914, %v4910
  %v4916 = vrcp.pop %v4668
  %v4917 = vmul.f32 %v4668, %v4916
  %v4918 = vsub.f32 1.0, %v4917
  %v4919 = vmul.f32 %v4916, %v4918
  %v4920 = vadd.f32 %v4916, %v4919
  %vm4921 = vweird.f32 %v4668
  %vm4922 = vweird.f32 %v4916
  %vm4923 = vmor %vm4921, %vm4922
  %v4924 = vsel %vm4923, %v4916, %v4920
  %v4925 = vand.u32 2147483647, %v4668
  %vm4926 = vcmp.eq.f32.partialorder %v4925, 8.507059e+37
  %v4927 = vand.u32 %v4668, 2147483648
  %v4928 = vor.u32 1.1754944e-38, %v4927
  %v4929 = vsel %vm4926, %v4928, %v4924
  %v4930 = vrcp.pop %v4671
  %v4931 = vmul.f32 %v4671, %v4930
  %v4932 = vsub.f32 1.0, %v4931
  %v4933 = vmul.f32 %v4930, %v4932
  %v4934 = vadd.f32 %v4930, %v4933
  %vm4935 = vweird.f32 %v4671
  %vm4936 = vweird.f32 %v4930
  %vm4937 = vmor %vm4935, %vm4936
  %v4938 = vsel %vm4937, %v4930, %v4934
  %v4939 = vand.u32 2147483647, %v4671
  %vm4940 = vcmp.eq.f32.partialorder %v4939, 8.507059e+37
  %v4941 = vand.u32 %v4671, 2147483648
  %v4942 = vor.u32 1.1754944e-38, %v4941
  %v4943 = vsel %vm4940, %v4942, %v4938
  %v4944 = vrcp.pop %v4674
  %v4945 = vmul.f32 %v4674, %v4944
  %v4946 = vsub.f32 1.0, %v4945
  %v4947 = vmul.f32 %v4944, %v4946
  %v4948 = vadd.f32 %v4944, %v4947
  %vm4949 = vweird.f32 %v4674
  %vm4950 = vweird.f32 %v4944
  %vm4951 = vmor %vm4949, %vm4950
  %v4952 = vsel %vm4951, %v4944, %v4948
  %v4953 = vand.u32 2147483647, %v4674
  %vm4954 = vcmp.eq.f32.partialorder %v4953, 8.507059e+37
  %v4955 = vand.u32 %v4674, 2147483648
  %v4956 = vor.u32 1.1754944e-38, %v4955
  %v4957 = vsel %vm4954, %v4956, %v4952
  %v4958 = vrcp.pop %v4677
  %v4959 = vmul.f32 %v4677, %v4958
  %v4960 = vsub.f32 1.0, %v4959
  %v4961 = vmul.f32 %v4958, %v4960
  %v4962 = vadd.f32 %v4958, %v4961
  %vm4963 = vweird.f32 %v4677
  %vm4964 = vweird.f32 %v4958
  %vm4965 = vmor %vm4963, %vm4964
  %v4966 = vsel %vm4965, %v4958, %v4962
  %v4967 = vand.u32 2147483647, %v4677
  %vm4968 = vcmp.eq.f32.partialorder %v4967, 8.507059e+37
  %v4969 = vand.u32 %v4677, 2147483648
  %v4970 = vor.u32 1.1754944e-38, %v4969
  %v4971 = vsel %vm4968, %v4970, %v4966
  %v4972 = vrcp.pop %v4680
  %v4973 = vmul.f32 %v4680, %v4972
  %v4974 = vsub.f32 1.0, %v4973
  %v4975 = vmul.f32 %v4972, %v4974
  %v4976 = vadd.f32 %v4972, %v4975
  %vm4977 = vweird.f32 %v4680
  %vm4978 = vweird.f32 %v4972
  %vm4979 = vmor %vm4977, %vm4978
  %v4980 = vsel %vm4979, %v4972, %v4976
  %v4981 = vand.u32 2147483647, %v4680
  %vm4982 = vcmp.eq.f32.partialorder %v4981, 8.507059e+37
  %v4983 = vand.u32 %v4680, 2147483648
  %v4984 = vor.u32 1.1754944e-38, %v4983
  %v4985 = vsel %vm4982, %v4984, %v4980
  %v4986 = vrcp.pop %v4683
  %v4987 = vmul.f32 %v4683, %v4986
  %v4988 = vsub.f32 1.0, %v4987
  %v4989 = vmul.f32 %v4986, %v4988
  %v4990 = vadd.f32 %v4986, %v4989
  %vm4991 = vweird.f32 %v4683
  %vm4992 = vweird.f32 %v4986
  %vm4993 = vmor %vm4991, %vm4992
  %v4994 = vsel %vm4993, %v4986, %v4990
  %v4995 = vand.u32 2147483647, %v4683
  %vm4996 = vcmp.eq.f32.partialorder %v4995, 8.507059e+37
  %v4997 = vand.u32 %v4683, 2147483648
  %v4998 = vor.u32 1.1754944e-38, %v4997
  %v4999 = vsel %vm4996, %v4998, %v4994
  %v5000 = vrcp.pop %v4686
  %v5001 = vmul.f32 %v4686, %v5000
  %v5002 = vsub.f32 1.0, %v5001
  %v5003 = vmul.f32 %v5000, %v5002
  %v5004 = vadd.f32 %v5000, %v5003
  %vm5005 = vweird.f32 %v4686
  %vm5006 = vweird.f32 %v5000
  %vm5007 = vmor %vm5005, %vm5006
  %v5008 = vsel %vm5007, %v5000, %v5004
  %v5009 = vand.u32 2147483647, %v4686
  %vm5010 = vcmp.eq.f32.partialorder %v5009, 8.507059e+37
  %v5011 = vand.u32 %v4686, 2147483648
  %v5012 = vor.u32 1.1754944e-38, %v5011
  %v5013 = vsel %vm5010, %v5012, %v5008
  %v5014 = vrcp.pop %v4689
  %v5015 = vmul.f32 %v4689, %v5014
  %v5016 = vsub.f32 1.0, %v5015
  %v5017 = vmul.f32 %v5014, %v5016
  %v5018 = vadd.f32 %v5014, %v5017
  %vm5019 = vweird.f32 %v4689
  %vm5020 = vweird.f32 %v5014
  %vm5021 = vmor %vm5019, %vm5020
  %v5022 = vsel %vm5021, %v5014, %v5018
  %v5023 = vand.u32 2147483647, %v4689
  %vm5024 = vcmp.eq.f32.partialorder %v5023, 8.507059e+37
  %v5025 = vand.u32 %v4689, 2147483648
  %v5026 = vor.u32 1.1754944e-38, %v5025
  %v5027 = vsel %vm5024, %v5026, %v5022
  %v5028 = vrcp.pop %v4692
  %v5029 = vmul.f32 %v4692, %v5028
  %v5030 = vsub.f32 1.0, %v5029
  %v5031 = vmul.f32 %v5028, %v5030
  %v5032 = vadd.f32 %v5028, %v5031
  %vm5033 = vweird.f32 %v4692
  %vm5034 = vweird.f32 %v5028
  %vm5035 = vmor %vm5033, %vm5034
  %v5036 = vsel %vm5035, %v5028, %v5032
  %v5037 = vand.u32 2147483647, %v4692
  %vm5038 = vcmp.eq.f32.partialorder %v5037, 8.507059e+37
  %v5039 = vand.u32 %v4692, 2147483648
  %v5040 = vor.u32 1.1754944e-38, %v5039
  %v5041 = vsel %vm5038, %v5040, %v5036
  %v5042 = vrcp.pop %v4695
  %v5043 = vmul.f32 %v4695, %v5042
  %v5044 = vsub.f32 1.0, %v5043
  %v5045 = vmul.f32 %v5042, %v5044
  %v5046 = vadd.f32 %v5042, %v5045
  %vm5047 = vweird.f32 %v4695
  %vm5048 = vweird.f32 %v5042
  %vm5049 = vmor %vm5047, %vm5048
  %v5050 = vsel %vm5049, %v5042, %v5046
  %v5051 = vand.u32 2147483647, %v4695
  %vm5052 = vcmp.eq.f32.partialorder %v5051, 8.507059e+37
  %v5053 = vand.u32 %v4695, 2147483648
  %v5054 = vor.u32 1.1754944e-38, %v5053
  %v5055 = vsel %vm5052, %v5054, %v5050
  %v5056 = vrcp.pop %v4698
  %v5057 = vmul.f32 %v4698, %v5056
  %v5058 = vsub.f32 1.0, %v5057
  %v5059 = vmul.f32 %v5056, %v5058
  %v5060 = vadd.f32 %v5056, %v5059
  %vm5061 = vweird.f32 %v4698
  %vm5062 = vweird.f32 %v5056
  %vm5063 = vmor %vm5061, %vm5062
  %v5064 = vsel %vm5063, %v5056, %v5060
  %v5065 = vand.u32 2147483647, %v4698
  %vm5066 = vcmp.eq.f32.partialorder %v5065, 8.507059e+37
  %v5067 = vand.u32 %v4698, 2147483648
  %v5068 = vor.u32 1.1754944e-38, %v5067
  %v5069 = vsel %vm5066, %v5068, %v5064
  %v5070 = vrcp.pop %v4701
  %v5071 = vmul.f32 %v4701, %v5070
  %v5072 = vsub.f32 1.0, %v5071
  %v5073 = vmul.f32 %v5070, %v5072
  %v5074 = vadd.f32 %v5070, %v5073
  %vm5075 = vweird.f32 %v4701
  %vm5076 = vweird.f32 %v5070
  %vm5077 = vmor %vm5075, %vm5076
  %v5078 = vsel %vm5077, %v5070, %v5074
  %v5079 = vand.u32 2147483647, %v4701
  %vm5080 = vcmp.eq.f32.partialorder %v5079, 8.507059e+37
  %v5081 = vand.u32 %v4701, 2147483648
  %v5082 = vor.u32 1.1754944e-38, %v5081
  %v5083 = vsel %vm5080, %v5082, %v5078
  %v5084 = vrcp.pop %v4704
  %v5085 = vmul.f32 %v4704, %v5084
  %v5086 = vsub.f32 1.0, %v5085
  %v5087 = vmul.f32 %v5084, %v5086
  %v5088 = vadd.f32 %v5084, %v5087
  %vm5089 = vweird.f32 %v4704
  %vm5090 = vweird.f32 %v5084
  %vm5091 = vmor %vm5089, %vm5090
  %v5092 = vsel %vm5091, %v5084, %v5088
  %v5093 = vand.u32 2147483647, %v4704
  %vm5094 = vcmp.eq.f32.partialorder %v5093, 8.507059e+37
  %v5095 = vand.u32 %v4704, 2147483648
  %v5096 = vor.u32 1.1754944e-38, %v5095
  %v5097 = vsel %vm5094, %v5096, %v5092
  %v5098 = vrcp.pop %v4707
  %v5099 = vmul.f32 %v4707, %v5098
  %v5100 = vsub.f32 1.0, %v5099
  %v5101 = vmul.f32 %v5098, %v5100
  %v5102 = vadd.f32 %v5098, %v5101
  %vm5103 = vweird.f32 %v4707
  %vm5104 = vweird.f32 %v5098
  %vm5105 = vmor %vm5103, %vm5104
  %v5106 = vsel %vm5105, %v5098, %v5102
  %v5107 = vand.u32 2147483647, %v4707
  %vm5108 = vcmp.eq.f32.partialorder %v5107, 8.507059e+37
  %v5109 = vand.u32 %v4707, 2147483648
  %v5110 = vor.u32 1.1754944e-38, %v5109
  %v5111 = vsel %vm5108, %v5110, %v5106
  %v5112 = vrcp.pop %v4710
  %v5113 = vmul.f32 %v4710, %v5112
  %v5114 = vsub.f32 1.0, %v5113
  %v5115 = vmul.f32 %v5112, %v5114
  %v5116 = vadd.f32 %v5112, %v5115
  %vm5117 = vweird.f32 %v4710
  %vm5118 = vweird.f32 %v5112
  %vm5119 = vmor %vm5117, %vm5118
  %v5120 = vsel %vm5119, %v5112, %v5116
  %v5121 = vand.u32 2147483647, %v4710
  %vm5122 = vcmp.eq.f32.partialorder %v5121, 8.507059e+37
  %v5123 = vand.u32 %v4710, 2147483648
  %v5124 = vor.u32 1.1754944e-38, %v5123
  %v5125 = vsel %vm5122, %v5124, %v5120
  %v5126 = vrcp.pop %v4713
  %v5127 = vmul.f32 %v4713, %v5126
  %v5128 = vsub.f32 1.0, %v5127
  %v5129 = vmul.f32 %v5126, %v5128
  %v5130 = vadd.f32 %v5126, %v5129
  %vm5131 = vweird.f32 %v4713
  %vm5132 = vweird.f32 %v5126
  %vm5133 = vmor %vm5131, %vm5132
  %v5134 = vsel %vm5133, %v5126, %v5130
  %v5135 = vand.u32 2147483647, %v4713
  %vm5136 = vcmp.eq.f32.partialorder %v5135, 8.507059e+37
  %v5137 = vand.u32 %v4713, 2147483648
  %v5138 = vor.u32 1.1754944e-38, %v5137
  %v5139 = vsel %vm5136, %v5138, %v5134
  %v5140 = vrcp.pop %v4716
  %v5141 = vmul.f32 %v4716, %v5140
  %v5142 = vsub.f32 1.0, %v5141
  %v5143 = vmul.f32 %v5140, %v5142
  %v5144 = vadd.f32 %v5140, %v5143
  %vm5145 = vweird.f32 %v4716
  %vm5146 = vweird.f32 %v5140
  %vm5147 = vmor %vm5145, %vm5146
  %v5148 = vsel %vm5147, %v5140, %v5144
  %v5149 = vand.u32 2147483647, %v4716
  %vm5150 = vcmp.eq.f32.partialorder %v5149, 8.507059e+37
  %v5151 = vand.u32 %v4716, 2147483648
  %v5152 = vor.u32 1.1754944e-38, %v5151
  %v5153 = vsel %vm5150, %v5152, %v5148
  %v5154 = vrcp.pop %v4719
  %v5155 = vmul.f32 %v4719, %v5154
  %v5156 = vsub.f32 1.0, %v5155
  %v5157 = vmul.f32 %v5154, %v5156
  %v5158 = vadd.f32 %v5154, %v5157
  %vm5159 = vweird.f32 %v4719
  %vm5160 = vweird.f32 %v5154
  %vm5161 = vmor %vm5159, %vm5160
  %v5162 = vsel %vm5161, %v5154, %v5158
  %v5163 = vand.u32 2147483647, %v4719
  %vm5164 = vcmp.eq.f32.partialorder %v5163, 8.507059e+37
  %v5165 = vand.u32 %v4719, 2147483648
  %v5166 = vor.u32 1.1754944e-38, %v5165
  %v5167 = vsel %vm5164, %v5166, %v5162
  %v5168 = vmul.f32 %v4561, %v4733
  %v5169 = vmul.f32 %v4563, %v4747
  %v5170 = vmul.f32 %v4565, %v4761
  %v5171 = vmul.f32 %v4567, %v4775
  %v5172 = vmul.f32 %v4569, %v4789
  %v5173 = vmul.f32 %v4571, %v4803
  %v5174 = vmul.f32 %v4573, %v4817
  %v5175 = vmul.f32 %v4575, %v4831
  %v5176 = vmul.f32 %v4577, %v4845
  %v5177 = vmul.f32 %v4579, %v4859
  %v5178 = vmul.f32 %v4581, %v4873
  %v5179 = vmul.f32 %v4583, %v4887
  %v5180 = vmul.f32 %v4585, %v4901
  %v5181 = vmul.f32 %v4587, %v4915
  %v5182 = vmul.f32 %v4589, %v4929
  %v5183 = vmul.f32 %v4591, %v4943
  %v5184 = vmul.f32 %v4593, %v4957
  %v5185 = vmul.f32 %v4595, %v4971
  %v5186 = vmul.f32 %v4597, %v4985
  %v5187 = vmul.f32 %v4599, %v4999
  %v5188 = vmul.f32 %v4601, %v5013
  %v5189 = vmul.f32 %v4603, %v5027
  %v5190 = vmul.f32 %v4605, %v5041
  %v5191 = vmul.f32 %v4607, %v5055
  %v5192 = vmul.f32 %v4609, %v5069
  %v5193 = vmul.f32 %v4611, %v5083
  %v5194 = vmul.f32 %v4613, %v5097
  %v5195 = vmul.f32 %v4615, %v5111
  %v5196 = vmul.f32 %v4617, %v5125
  %v5197 = vmul.f32 %v4619, %v5139
  %v5198 = vmul.f32 %v4621, %v5153
  %v5199 = vmul.f32 %v4623, %v5167
  %5200 = vst.msk [vmem:[%s6] sm:$0xff] %vm4431, %v5168
  %5201 = vst.msk [vmem:[%s6 + $0x8] sm:$0xff] %vm4431, %v5169
  %5202 = vst.msk [vmem:[%s6 + $0x10] sm:$0xff] %vm4431, %v5170
  %5203 = vst.msk [vmem:[%s6 + $0x18] sm:$0xff] %vm4431, %v5171
  %5204 = vst.msk [vmem:[%s6 + $0x20] sm:$0xff] %vm4431, %v5172
  %5205 = vst.msk [vmem:[%s6 + $0x28] sm:$0xff] %vm4431, %v5173
  %5206 = vst.msk [vmem:[%s6 + $0x30] sm:$0xff] %vm4431, %v5174
  %5207 = vst.msk [vmem:[%s6 + $0x38] sm:$0xff] %vm4431, %v5175
  %5208 = vst.msk [vmem:[%s6 + $0x40] sm:$0xff] %vm4431, %v5176
  %5209 = vst.msk [vmem:[%s6 + $0x48] sm:$0xff] %vm4431, %v5177
  %5210 = vst.msk [vmem:[%s6 + $0x50] sm:$0xff] %vm4431, %v5178
  %5211 = vst.msk [vmem:[%s6 + $0x58] sm:$0xff] %vm4431, %v5179
  %5212 = vst.msk [vmem:[%s6 + $0x60] sm:$0xff] %vm4431, %v5180
  %5213 = vst.msk [vmem:[%s6 + $0x68] sm:$0xff] %vm4431, %v5181
  %5214 = vst.msk [vmem:[%s6 + $0x70] sm:$0xff] %vm4431, %v5182
  %5215 = vst.msk [vmem:[%s6 + $0x78] sm:$0xff] %vm4431, %v5183
  %5216 = vst.msk [vmem:[%s6 + $0x80] sm:$0xff] %vm4431, %v5184
  %5217 = vst.msk [vmem:[%s6 + $0x88] sm:$0xff] %vm4431, %v5185
  %5218 = vst.msk [vmem:[%s6 + $0x90] sm:$0xff] %vm4431, %v5186
  %5219 = vst.msk [vmem:[%s6 + $0x98] sm:$0xff] %vm4431, %v5187
  %5220 = vst.msk [vmem:[%s6 + $0xa0] sm:$0xff] %vm4431, %v5188
  %5221 = vst.msk [vmem:[%s6 + $0xa8] sm:$0xff] %vm4431, %v5189
  %5222 = vst.msk [vmem:[%s6 + $0xb0] sm:$0xff] %vm4431, %v5190
  %5223 = vst.msk [vmem:[%s6 + $0xb8] sm:$0xff] %vm4431, %v5191
  %5224 = vst.msk [vmem:[%s6 + $0xc0] sm:$0xff] %vm4431, %v5192
  %5225 = vst.msk [vmem:[%s6 + $0xc8] sm:$0xff] %vm4431, %v5193
  %5226 = vst.msk [vmem:[%s6 + $0xd0] sm:$0xff] %vm4431, %v5194
  %5227 = vst.msk [vmem:[%s6 + $0xd8] sm:$0xff] %vm4431, %v5195
  %5228 = vst.msk [vmem:[%s6 + $0xe0] sm:$0xff] %vm4431, %v5196
  %5229 = vst.msk [vmem:[%s6 + $0xe8] sm:$0xff] %vm4431, %v5197
  %5230 = vst.msk [vmem:[%s6 + $0xf0] sm:$0xff] %vm4431, %v5198
  %5231 = vst.msk [vmem:[%s6 + $0xf8] sm:$0xff] %vm4431, %v5199
  // Predicated region
  $region26: #{tpu_custom_call.1} parent=0 // pred_check
    _
  $region27: #{tpu_custom_call.1} parent=0 // pred_check_branch
    %5233 = sbr.rel (0) target = $region29
  $region28: #{tpu_custom_call.1} parent=0 // pred_region
    _
  $region29: #{tpu_custom_call.1} parent=0 // pred_fallthru
    _
  // Predicated region
  $region30: #{tpu_custom_call.1} parent=0 // pred_check
    _
  $region31: #{tpu_custom_call.1} parent=0 // pred_check_branch
    %5235 = sbr.rel (0) target = $region33
  $region32: #{tpu_custom_call.1} parent=0 // pred_region
    _
  $region33: #{tpu_custom_call.1} parent=0 // pred_fallthru
    _

</llo_original>
